<compile_context>
chip_gen: v5e
topology: v5e:2x2
jax: 0.10.0
libtpu: 0.0.40
codegen_flags: <defaults>
</compile_context>

<pallas_src>
import functools

import jax
import jax.numpy as jnp
from jax.experimental import pallas as pl
from jax.experimental.pallas import tpu as pltpu


def _layernorm(x, gamma, beta, eps=1e-5):
    mu = jnp.mean(x, axis=-1, keepdims=True)
    var = jnp.mean((x - mu) ** 2, axis=-1, keepdims=True)
    return (x - mu) * jax.lax.rsqrt(var + eps) * gamma + beta


def block_kernel(x_ref, g1_ref, b1_ref, wqkv_ref, wproj_ref, bproj_ref,
                 g2_ref, b2_ref, w1_ref, bfc1_ref, w2_ref, bfc2_ref,
                 o_ref, attn_scratch, *, num_heads, scale):
    Bblk, N, C = x_ref.shape
    M = Bblk * N
    hd = C // num_heads

    # Residual stream in f32; all token rows of the batch-block fused into a
    # single (M, C) slab so the weight GEMMs get a large MXU M-dimension.
    x = x_ref[...].reshape(M, C).astype(jnp.float32)

    # ---------------- attention branch ----------------
    xn = _layernorm(x, g1_ref[...], b1_ref[...])
    qkv = jnp.dot(xn.astype(jnp.bfloat16), wqkv_ref[...],
                  preferred_element_type=jnp.float32)          # (M, 3C) f32
    q = (qkv[:, 0:C] * scale).astype(jnp.bfloat16)             # scale folded into q
    k = qkv[:, C:2 * C].astype(jnp.bfloat16)
    v = qkv[:, 2 * C:3 * C].astype(jnp.bfloat16)

    # Per (batch-row, head) attention. dot_general contracts the LAST dim of
    # both operands, so no explicit k transpose (no XLU transpose) is needed.
    dn = (((1,), (1,)), ((), ()))
    for b in range(Bblk):                                      # static, small
        r0 = b * N
        qb = q[r0:r0 + N, :]
        kb = k[r0:r0 + N, :]
        vb = v[r0:r0 + N, :]
        for h in range(num_heads):                             # static, small
            lo = h * hd
            s = jax.lax.dot_general(qb[:, lo:lo + hd], kb[:, lo:lo + hd], dn,
                                    preferred_element_type=jnp.float32)  # (N, N)
            s = s - jnp.max(s, axis=-1, keepdims=True)
            p = jnp.exp(s)
            inv = pl.reciprocal(jnp.sum(p, axis=-1, keepdims=True), approx=True)
            p = (p * inv).astype(jnp.bfloat16)
            oh = jnp.dot(p, vb[:, lo:lo + hd],
                         preferred_element_type=jnp.float32)   # (N, hd) f32
            # Park head output in VMEM at its lane offset; one full-K
            # projection runs after the loop (no per-head K=hd matmuls).
            attn_scratch[r0:r0 + N, lo:lo + hd] = oh

    attn_out = jnp.dot(attn_scratch[...].astype(jnp.bfloat16), wproj_ref[...],
                       preferred_element_type=jnp.float32) + bproj_ref[...]
    x1 = x + attn_out                                          # residual 1 (f32)

    # ---------------- MLP branch ----------------
    xn2 = _layernorm(x1, g2_ref[...], b2_ref[...])
    h1 = jnp.dot(xn2.astype(jnp.bfloat16), w1_ref[...],
                 preferred_element_type=jnp.float32) + bfc1_ref[...]
    # tanh GELU -> EUP slot (exact erf would burn VALU on the largest tensor).
    h1 = jax.nn.gelu(h1, approximate=True)
    h2 = jnp.dot(h1.astype(jnp.bfloat16), w2_ref[...],
                 preferred_element_type=jnp.float32) + bfc2_ref[...]
    o_ref[...] = (x1 + h2).reshape(Bblk, N, C).astype(o_ref.dtype)   # residual 2


def _pick_block_b(B, N, target_rows=256):
    """Largest divisor of B such that (a) the fused GEMM M-dim stays <= target_rows
    and (b) at least two grid steps remain when B > 1 (both v7x TCs get work)."""
    best = 1
    for cand in range(1, B + 1):
        if B % cand:
            continue
        if cand * N > target_rows:
            continue
        if B > 1 and B // cand < 2:
            continue
        best = cand
    return best


def block_forward(x, params, num_heads, *, block_b=None):
    """params: LN params / biases in f32; wqkv/wproj/w1/w2 expected pre-cast to
    bf16 (done once at parameter-preparation time, not per call)."""
    B, N, C = x.shape
    hidden = params["w1"].shape[1]
    scale = (C // num_heads) ** (-0.5)
    if block_b is None:
        block_b = _pick_block_b(B, N)
    assert B % block_b == 0

    kernel = functools.partial(block_kernel, num_heads=num_heads, scale=scale)

    def full(shape, single_buffer=False):
        kwargs = {}
        if single_buffer:
            # Constant-index weight blocks: double-buffering buys nothing and
            # doubles VMEM residency (critical on v7x's 64 MiB VMEM at real sizes).
            kwargs["pipeline_mode"] = pl.Buffered(1)
        return pl.BlockSpec(shape, lambda i: (0,) * len(shape), **kwargs)

    in_specs = [
        pl.BlockSpec((block_b, N, C), lambda i: (i, 0, 0)),      # x slab
        full((1, C)), full((1, C)),                              # LN1 gamma/beta (f32)
        full((C, 3 * C), single_buffer=True),                    # qkv weight (bf16)
        full((C, C), single_buffer=True), full((1, C)),          # proj weight / bias
        full((1, C)), full((1, C)),                              # LN2 gamma/beta (f32)
        full((C, hidden), single_buffer=True), full((1, hidden)),  # fc1 weight / bias
        full((hidden, C), single_buffer=True), full((1, C)),       # fc2 weight / bias
    ]

    # Advisory cost estimate for XLA's scheduler.
    flops = 2 * B * N * (3 * C * C + 2 * N * C + C * C + 2 * C * hidden)
    transcendentals = B * num_heads * N * (N + 1) + B * N * hidden  # exp + recip + tanh-gelu
    weight_bytes = sum(int(params[k].size) * params[k].dtype.itemsize
                       for k in ("wqkv", "wproj", "w1", "w2"))
    bytes_accessed = 2 * x.size * x.dtype.itemsize + weight_bytes + 4 * (6 * C + hidden)
    cost = pl.CostEstimate(flops=int(flops), transcendentals=int(transcendentals),
                           bytes_accessed=int(bytes_accessed))

    return pl.pallas_call(
        kernel,
        out_shape=jax.ShapeDtypeStruct((B, N, C), x.dtype),
        grid=(B // block_b,),
        in_specs=in_specs,
        out_specs=pl.BlockSpec((block_b, N, C), lambda i: (i, 0, 0)),
        scratch_shapes=[pltpu.VMEM((block_b * N, C), jnp.float32)],
        compiler_params=pltpu.CompilerParams(
            dimension_semantics=("parallel",),
            # 48 MiB fits every generation (incl. v7x's 64 MiB physical VMEM);
            # raise toward ~96 MiB on v5e/v6e when growing tiles for real shapes.
            vmem_limit_bytes=48 * 1024 * 1024),
        cost_estimate=cost,
    )(x, params["g1"], params["b1"], params["wqkv"],
      params["wproj"], params["bproj"],
      params["g2"], params["b2"],
      params["w1"], params["bfc1"], params["w2"], params["bfc2"])


# ---------------- pure-JAX reference (for correctness check) ----------------
def block_ref(x, params, num_heads):
    B, N, C = x.shape
    hd = C // num_heads
    scale = hd ** (-0.5)

    def ln(v, g, b):
        mu = jnp.mean(v, axis=-1, keepdims=True)
        var = jnp.mean((v - mu) ** 2, axis=-1, keepdims=True)
        return (v - mu) * jax.lax.rsqrt(var + 1e-5) * g + b

    xn = ln(x, params["g1"], params["b1"])
    qkv = xn @ params["wqkv"]                                    # (B, N, 3C)
    qkv = qkv.reshape(B, N, 3, num_heads, hd).transpose(2, 0, 3, 1, 4)
    q, k, v = qkv[0], qkv[1], qkv[2]                             # (B, H, N, hd)
    attn = jnp.einsum("bhnd,bhmd->bhnm", q, k) * scale
    attn = jax.nn.softmax(attn, axis=-1)
    o = jnp.einsum("bhnm,bhmd->bhnd", attn, v).transpose(0, 2, 1, 3).reshape(B, N, C)
    o = o @ params["wproj"] + params["bproj"]
    x1 = x + o
    xn2 = ln(x1, params["g2"], params["b2"])
    h = jax.nn.gelu(xn2 @ params["w1"] + params["bfc1"], approximate=False)
    return x1 + (h @ params["w2"] + params["bfc2"])


if __name__ == "__main__":
    # Small, lane-dense shapes (C multiple of 128, N multiple of 8).
    B, N, C = 4, 64, 128
    num_heads = 4
    mlp_ratio = 4.0
    hidden = int(C * mlp_ratio)

    key = jax.random.PRNGKey(0)
    ks = jax.random.split(key, 8)
    x = jax.random.normal(ks[0], (B, N, C), jnp.float32)

    params_f32 = {
        "g1": jnp.ones((1, C), jnp.float32),
        "b1": jnp.zeros((1, C), jnp.float32),
        # nn.Linear weights are (out, in) in torch; stored here pre-transposed (in, out).
        "wqkv": 0.02 * jax.random.normal(ks[1], (C, 3 * C), jnp.float32),
        "wproj": 0.02 * jax.random.normal(ks[2], (C, C), jnp.float32),
        "bproj": 0.02 * jax.random.normal(ks[3], (1, C), jnp.float32),
        "g2": jnp.ones((1, C), jnp.float32),
        "b2": jnp.zeros((1, C), jnp.float32),
        "w1": 0.02 * jax.random.normal(ks[4], (C, hidden), jnp.float32),
        "bfc1": 0.02 * jax.random.normal(ks[5], (1, hidden), jnp.float32),
        "w2": 0.02 * jax.random.normal(ks[6], (hidden, C), jnp.float32),
        "bfc2": 0.02 * jax.random.normal(ks[7], (1, C), jnp.float32),
    }

    # bf16 weight copies prepared ONCE (parameter-preparation time); biases and
    # LN params stay f32.
    params = dict(params_f32)
    for name in ("wqkv", "wproj", "w1", "w2"):
        params[name] = params_f32[name].astype(jnp.bfloat16)

    out = block_forward(x, params, num_heads)
    out = jax.block_until_ready(out)

    ref = block_ref(x, params_f32, num_heads)
    assert out.shape == (B, N, C)
    # Tolerances loosened vs the pure-f32 reference: bf16 MXU inputs (f32
    # accumulation), approximate softmax reciprocal, tanh GELU.
    assert jnp.allclose(out, ref, atol=2e-2, rtol=2e-2), "mismatch vs reference"

    print("KERNEL_OK")
</pallas_src>

<mosaic_0001>
module attributes {stable_mosaic.version = 11 : i64} {
  func.func @block_kernel(%arg0: i32, %arg1: memref<2x64x128xf32, #tpu.memory_space<vmem>>, %arg2: memref<1x128xf32, #tpu.memory_space<vmem>>, %arg3: memref<1x128xf32, #tpu.memory_space<vmem>>, %arg4: memref<128x384xbf16, #tpu.memory_space<vmem>>, %arg5: memref<128x128xbf16, #tpu.memory_space<vmem>>, %arg6: memref<1x128xf32, #tpu.memory_space<vmem>>, %arg7: memref<1x128xf32, #tpu.memory_space<vmem>>, %arg8: memref<1x128xf32, #tpu.memory_space<vmem>>, %arg9: memref<128x512xbf16, #tpu.memory_space<vmem>>, %arg10: memref<1x512xf32, #tpu.memory_space<vmem>>, %arg11: memref<512x128xbf16, #tpu.memory_space<vmem>>, %arg12: memref<1x128xf32, #tpu.memory_space<vmem>>, %arg13: memref<2x64x128xf32, #tpu.memory_space<vmem>>, %arg14: memref<128x128xf32, #tpu.memory_space<vmem>>) attributes {dimension_semantics = [#tpu.dimension_semantics<parallel>], iteration_bounds = array<i64: 2>, scalar_prefetch = 0 : i64, scratch_operands = 1 : i64, tpu.core_type = #tpu.core_type<tc>, window_params = [{transform_indices = @transform_0, window_bounds = array<i64: 2, 64, 128>}, {pipeline_mode = #tpu.pipeline_mode<synchronous>, transform_indices = @transform_1, window_bounds = array<i64: 1, 128>}, {pipeline_mode = #tpu.pipeline_mode<synchronous>, transform_indices = @transform_2, window_bounds = array<i64: 1, 128>}, {pipeline_mode = #tpu.pipeline_mode<synchronous>, transform_indices = @transform_3, window_bounds = array<i64: 128, 384>}, {pipeline_mode = #tpu.pipeline_mode<synchronous>, transform_indices = @transform_4, window_bounds = array<i64: 128, 128>}, {pipeline_mode = #tpu.pipeline_mode<synchronous>, transform_indices = @transform_5, window_bounds = array<i64: 1, 128>}, {pipeline_mode = #tpu.pipeline_mode<synchronous>, transform_indices = @transform_6, window_bounds = array<i64: 1, 128>}, {pipeline_mode = #tpu.pipeline_mode<synchronous>, transform_indices = @transform_7, window_bounds = array<i64: 1, 128>}, {pipeline_mode = #tpu.pipeline_mode<synchronous>, transform_indices = @transform_8, window_bounds = array<i64: 128, 512>}, {pipeline_mode = #tpu.pipeline_mode<synchronous>, transform_indices = @transform_9, window_bounds = array<i64: 1, 512>}, {pipeline_mode = #tpu.pipeline_mode<synchronous>, transform_indices = @transform_10, window_bounds = array<i64: 512, 128>}, {pipeline_mode = #tpu.pipeline_mode<synchronous>, transform_indices = @transform_11, window_bounds = array<i64: 1, 128>}, {transform_indices = @transform_12, window_bounds = array<i64: 2, 64, 128>}]} {
    %c0 = arith.constant 0 : index
    %c0_0 = arith.constant 0 : index
    %c0_1 = arith.constant 0 : index
    %0 = vector.load %arg1[%c0, %c0_0, %c0_1] : memref<2x64x128xf32, #tpu.memory_space<vmem>>, vector<2x64x128xf32>
    %1 = vector.shape_cast %0 : vector<2x64x128xf32> to vector<128x128xf32>
    %c0_2 = arith.constant 0 : index
    %c0_3 = arith.constant 0 : index
    %2 = vector.load %arg2[%c0_2, %c0_3] : memref<1x128xf32, #tpu.memory_space<vmem>>, vector<1x128xf32>
    %c0_4 = arith.constant 0 : index
    %c0_5 = arith.constant 0 : index
    %3 = vector.load %arg3[%c0_4, %c0_5] : memref<1x128xf32, #tpu.memory_space<vmem>>, vector<1x128xf32>
    %cst = arith.constant dense<0.000000e+00> : vector<128xf32>
    %4 = vector.multi_reduction <add>, %1, %cst [1] : vector<128x128xf32> to vector<128xf32>
    %5 = vector.shape_cast %4 : vector<128xf32> to vector<128x1xf32>
    %cst_6 = arith.constant 1.280000e+02 : f32
    %6 = vector.broadcast %cst_6 : f32 to vector<128x1xf32>
    %7 = arith.divf %5, %6 : vector<128x1xf32>
    %8 = vector.broadcast %7 : vector<128x1xf32> to vector<128x128xf32>
    %9 = arith.subf %1, %8 : vector<128x128xf32>
    %10 = arith.mulf %9, %9 : vector<128x128xf32>
    %cst_7 = arith.constant dense<0.000000e+00> : vector<128xf32>
    %11 = vector.multi_reduction <add>, %10, %cst_7 [1] : vector<128x128xf32> to vector<128xf32>
    %12 = vector.shape_cast %11 : vector<128xf32> to vector<128x1xf32>
    %cst_8 = arith.constant 1.280000e+02 : f32
    %13 = vector.broadcast %cst_8 : f32 to vector<128x1xf32>
    %14 = arith.divf %12, %13 : vector<128x1xf32>
    %15 = vector.broadcast %7 : vector<128x1xf32> to vector<128x128xf32>
    %16 = arith.subf %1, %15 : vector<128x128xf32>
    %cst_9 = arith.constant 9.99999974E-6 : f32
    %17 = vector.broadcast %cst_9 : f32 to vector<128x1xf32>
    %18 = arith.addf %14, %17 : vector<128x1xf32>
    %19 = math.rsqrt %18 : vector<128x1xf32>
    %20 = vector.broadcast %19 : vector<128x1xf32> to vector<128x128xf32>
    %21 = arith.mulf %16, %20 : vector<128x128xf32>
    %22 = vector.broadcast %2 : vector<1x128xf32> to vector<128x128xf32>
    %23 = arith.mulf %21, %22 : vector<128x128xf32>
    %24 = vector.broadcast %3 : vector<1x128xf32> to vector<128x128xf32>
    %25 = arith.addf %23, %24 : vector<128x128xf32>
    %26 = arith.truncf %25 : vector<128x128xf32> to vector<128x128xbf16>
    %c0_10 = arith.constant 0 : index
    %c0_11 = arith.constant 0 : index
    %27 = vector.load %arg4[%c0_10, %c0_11] : memref<128x384xbf16, #tpu.memory_space<vmem>>, vector<128x384xbf16>
    %cst_12 = arith.constant dense<0.000000e+00> : vector<128x384xf32>
    %28 = tpu.matmul %26, %27, %cst_12 {dimension_numbers = #tpu.dot_dimension_numbers<[1], [0], [0], [1], [0, 0, 1, 1], [], []>} : vector<128x128xbf16>, vector<128x384xbf16>, vector<128x384xf32> -> vector<128x384xf32>
    %29 = vector.extract_strided_slice %28 {offsets = [0, 0], sizes = [128, 128], strides = [1, 1]} : vector<128x384xf32> to vector<128x128xf32>
    %cst_13 = arith.constant 0.176776692 : f32
    %30 = vector.broadcast %cst_13 : f32 to vector<128x128xf32>
    %31 = arith.mulf %29, %30 : vector<128x128xf32>
    %32 = arith.truncf %31 : vector<128x128xf32> to vector<128x128xbf16>
    %33 = vector.extract_strided_slice %28 {offsets = [0, 128], sizes = [128, 128], strides = [1, 1]} : vector<128x384xf32> to vector<128x128xf32>
    %34 = arith.truncf %33 : vector<128x128xf32> to vector<128x128xbf16>
    %35 = vector.extract_strided_slice %28 {offsets = [0, 256], sizes = [128, 128], strides = [1, 1]} : vector<128x384xf32> to vector<128x128xf32>
    %36 = arith.truncf %35 : vector<128x128xf32> to vector<128x128xbf16>
    %37 = vector.extract_strided_slice %32 {offsets = [0, 0], sizes = [64, 128], strides = [1, 1]} : vector<128x128xbf16> to vector<64x128xbf16>
    %38 = vector.extract_strided_slice %34 {offsets = [0, 0], sizes = [64, 128], strides = [1, 1]} : vector<128x128xbf16> to vector<64x128xbf16>
    %39 = vector.extract_strided_slice %36 {offsets = [0, 0], sizes = [64, 128], strides = [1, 1]} : vector<128x128xbf16> to vector<64x128xbf16>
    %40 = vector.extract_strided_slice %37 {offsets = [0, 0], sizes = [64, 32], strides = [1, 1]} : vector<64x128xbf16> to vector<64x32xbf16>
    %41 = vector.extract_strided_slice %38 {offsets = [0, 0], sizes = [64, 32], strides = [1, 1]} : vector<64x128xbf16> to vector<64x32xbf16>
    %cst_14 = arith.constant dense<0.000000e+00> : vector<64x64xf32>
    %42 = tpu.matmul %40, %41, %cst_14 {dimension_numbers = #tpu.dot_dimension_numbers<[1], [1], [0], [0], [0, 0, 1, 0], [], []>} : vector<64x32xbf16>, vector<64x32xbf16>, vector<64x64xf32> -> vector<64x64xf32>
    %cst_15 = arith.constant dense<0xFF800000> : vector<64xf32>
    %43 = vector.multi_reduction <maximumf>, %42, %cst_15 [1] : vector<64x64xf32> to vector<64xf32>
    %44 = vector.shape_cast %43 : vector<64xf32> to vector<64x1xf32>
    %45 = vector.broadcast %44 : vector<64x1xf32> to vector<64x64xf32>
    %46 = arith.subf %42, %45 : vector<64x64xf32>
    %47 = math.exp %46 : vector<64x64xf32>
    %cst_16 = arith.constant dense<0.000000e+00> : vector<64xf32>
    %48 = vector.multi_reduction <add>, %47, %cst_16 [1] : vector<64x64xf32> to vector<64xf32>
    %49 = vector.shape_cast %48 : vector<64xf32> to vector<64x1xf32>
    %50 = tpu.reciprocal %49 {approx = true} : vector<64x1xf32> -> vector<64x1xf32>
    %51 = vector.broadcast %50 : vector<64x1xf32> to vector<64x64xf32>
    %52 = arith.mulf %47, %51 : vector<64x64xf32>
    %53 = arith.truncf %52 : vector<64x64xf32> to vector<64x64xbf16>
    %54 = vector.extract_strided_slice %39 {offsets = [0, 0], sizes = [64, 32], strides = [1, 1]} : vector<64x128xbf16> to vector<64x32xbf16>
    %cst_17 = arith.constant dense<0.000000e+00> : vector<64x32xf32>
    %55 = tpu.matmul %53, %54, %cst_17 {dimension_numbers = #tpu.dot_dimension_numbers<[1], [0], [0], [1], [0, 0, 1, 1], [], []>} : vector<64x64xbf16>, vector<64x32xbf16>, vector<64x32xf32> -> vector<64x32xf32>
    %c0_18 = arith.constant 0 : index
    %c0_19 = arith.constant 0 : index
    %56 = vector.load %arg14[%c0_18, %c0_19] : memref<128x128xf32, #tpu.memory_space<vmem>>, vector<64x32xf32>
    tpu.vector_store %arg14[%c0_18, %c0_19], %55 {strides = array<i32>} : memref<128x128xf32, #tpu.memory_space<vmem>>, vector<64x32xf32>,
    %57 = vector.extract_strided_slice %37 {offsets = [0, 32], sizes = [64, 32], strides = [1, 1]} : vector<64x128xbf16> to vector<64x32xbf16>
    %58 = vector.extract_strided_slice %38 {offsets = [0, 32], sizes = [64, 32], strides = [1, 1]} : vector<64x128xbf16> to vector<64x32xbf16>
    %cst_20 = arith.constant dense<0.000000e+00> : vector<64x64xf32>
    %59 = tpu.matmul %57, %58, %cst_20 {dimension_numbers = #tpu.dot_dimension_numbers<[1], [1], [0], [0], [0, 0, 1, 0], [], []>} : vector<64x32xbf16>, vector<64x32xbf16>, vector<64x64xf32> -> vector<64x64xf32>
    %cst_21 = arith.constant dense<0xFF800000> : vector<64xf32>
    %60 = vector.multi_reduction <maximumf>, %59, %cst_21 [1] : vector<64x64xf32> to vector<64xf32>
    %61 = vector.shape_cast %60 : vector<64xf32> to vector<64x1xf32>
    %62 = vector.broadcast %61 : vector<64x1xf32> to vector<64x64xf32>
    %63 = arith.subf %59, %62 : vector<64x64xf32>
    %64 = math.exp %63 : vector<64x64xf32>
    %cst_22 = arith.constant dense<0.000000e+00> : vector<64xf32>
    %65 = vector.multi_reduction <add>, %64, %cst_22 [1] : vector<64x64xf32> to vector<64xf32>
    %66 = vector.shape_cast %65 : vector<64xf32> to vector<64x1xf32>
    %67 = tpu.reciprocal %66 {approx = true} : vector<64x1xf32> -> vector<64x1xf32>
    %68 = vector.broadcast %67 : vector<64x1xf32> to vector<64x64xf32>
    %69 = arith.mulf %64, %68 : vector<64x64xf32>
    %70 = arith.truncf %69 : vector<64x64xf32> to vector<64x64xbf16>
    %71 = vector.extract_strided_slice %39 {offsets = [0, 32], sizes = [64, 32], strides = [1, 1]} : vector<64x128xbf16> to vector<64x32xbf16>
    %cst_23 = arith.constant dense<0.000000e+00> : vector<64x32xf32>
    %72 = tpu.matmul %70, %71, %cst_23 {dimension_numbers = #tpu.dot_dimension_numbers<[1], [0], [0], [1], [0, 0, 1, 1], [], []>} : vector<64x64xbf16>, vector<64x32xbf16>, vector<64x32xf32> -> vector<64x32xf32>
    %c0_24 = arith.constant 0 : index
    %c32 = arith.constant 32 : index
    %73 = vector.load %arg14[%c0_24, %c32] : memref<128x128xf32, #tpu.memory_space<vmem>>, vector<64x32xf32>
    tpu.vector_store %arg14[%c0_24, %c32], %72 {strides = array<i32>} : memref<128x128xf32, #tpu.memory_space<vmem>>, vector<64x32xf32>,
    %74 = vector.extract_strided_slice %37 {offsets = [0, 64], sizes = [64, 32], strides = [1, 1]} : vector<64x128xbf16> to vector<64x32xbf16>
    %75 = vector.extract_strided_slice %38 {offsets = [0, 64], sizes = [64, 32], strides = [1, 1]} : vector<64x128xbf16> to vector<64x32xbf16>
    %cst_25 = arith.constant dense<0.000000e+00> : vector<64x64xf32>
    %76 = tpu.matmul %74, %75, %cst_25 {dimension_numbers = #tpu.dot_dimension_numbers<[1], [1], [0], [0], [0, 0, 1, 0], [], []>} : vector<64x32xbf16>, vector<64x32xbf16>, vector<64x64xf32> -> vector<64x64xf32>
    %cst_26 = arith.constant dense<0xFF800000> : vector<64xf32>
    %77 = vector.multi_reduction <maximumf>, %76, %cst_26 [1] : vector<64x64xf32> to vector<64xf32>
    %78 = vector.shape_cast %77 : vector<64xf32> to vector<64x1xf32>
    %79 = vector.broadcast %78 : vector<64x1xf32> to vector<64x64xf32>
    %80 = arith.subf %76, %79 : vector<64x64xf32>
    %81 = math.exp %80 : vector<64x64xf32>
    %cst_27 = arith.constant dense<0.000000e+00> : vector<64xf32>
    %82 = vector.multi_reduction <add>, %81, %cst_27 [1] : vector<64x64xf32> to vector<64xf32>
    %83 = vector.shape_cast %82 : vector<64xf32> to vector<64x1xf32>
    %84 = tpu.reciprocal %83 {approx = true} : vector<64x1xf32> -> vector<64x1xf32>
    %85 = vector.broadcast %84 : vector<64x1xf32> to vector<64x64xf32>
    %86 = arith.mulf %81, %85 : vector<64x64xf32>
    %87 = arith.truncf %86 : vector<64x64xf32> to vector<64x64xbf16>
    %88 = vector.extract_strided_slice %39 {offsets = [0, 64], sizes = [64, 32], strides = [1, 1]} : vector<64x128xbf16> to vector<64x32xbf16>
    %cst_28 = arith.constant dense<0.000000e+00> : vector<64x32xf32>
    %89 = tpu.matmul %87, %88, %cst_28 {dimension_numbers = #tpu.dot_dimension_numbers<[1], [0], [0], [1], [0, 0, 1, 1], [], []>} : vector<64x64xbf16>, vector<64x32xbf16>, vector<64x32xf32> -> vector<64x32xf32>
    %c0_29 = arith.constant 0 : index
    %c64 = arith.constant 64 : index
    %90 = vector.load %arg14[%c0_29, %c64] : memref<128x128xf32, #tpu.memory_space<vmem>>, vector<64x32xf32>
    tpu.vector_store %arg14[%c0_29, %c64], %89 {strides = array<i32>} : memref<128x128xf32, #tpu.memory_space<vmem>>, vector<64x32xf32>,
    %91 = vector.extract_strided_slice %37 {offsets = [0, 96], sizes = [64, 32], strides = [1, 1]} : vector<64x128xbf16> to vector<64x32xbf16>
    %92 = vector.extract_strided_slice %38 {offsets = [0, 96], sizes = [64, 32], strides = [1, 1]} : vector<64x128xbf16> to vector<64x32xbf16>
    %cst_30 = arith.constant dense<0.000000e+00> : vector<64x64xf32>
    %93 = tpu.matmul %91, %92, %cst_30 {dimension_numbers = #tpu.dot_dimension_numbers<[1], [1], [0], [0], [0, 0, 1, 0], [], []>} : vector<64x32xbf16>, vector<64x32xbf16>, vector<64x64xf32> -> vector<64x64xf32>
    %cst_31 = arith.constant dense<0xFF800000> : vector<64xf32>
    %94 = vector.multi_reduction <maximumf>, %93, %cst_31 [1] : vector<64x64xf32> to vector<64xf32>
    %95 = vector.shape_cast %94 : vector<64xf32> to vector<64x1xf32>
    %96 = vector.broadcast %95 : vector<64x1xf32> to vector<64x64xf32>
    %97 = arith.subf %93, %96 : vector<64x64xf32>
    %98 = math.exp %97 : vector<64x64xf32>
    %cst_32 = arith.constant dense<0.000000e+00> : vector<64xf32>
    %99 = vector.multi_reduction <add>, %98, %cst_32 [1] : vector<64x64xf32> to vector<64xf32>
    %100 = vector.shape_cast %99 : vector<64xf32> to vector<64x1xf32>
    %101 = tpu.reciprocal %100 {approx = true} : vector<64x1xf32> -> vector<64x1xf32>
    %102 = vector.broadcast %101 : vector<64x1xf32> to vector<64x64xf32>
    %103 = arith.mulf %98, %102 : vector<64x64xf32>
    %104 = arith.truncf %103 : vector<64x64xf32> to vector<64x64xbf16>
    %105 = vector.extract_strided_slice %39 {offsets = [0, 96], sizes = [64, 32], strides = [1, 1]} : vector<64x128xbf16> to vector<64x32xbf16>
    %cst_33 = arith.constant dense<0.000000e+00> : vector<64x32xf32>
    %106 = tpu.matmul %104, %105, %cst_33 {dimension_numbers = #tpu.dot_dimension_numbers<[1], [0], [0], [1], [0, 0, 1, 1], [], []>} : vector<64x64xbf16>, vector<64x32xbf16>, vector<64x32xf32> -> vector<64x32xf32>
    %c0_34 = arith.constant 0 : index
    %c96 = arith.constant 96 : index
    %107 = vector.load %arg14[%c0_34, %c96] : memref<128x128xf32, #tpu.memory_space<vmem>>, vector<64x32xf32>
    tpu.vector_store %arg14[%c0_34, %c96], %106 {strides = array<i32>} : memref<128x128xf32, #tpu.memory_space<vmem>>, vector<64x32xf32>,
    %108 = vector.extract_strided_slice %32 {offsets = [64, 0], sizes = [64, 128], strides = [1, 1]} : vector<128x128xbf16> to vector<64x128xbf16>
    %109 = vector.extract_strided_slice %34 {offsets = [64, 0], sizes = [64, 128], strides = [1, 1]} : vector<128x128xbf16> to vector<64x128xbf16>
    %110 = vector.extract_strided_slice %36 {offsets = [64, 0], sizes = [64, 128], strides = [1, 1]} : vector<128x128xbf16> to vector<64x128xbf16>
    %111 = vector.extract_strided_slice %108 {offsets = [0, 0], sizes = [64, 32], strides = [1, 1]} : vector<64x128xbf16> to vector<64x32xbf16>
    %112 = vector.extract_strided_slice %109 {offsets = [0, 0], sizes = [64, 32], strides = [1, 1]} : vector<64x128xbf16> to vector<64x32xbf16>
    %cst_35 = arith.constant dense<0.000000e+00> : vector<64x64xf32>
    %113 = tpu.matmul %111, %112, %cst_35 {dimension_numbers = #tpu.dot_dimension_numbers<[1], [1], [0], [0], [0, 0, 1, 0], [], []>} : vector<64x32xbf16>, vector<64x32xbf16>, vector<64x64xf32> -> vector<64x64xf32>
    %cst_36 = arith.constant dense<0xFF800000> : vector<64xf32>
    %114 = vector.multi_reduction <maximumf>, %113, %cst_36 [1] : vector<64x64xf32> to vector<64xf32>
    %115 = vector.shape_cast %114 : vector<64xf32> to vector<64x1xf32>
    %116 = vector.broadcast %115 : vector<64x1xf32> to vector<64x64xf32>
    %117 = arith.subf %113, %116 : vector<64x64xf32>
    %118 = math.exp %117 : vector<64x64xf32>
    %cst_37 = arith.constant dense<0.000000e+00> : vector<64xf32>
    %119 = vector.multi_reduction <add>, %118, %cst_37 [1] : vector<64x64xf32> to vector<64xf32>
    %120 = vector.shape_cast %119 : vector<64xf32> to vector<64x1xf32>
    %121 = tpu.reciprocal %120 {approx = true} : vector<64x1xf32> -> vector<64x1xf32>
    %122 = vector.broadcast %121 : vector<64x1xf32> to vector<64x64xf32>
    %123 = arith.mulf %118, %122 : vector<64x64xf32>
    %124 = arith.truncf %123 : vector<64x64xf32> to vector<64x64xbf16>
    %125 = vector.extract_strided_slice %110 {offsets = [0, 0], sizes = [64, 32], strides = [1, 1]} : vector<64x128xbf16> to vector<64x32xbf16>
    %cst_38 = arith.constant dense<0.000000e+00> : vector<64x32xf32>
    %126 = tpu.matmul %124, %125, %cst_38 {dimension_numbers = #tpu.dot_dimension_numbers<[1], [0], [0], [1], [0, 0, 1, 1], [], []>} : vector<64x64xbf16>, vector<64x32xbf16>, vector<64x32xf32> -> vector<64x32xf32>
    %c64_39 = arith.constant 64 : index
    %c0_40 = arith.constant 0 : index
    %127 = vector.load %arg14[%c64_39, %c0_40] : memref<128x128xf32, #tpu.memory_space<vmem>>, vector<64x32xf32>
    tpu.vector_store %arg14[%c64_39, %c0_40], %126 {strides = array<i32>} : memref<128x128xf32, #tpu.memory_space<vmem>>, vector<64x32xf32>,
    %128 = vector.extract_strided_slice %108 {offsets = [0, 32], sizes = [64, 32], strides = [1, 1]} : vector<64x128xbf16> to vector<64x32xbf16>
    %129 = vector.extract_strided_slice %109 {offsets = [0, 32], sizes = [64, 32], strides = [1, 1]} : vector<64x128xbf16> to vector<64x32xbf16>
    %cst_41 = arith.constant dense<0.000000e+00> : vector<64x64xf32>
    %130 = tpu.matmul %128, %129, %cst_41 {dimension_numbers = #tpu.dot_dimension_numbers<[1], [1], [0], [0], [0, 0, 1, 0], [], []>} : vector<64x32xbf16>, vector<64x32xbf16>, vector<64x64xf32> -> vector<64x64xf32>
    %cst_42 = arith.constant dense<0xFF800000> : vector<64xf32>
    %131 = vector.multi_reduction <maximumf>, %130, %cst_42 [1] : vector<64x64xf32> to vector<64xf32>
    %132 = vector.shape_cast %131 : vector<64xf32> to vector<64x1xf32>
    %133 = vector.broadcast %132 : vector<64x1xf32> to vector<64x64xf32>
    %134 = arith.subf %130, %133 : vector<64x64xf32>
    %135 = math.exp %134 : vector<64x64xf32>
    %cst_43 = arith.constant dense<0.000000e+00> : vector<64xf32>
    %136 = vector.multi_reduction <add>, %135, %cst_43 [1] : vector<64x64xf32> to vector<64xf32>
    %137 = vector.shape_cast %136 : vector<64xf32> to vector<64x1xf32>
    %138 = tpu.reciprocal %137 {approx = true} : vector<64x1xf32> -> vector<64x1xf32>
    %139 = vector.broadcast %138 : vector<64x1xf32> to vector<64x64xf32>
    %140 = arith.mulf %135, %139 : vector<64x64xf32>
    %141 = arith.truncf %140 : vector<64x64xf32> to vector<64x64xbf16>
    %142 = vector.extract_strided_slice %110 {offsets = [0, 32], sizes = [64, 32], strides = [1, 1]} : vector<64x128xbf16> to vector<64x32xbf16>
    %cst_44 = arith.constant dense<0.000000e+00> : vector<64x32xf32>
    %143 = tpu.matmul %141, %142, %cst_44 {dimension_numbers = #tpu.dot_dimension_numbers<[1], [0], [0], [1], [0, 0, 1, 1], [], []>} : vector<64x64xbf16>, vector<64x32xbf16>, vector<64x32xf32> -> vector<64x32xf32>
    %c64_45 = arith.constant 64 : index
    %c32_46 = arith.constant 32 : index
    %144 = vector.load %arg14[%c64_45, %c32_46] : memref<128x128xf32, #tpu.memory_space<vmem>>, vector<64x32xf32>
    tpu.vector_store %arg14[%c64_45, %c32_46], %143 {strides = array<i32>} : memref<128x128xf32, #tpu.memory_space<vmem>>, vector<64x32xf32>,
    %145 = vector.extract_strided_slice %108 {offsets = [0, 64], sizes = [64, 32], strides = [1, 1]} : vector<64x128xbf16> to vector<64x32xbf16>
    %146 = vector.extract_strided_slice %109 {offsets = [0, 64], sizes = [64, 32], strides = [1, 1]} : vector<64x128xbf16> to vector<64x32xbf16>
    %cst_47 = arith.constant dense<0.000000e+00> : vector<64x64xf32>
    %147 = tpu.matmul %145, %146, %cst_47 {dimension_numbers = #tpu.dot_dimension_numbers<[1], [1], [0], [0], [0, 0, 1, 0], [], []>} : vector<64x32xbf16>, vector<64x32xbf16>, vector<64x64xf32> -> vector<64x64xf32>
    %cst_48 = arith.constant dense<0xFF800000> : vector<64xf32>
    %148 = vector.multi_reduction <maximumf>, %147, %cst_48 [1] : vector<64x64xf32> to vector<64xf32>
    %149 = vector.shape_cast %148 : vector<64xf32> to vector<64x1xf32>
    %150 = vector.broadcast %149 : vector<64x1xf32> to vector<64x64xf32>
    %151 = arith.subf %147, %150 : vector<64x64xf32>
    %152 = math.exp %151 : vector<64x64xf32>
    %cst_49 = arith.constant dense<0.000000e+00> : vector<64xf32>
    %153 = vector.multi_reduction <add>, %152, %cst_49 [1] : vector<64x64xf32> to vector<64xf32>
    %154 = vector.shape_cast %153 : vector<64xf32> to vector<64x1xf32>
    %155 = tpu.reciprocal %154 {approx = true} : vector<64x1xf32> -> vector<64x1xf32>
    %156 = vector.broadcast %155 : vector<64x1xf32> to vector<64x64xf32>
    %157 = arith.mulf %152, %156 : vector<64x64xf32>
    %158 = arith.truncf %157 : vector<64x64xf32> to vector<64x64xbf16>
    %159 = vector.extract_strided_slice %110 {offsets = [0, 64], sizes = [64, 32], strides = [1, 1]} : vector<64x128xbf16> to vector<64x32xbf16>
    %cst_50 = arith.constant dense<0.000000e+00> : vector<64x32xf32>
    %160 = tpu.matmul %158, %159, %cst_50 {dimension_numbers = #tpu.dot_dimension_numbers<[1], [0], [0], [1], [0, 0, 1, 1], [], []>} : vector<64x64xbf16>, vector<64x32xbf16>, vector<64x32xf32> -> vector<64x32xf32>
    %c64_51 = arith.constant 64 : index
    %c64_52 = arith.constant 64 : index
    %161 = vector.load %arg14[%c64_51, %c64_52] : memref<128x128xf32, #tpu.memory_space<vmem>>, vector<64x32xf32>
    tpu.vector_store %arg14[%c64_51, %c64_52], %160 {strides = array<i32>} : memref<128x128xf32, #tpu.memory_space<vmem>>, vector<64x32xf32>,
    %162 = vector.extract_strided_slice %108 {offsets = [0, 96], sizes = [64, 32], strides = [1, 1]} : vector<64x128xbf16> to vector<64x32xbf16>
    %163 = vector.extract_strided_slice %109 {offsets = [0, 96], sizes = [64, 32], strides = [1, 1]} : vector<64x128xbf16> to vector<64x32xbf16>
    %cst_53 = arith.constant dense<0.000000e+00> : vector<64x64xf32>
    %164 = tpu.matmul %162, %163, %cst_53 {dimension_numbers = #tpu.dot_dimension_numbers<[1], [1], [0], [0], [0, 0, 1, 0], [], []>} : vector<64x32xbf16>, vector<64x32xbf16>, vector<64x64xf32> -> vector<64x64xf32>
    %cst_54 = arith.constant dense<0xFF800000> : vector<64xf32>
    %165 = vector.multi_reduction <maximumf>, %164, %cst_54 [1] : vector<64x64xf32> to vector<64xf32>
    %166 = vector.shape_cast %165 : vector<64xf32> to vector<64x1xf32>
    %167 = vector.broadcast %166 : vector<64x1xf32> to vector<64x64xf32>
    %168 = arith.subf %164, %167 : vector<64x64xf32>
    %169 = math.exp %168 : vector<64x64xf32>
    %cst_55 = arith.constant dense<0.000000e+00> : vector<64xf32>
    %170 = vector.multi_reduction <add>, %169, %cst_55 [1] : vector<64x64xf32> to vector<64xf32>
    %171 = vector.shape_cast %170 : vector<64xf32> to vector<64x1xf32>
    %172 = tpu.reciprocal %171 {approx = true} : vector<64x1xf32> -> vector<64x1xf32>
    %173 = vector.broadcast %172 : vector<64x1xf32> to vector<64x64xf32>
    %174 = arith.mulf %169, %173 : vector<64x64xf32>
    %175 = arith.truncf %174 : vector<64x64xf32> to vector<64x64xbf16>
    %176 = vector.extract_strided_slice %110 {offsets = [0, 96], sizes = [64, 32], strides = [1, 1]} : vector<64x128xbf16> to vector<64x32xbf16>
    %cst_56 = arith.constant dense<0.000000e+00> : vector<64x32xf32>
    %177 = tpu.matmul %175, %176, %cst_56 {dimension_numbers = #tpu.dot_dimension_numbers<[1], [0], [0], [1], [0, 0, 1, 1], [], []>} : vector<64x64xbf16>, vector<64x32xbf16>, vector<64x32xf32> -> vector<64x32xf32>
    %c64_57 = arith.constant 64 : index
    %c96_58 = arith.constant 96 : index
    %178 = vector.load %arg14[%c64_57, %c96_58] : memref<128x128xf32, #tpu.memory_space<vmem>>, vector<64x32xf32>
    tpu.vector_store %arg14[%c64_57, %c96_58], %177 {strides = array<i32>} : memref<128x128xf32, #tpu.memory_space<vmem>>, vector<64x32xf32>,
    %c0_59 = arith.constant 0 : index
    %c0_60 = arith.constant 0 : index
    %179 = vector.load %arg14[%c0_59, %c0_60] : memref<128x128xf32, #tpu.memory_space<vmem>>, vector<128x128xf32>
    %180 = arith.truncf %179 : vector<128x128xf32> to vector<128x128xbf16>
    %c0_61 = arith.constant 0 : index
    %c0_62 = arith.constant 0 : index
    %181 = vector.load %arg5[%c0_61, %c0_62] : memref<128x128xbf16, #tpu.memory_space<vmem>>, vector<128x128xbf16>
    %cst_63 = arith.constant dense<0.000000e+00> : vector<128x128xf32>
    %182 = tpu.matmul %180, %181, %cst_63 {dimension_numbers = #tpu.dot_dimension_numbers<[1], [0], [0], [1], [0, 0, 1, 1], [], []>} : vector<128x128xbf16>, vector<128x128xbf16>, vector<128x128xf32> -> vector<128x128xf32>
    %c0_64 = arith.constant 0 : index
    %c0_65 = arith.constant 0 : index
    %183 = vector.load %arg6[%c0_64, %c0_65] : memref<1x128xf32, #tpu.memory_space<vmem>>, vector<1x128xf32>
    %184 = vector.broadcast %183 : vector<1x128xf32> to vector<128x128xf32>
    %185 = arith.addf %182, %184 : vector<128x128xf32>
    %186 = arith.addf %1, %185 : vector<128x128xf32>
    %c0_66 = arith.constant 0 : index
    %c0_67 = arith.constant 0 : index
    %187 = vector.load %arg7[%c0_66, %c0_67] : memref<1x128xf32, #tpu.memory_space<vmem>>, vector<1x128xf32>
    %c0_68 = arith.constant 0 : index
    %c0_69 = arith.constant 0 : index
    %188 = vector.load %arg8[%c0_68, %c0_69] : memref<1x128xf32, #tpu.memory_space<vmem>>, vector<1x128xf32>
    %cst_70 = arith.constant dense<0.000000e+00> : vector<128xf32>
    %189 = vector.multi_reduction <add>, %186, %cst_70 [1] : vector<128x128xf32> to vector<128xf32>
    %190 = vector.shape_cast %189 : vector<128xf32> to vector<128x1xf32>
    %cst_71 = arith.constant 1.280000e+02 : f32
    %191 = vector.broadcast %cst_71 : f32 to vector<128x1xf32>
    %192 = arith.divf %190, %191 : vector<128x1xf32>
    %193 = vector.broadcast %192 : vector<128x1xf32> to vector<128x128xf32>
    %194 = arith.subf %186, %193 : vector<128x128xf32>
    %195 = arith.mulf %194, %194 : vector<128x128xf32>
    %cst_72 = arith.constant dense<0.000000e+00> : vector<128xf32>
    %196 = vector.multi_reduction <add>, %195, %cst_72 [1] : vector<128x128xf32> to vector<128xf32>
    %197 = vector.shape_cast %196 : vector<128xf32> to vector<128x1xf32>
    %cst_73 = arith.constant 1.280000e+02 : f32
    %198 = vector.broadcast %cst_73 : f32 to vector<128x1xf32>
    %199 = arith.divf %197, %198 : vector<128x1xf32>
    %200 = vector.broadcast %192 : vector<128x1xf32> to vector<128x128xf32>
    %201 = arith.subf %186, %200 : vector<128x128xf32>
    %cst_74 = arith.constant 9.99999974E-6 : f32
    %202 = vector.broadcast %cst_74 : f32 to vector<128x1xf32>
    %203 = arith.addf %199, %202 : vector<128x1xf32>
    %204 = math.rsqrt %203 : vector<128x1xf32>
    %205 = vector.broadcast %204 : vector<128x1xf32> to vector<128x128xf32>
    %206 = arith.mulf %201, %205 : vector<128x128xf32>
    %207 = vector.broadcast %187 : vector<1x128xf32> to vector<128x128xf32>
    %208 = arith.mulf %206, %207 : vector<128x128xf32>
    %209 = vector.broadcast %188 : vector<1x128xf32> to vector<128x128xf32>
    %210 = arith.addf %208, %209 : vector<128x128xf32>
    %211 = arith.truncf %210 : vector<128x128xf32> to vector<128x128xbf16>
    %c0_75 = arith.constant 0 : index
    %c0_76 = arith.constant 0 : index
    %212 = vector.load %arg9[%c0_75, %c0_76] : memref<128x512xbf16, #tpu.memory_space<vmem>>, vector<128x512xbf16>
    %cst_77 = arith.constant dense<0.000000e+00> : vector<128x512xf32>
    %213 = tpu.matmul %211, %212, %cst_77 {dimension_numbers = #tpu.dot_dimension_numbers<[1], [0], [0], [1], [0, 0, 1, 1], [], []>} : vector<128x128xbf16>, vector<128x512xbf16>, vector<128x512xf32> -> vector<128x512xf32>
    %c0_78 = arith.constant 0 : index
    %c0_79 = arith.constant 0 : index
    %214 = vector.load %arg10[%c0_78, %c0_79] : memref<1x512xf32, #tpu.memory_space<vmem>>, vector<1x512xf32>
    %215 = vector.broadcast %214 : vector<1x512xf32> to vector<128x512xf32>
    %216 = arith.addf %213, %215 : vector<128x512xf32>
    %217 = arith.mulf %216, %216 : vector<128x512xf32>
    %218 = arith.mulf %216, %217 : vector<128x512xf32>
    %cst_80 = arith.constant 4.471500e-02 : f32
    %219 = vector.broadcast %cst_80 : f32 to vector<128x512xf32>
    %220 = arith.mulf %219, %218 : vector<128x512xf32>
    %221 = arith.addf %216, %220 : vector<128x512xf32>
    %cst_81 = arith.constant 0.797884583 : f32
    %222 = vector.broadcast %cst_81 : f32 to vector<128x512xf32>
    %223 = arith.mulf %222, %221 : vector<128x512xf32>
    %224 = math.tanh %223 : vector<128x512xf32>
    %cst_82 = arith.constant 1.000000e+00 : f32
    %225 = vector.broadcast %cst_82 : f32 to vector<128x512xf32>
    %226 = arith.addf %225, %224 : vector<128x512xf32>
    %cst_83 = arith.constant 5.000000e-01 : f32
    %227 = vector.broadcast %cst_83 : f32 to vector<128x512xf32>
    %228 = arith.mulf %227, %226 : vector<128x512xf32>
    %229 = arith.mulf %216, %228 : vector<128x512xf32>
    %230 = arith.truncf %229 : vector<128x512xf32> to vector<128x512xbf16>
    %c0_84 = arith.constant 0 : index
    %c0_85 = arith.constant 0 : index
    %231 = vector.load %arg11[%c0_84, %c0_85] : memref<512x128xbf16, #tpu.memory_space<vmem>>, vector<512x128xbf16>
    %cst_86 = arith.constant dense<0.000000e+00> : vector<128x128xf32>
    %232 = tpu.matmul %230, %231, %cst_86 {dimension_numbers = #tpu.dot_dimension_numbers<[1], [0], [0], [1], [0, 0, 1, 1], [], []>} : vector<128x512xbf16>, vector<512x128xbf16>, vector<128x128xf32> -> vector<128x128xf32>
    %c0_87 = arith.constant 0 : index
    %c0_88 = arith.constant 0 : index
    %233 = vector.load %arg12[%c0_87, %c0_88] : memref<1x128xf32, #tpu.memory_space<vmem>>, vector<1x128xf32>
    %234 = vector.broadcast %233 : vector<1x128xf32> to vector<128x128xf32>
    %235 = arith.addf %232, %234 : vector<128x128xf32>
    %236 = arith.addf %186, %235 : vector<128x128xf32>
    %237 = vector.shape_cast %236 : vector<128x128xf32> to vector<2x64x128xf32>
    %c0_89 = arith.constant 0 : index
    %c0_90 = arith.constant 0 : index
    %c0_91 = arith.constant 0 : index
    %238 = vector.load %arg13[%c0_89, %c0_90, %c0_91] : memref<2x64x128xf32, #tpu.memory_space<vmem>>, vector<2x64x128xf32>
    tpu.vector_store %arg13[%c0_89, %c0_90, %c0_91], %237 {strides = array<i32>} : memref<2x64x128xf32, #tpu.memory_space<vmem>>, vector<2x64x128xf32>,
    return
  }
  func.func @transform_0(%arg0: i32) -> (i32, i32, i32) {
    %c0_i32 = arith.constant 0 : i32
    %c0_i32_0 = arith.constant 0 : i32
    %c0_i32_1 = arith.constant 0 : i32
    return %arg0, %c0_i32, %c0_i32_0 : i32, i32, i32
  }
  func.func @transform_1(%arg0: i32) -> (i32, i32) {
    %c0_i32 = arith.constant 0 : i32
    %c0_i32_0 = arith.constant 0 : i32
    %c0_i32_1 = arith.constant 0 : i32
    return %c0_i32, %c0_i32_0 : i32, i32
  }
  func.func @transform_2(%arg0: i32) -> (i32, i32) {
    %c0_i32 = arith.constant 0 : i32
    %c0_i32_0 = arith.constant 0 : i32
    %c0_i32_1 = arith.constant 0 : i32
    return %c0_i32, %c0_i32_0 : i32, i32
  }
  func.func @transform_3(%arg0: i32) -> (i32, i32) {
    %c0_i32 = arith.constant 0 : i32
    %c0_i32_0 = arith.constant 0 : i32
    %c0_i32_1 = arith.constant 0 : i32
    return %c0_i32, %c0_i32_0 : i32, i32
  }
  func.func @transform_4(%arg0: i32) -> (i32, i32) {
    %c0_i32 = arith.constant 0 : i32
    %c0_i32_0 = arith.constant 0 : i32
    %c0_i32_1 = arith.constant 0 : i32
    return %c0_i32, %c0_i32_0 : i32, i32
  }
  func.func @transform_5(%arg0: i32) -> (i32, i32) {
    %c0_i32 = arith.constant 0 : i32
    %c0_i32_0 = arith.constant 0 : i32
    %c0_i32_1 = arith.constant 0 : i32
    return %c0_i32, %c0_i32_0 : i32, i32
  }
  func.func @transform_6(%arg0: i32) -> (i32, i32) {
    %c0_i32 = arith.constant 0 : i32
    %c0_i32_0 = arith.constant 0 : i32
    %c0_i32_1 = arith.constant 0 : i32
    return %c0_i32, %c0_i32_0 : i32, i32
  }
  func.func @transform_7(%arg0: i32) -> (i32, i32) {
    %c0_i32 = arith.constant 0 : i32
    %c0_i32_0 = arith.constant 0 : i32
    %c0_i32_1 = arith.constant 0 : i32
    return %c0_i32, %c0_i32_0 : i32, i32
  }
  func.func @transform_8(%arg0: i32) -> (i32, i32) {
    %c0_i32 = arith.constant 0 : i32
    %c0_i32_0 = arith.constant 0 : i32
    %c0_i32_1 = arith.constant 0 : i32
    return %c0_i32, %c0_i32_0 : i32, i32
  }
  func.func @transform_9(%arg0: i32) -> (i32, i32) {
    %c0_i32 = arith.constant 0 : i32
    %c0_i32_0 = arith.constant 0 : i32
    %c0_i32_1 = arith.constant 0 : i32
    return %c0_i32, %c0_i32_0 : i32, i32
  }
  func.func @transform_10(%arg0: i32) -> (i32, i32) {
    %c0_i32 = arith.constant 0 : i32
    %c0_i32_0 = arith.constant 0 : i32
    %c0_i32_1 = arith.constant 0 : i32
    return %c0_i32, %c0_i32_0 : i32, i32
  }
  func.func @transform_11(%arg0: i32) -> (i32, i32) {
    %c0_i32 = arith.constant 0 : i32
    %c0_i32_0 = arith.constant 0 : i32
    %c0_i32_1 = arith.constant 0 : i32
    return %c0_i32, %c0_i32_0 : i32, i32
  }
  func.func @transform_12(%arg0: i32) -> (i32, i32, i32) {
    %c0_i32 = arith.constant 0 : i32
    %c0_i32_0 = arith.constant 0 : i32
    %c0_i32_1 = arith.constant 0 : i32
    return %arg0, %c0_i32, %c0_i32_0 : i32, i32, i32
  }
}

</mosaic_0001>

<llo_original>
// kernel: tpu_custom_call.1
$region0: #{tpu_custom_call.1}
  #allocation0 [shape = 'u32[]', space=smem, size = 0x4, offset = 0x4, fixed_abs, tag = 'smem constant byte address 0x4 - core index']
  #allocation1 [shape = 'u32[72,128]{1,0:T(1,128)}', space=vmem, size = 0x9000, scoped, tag = 'internal scratch']
  #allocation2 [shape = 'f32[128,128]{1,0:T(8,128)}', space=vmem, size = 0x10000, scoped, tag = 'scratch operand']
  %s0 = inlined_call_operand.hbm [shape: f32[4,64,128], index: 0, kind: input, shape index: {}]
  %s1 = inlined_call_operand.hbm [shape: f32[1,128], index: 1, kind: input, shape index: {}]
  %s2 = inlined_call_operand.vmem [shape: f32[1,128], index: 2, kind: input, shape index: {}]
  %s3 = inlined_call_operand.hbm [shape: bf16[128,384], index: 3, kind: input, shape index: {}]
  %s4 = inlined_call_operand.hbm [shape: bf16[128,128], index: 4, kind: input, shape index: {}]
  %s5 = inlined_call_operand.vmem [shape: f32[1,128], index: 5, kind: input, shape index: {}]
  %s6 = inlined_call_operand.vmem [shape: f32[1,128], index: 6, kind: input, shape index: {}]
  %s7 = inlined_call_operand.hbm [shape: f32[1,128], index: 7, kind: input, shape index: {}]
  %s8 = inlined_call_operand.hbm [shape: bf16[128,512], index: 8, kind: input, shape index: {}]
  %s9 = inlined_call_operand.vmem [shape: f32[1,512], index: 9, kind: input, shape index: {}]
  %s10 = inlined_call_operand.hbm [shape: bf16[512,128], index: 10, kind: input, shape index: {}]
  %s11 = inlined_call_operand.vmem [shape: f32[1,128], index: 11, kind: input, shape index: {}]
  %s12 = inlined_call_operand.hbm [shape: f32[4,64,128], index: 12, kind: output, shape index: {}]
  %s13 = sld [smem:[#allocation0]]
  $region109: #{tpu_custom_call.1} parent=0
    _
  %s15 = ssub.s32 1, %s13
  %s16 = scalar_select 0, %s15, %s13
  $region1: #{tpu_custom_call.1} parent=0
    #allocation3 [shape = 'u8[131072]{0}', space=vmem, size = 0x20000, scoped, tag = 'input window, operand 0']
    #allocation4 [shape = 's32[2]{0}', space=sflag, size = 0x8, scoped, tag = 'scoped memory for tpu_custom_call.1']
    #allocation5 [shape = 's32[2]{0}', space=sflag, size = 0x8, scoped, tag = 'scoped memory for tpu_custom_call.1']
    #allocation6 [shape = 'u8[512]{0}', space=vmem, size = 0x400, scoped, tag = 'input window, operand 1, single buffered']
    #allocation7 [shape = 's32[1]{0}', space=sflag, size = 0x4, scoped, tag = 'scoped memory for tpu_custom_call.1']
    #allocation8 [shape = 'u8[98304]{0}', space=vmem, size = 0x18000, scoped, tag = 'input window, operand 3, single buffered']
    #allocation9 [shape = 'u8[32768]{0}', space=vmem, size = 0x8000, scoped, tag = 'input window, operand 4, single buffered']
    #allocation10 [shape = 's32[1]{0}', space=sflag, size = 0x4, scoped, tag = 'scoped memory for tpu_custom_call.1']
    #allocation11 [shape = 'u8[512]{0}', space=vmem, size = 0x400, scoped, tag = 'input window, operand 7, single buffered']
    #allocation12 [shape = 'u8[131072]{0}', space=vmem, size = 0x20000, scoped, tag = 'input window, operand 8, single buffered']
    #allocation13 [shape = 's32[1]{0}', space=sflag, size = 0x4, scoped, tag = 'scoped memory for tpu_custom_call.1']
    #allocation14 [shape = 'u8[131072]{0}', space=vmem, size = 0x20000, scoped, tag = 'input window, operand 10, single buffered']
    #allocation15 [shape = 'u8[131072]{0}', space=vmem, size = 0x20000, scoped, tag = 'output window, operand 0']
    %17 = vsyncpa [#allocation4], 0
    %s18 = scalar_lea.sflag [#allocation4], 1
    %19 = vsyncpa %s18, 0
    %20 = vsyncpa [#allocation7], 0
    %21 = vsyncpa [#allocation10], 0
    %22 = vsyncpa [#allocation13], 0
    %23 = vsyncpa [#allocation5], 0
    %s24 = scalar_lea.sflag [#allocation5], 1
    %25 = vsyncpa %s24, 0
    loop: start=0, step=1, limit=4
    $region2: #{tpu_custom_call.1} parent=1 // loop_pre_header
      _
    $region3: #{tpu_custom_call.1} parent=1 // loop_header
      %s27 = sphi 0, %s31
      %p28 = scmp.ge.s32.totalorder %s27, 4
      %s37 = sphi 0, %s39
      %s40 = sphi 0, %s37
      %s41 = sphi 0, %s40
      %s57 = sphi 0, %s41
      %s61 = sphi 0, %s61
      %s63 = sphi 0, %s61
      %s64 = sphi 0, %s63
      %s78 = sphi 0, %s64
      %s82 = sphi 0, %s82
      %s84 = sphi 0, %s82
      %s85 = sphi 0, %s84
      %s99 = sphi 0, %s85
      %s103 = sphi 0, %s103
      %s105 = sphi 0, %s103
      %s106 = sphi 0, %s105
      %s120 = sphi 0, %s106
      %s124 = sphi 0, %s124
      %s126 = sphi 0, %s124
      %s127 = sphi 0, %s126
      %s141 = sphi 0, %s127
      %s145 = sphi 0, %s145
      %s147 = sphi 0, %s145
      %s148 = sphi 0, %s147
      %s162 = sphi 0, %s148
      %s166 = sphi 0, %s166
      %s168 = sphi 0, %s166
      %s169 = sphi 0, %s168
      %s183 = sphi 0, %s169
      %s187 = sphi 0, %s187
      %s189 = sphi 0, %s187
      %s190 = sphi 0, %s189
      %s204 = sphi 0, %s190
      %s208 = sphi 0, %s208
      %s210 = sphi 0, %s208
      %s211 = sphi 0, %s210
      %s225 = sphi 0, %s211
      %s229 = sphi 0, %s229
      %s231 = sphi 0, %s229
      %s232 = sphi 0, %s231
      %s246 = sphi 0, %s232
      %s250 = sphi 0, %s250
      %s252 = sphi 0, %s250
      %s253 = sphi 0, %s252
      %s267 = sphi 0, %s253
      %s271 = sphi 0, %s271
      %s273 = sphi 0, %s271
      %s274 = sphi 0, %s273
      %s288 = sphi 0, %s274
      %s294 = sphi 0, %s296
      %s297 = sphi 0, %s294
      %s298 = sphi 0, %s297
      %s314 = sphi 0, %s298
    $region4: #{tpu_custom_call.1} parent=1 // loop_header_branch
      %30 = sbr.rel (%p28) target = $region8
    $region5: #{tpu_custom_call.1} parent=1 // loop_body
      %s32 = ssub.s32 %s27, 1
      %s33 = ssub.s32 %s27, 2
      %s34 = sadd.s32 %s27, 1
      %s35 = ssub.s32 %s27, %s34
      %p36 = scmp.eq.s32.totalorder %s35, 0
      %s38 = sadd.s32 %s37, 1
      %s39 = scalar_select %p36, %s37, %s38
      %p42 = pneg %p36
      %p43 = scmp.eq.s32.totalorder %s27, 1
      %p44 = por %p42, %p43
      %p45 = scmp.ne.s32.totalorder %s37, %s40
      %p46 = scmp.eq.s32.totalorder %s27, 0
      %p47 = por %p45, %p46
      %p48 = scmp.ne.s32.totalorder %s37, %s40
      %p49 = scmp.eq.s32.totalorder %s32, 1
      %p50 = por %p48, %p49
      %p51 = scmp.ne.s32.totalorder %s40, %s41
      %p52 = scmp.eq.s32.totalorder %s32, 0
      %p53 = por %p51, %p52
      %p54 = scmp.ne.s32.totalorder %s40, %s41
      %p55 = scmp.eq.s32.totalorder %s33, 1
      %p56 = por %p54, %p55
      %p58 = scmp.ne.s32.totalorder %s41, %s57
      %p59 = scmp.eq.s32.totalorder %s33, 0
      %p60 = por %p58, %p59
      %s62 = sadd.s32 %s61, 1
      %p65 = scmp.eq.s32.totalorder %s27, 1
      %p66 = scmp.ne.s32.totalorder %s61, %s63
      %p67 = scmp.eq.s32.totalorder %s27, 0
      %p68 = por %p66, %p67
      %p69 = scmp.ne.s32.totalorder %s61, %s63
      %p70 = scmp.eq.s32.totalorder %s32, 1
      %p71 = por %p69, %p70
      %p72 = scmp.ne.s32.totalorder %s63, %s64
      %p73 = scmp.eq.s32.totalorder %s32, 0
      %p74 = por %p72, %p73
      %p75 = scmp.ne.s32.totalorder %s63, %s64
      %p76 = scmp.eq.s32.totalorder %s33, 1
      %p77 = por %p75, %p76
      %p79 = scmp.ne.s32.totalorder %s64, %s78
      %p80 = scmp.eq.s32.totalorder %s33, 0
      %p81 = por %p79, %p80
      %s83 = sadd.s32 %s82, 1
      %p86 = scmp.eq.s32.totalorder %s27, 1
      %p87 = scmp.ne.s32.totalorder %s82, %s84
      %p88 = scmp.eq.s32.totalorder %s27, 0
      %p89 = por %p87, %p88
      %p90 = scmp.ne.s32.totalorder %s82, %s84
      %p91 = scmp.eq.s32.totalorder %s32, 1
      %p92 = por %p90, %p91
      %p93 = scmp.ne.s32.totalorder %s84, %s85
      %p94 = scmp.eq.s32.totalorder %s32, 0
      %p95 = por %p93, %p94
      %p96 = scmp.ne.s32.totalorder %s84, %s85
      %p97 = scmp.eq.s32.totalorder %s33, 1
      %p98 = por %p96, %p97
      %p100 = scmp.ne.s32.totalorder %s85, %s99
      %p101 = scmp.eq.s32.totalorder %s33, 0
      %p102 = por %p100, %p101
      %s104 = sadd.s32 %s103, 1
      %p107 = scmp.eq.s32.totalorder %s27, 1
      %p108 = scmp.ne.s32.totalorder %s103, %s105
      %p109 = scmp.eq.s32.totalorder %s27, 0
      %p110 = por %p108, %p109
      %p111 = scmp.ne.s32.totalorder %s103, %s105
      %p112 = scmp.eq.s32.totalorder %s32, 1
      %p113 = por %p111, %p112
      %p114 = scmp.ne.s32.totalorder %s105, %s106
      %p115 = scmp.eq.s32.totalorder %s32, 0
      %p116 = por %p114, %p115
      %p117 = scmp.ne.s32.totalorder %s105, %s106
      %p118 = scmp.eq.s32.totalorder %s33, 1
      %p119 = por %p117, %p118
      %p121 = scmp.ne.s32.totalorder %s106, %s120
      %p122 = scmp.eq.s32.totalorder %s33, 0
      %p123 = por %p121, %p122
      %s125 = sadd.s32 %s124, 1
      %p128 = scmp.eq.s32.totalorder %s27, 1
      %p129 = scmp.ne.s32.totalorder %s124, %s126
      %p130 = scmp.eq.s32.totalorder %s27, 0
      %p131 = por %p129, %p130
      %p132 = scmp.ne.s32.totalorder %s124, %s126
      %p133 = scmp.eq.s32.totalorder %s32, 1
      %p134 = por %p132, %p133
      %p135 = scmp.ne.s32.totalorder %s126, %s127
      %p136 = scmp.eq.s32.totalorder %s32, 0
      %p137 = por %p135, %p136
      %p138 = scmp.ne.s32.totalorder %s126, %s127
      %p139 = scmp.eq.s32.totalorder %s33, 1
      %p140 = por %p138, %p139
      %p142 = scmp.ne.s32.totalorder %s127, %s141
      %p143 = scmp.eq.s32.totalorder %s33, 0
      %p144 = por %p142, %p143
      %s146 = sadd.s32 %s145, 1
      %p149 = scmp.eq.s32.totalorder %s27, 1
      %p150 = scmp.ne.s32.totalorder %s145, %s147
      %p151 = scmp.eq.s32.totalorder %s27, 0
      %p152 = por %p150, %p151
      %p153 = scmp.ne.s32.totalorder %s145, %s147
      %p154 = scmp.eq.s32.totalorder %s32, 1
      %p155 = por %p153, %p154
      %p156 = scmp.ne.s32.totalorder %s147, %s148
      %p157 = scmp.eq.s32.totalorder %s32, 0
      %p158 = por %p156, %p157
      %p159 = scmp.ne.s32.totalorder %s147, %s148
      %p160 = scmp.eq.s32.totalorder %s33, 1
      %p161 = por %p159, %p160
      %p163 = scmp.ne.s32.totalorder %s148, %s162
      %p164 = scmp.eq.s32.totalorder %s33, 0
      %p165 = por %p163, %p164
      %s167 = sadd.s32 %s166, 1
      %p170 = scmp.eq.s32.totalorder %s27, 1
      %p171 = scmp.ne.s32.totalorder %s166, %s168
      %p172 = scmp.eq.s32.totalorder %s27, 0
      %p173 = por %p171, %p172
      %p174 = scmp.ne.s32.totalorder %s166, %s168
      %p175 = scmp.eq.s32.totalorder %s32, 1
      %p176 = por %p174, %p175
      %p177 = scmp.ne.s32.totalorder %s168, %s169
      %p178 = scmp.eq.s32.totalorder %s32, 0
      %p179 = por %p177, %p178
      %p180 = scmp.ne.s32.totalorder %s168, %s169
      %p181 = scmp.eq.s32.totalorder %s33, 1
      %p182 = por %p180, %p181
      %p184 = scmp.ne.s32.totalorder %s169, %s183
      %p185 = scmp.eq.s32.totalorder %s33, 0
      %p186 = por %p184, %p185
      %s188 = sadd.s32 %s187, 1
      %p191 = scmp.eq.s32.totalorder %s27, 1
      %p192 = scmp.ne.s32.totalorder %s187, %s189
      %p193 = scmp.eq.s32.totalorder %s27, 0
      %p194 = por %p192, %p193
      %p195 = scmp.ne.s32.totalorder %s187, %s189
      %p196 = scmp.eq.s32.totalorder %s32, 1
      %p197 = por %p195, %p196
      %p198 = scmp.ne.s32.totalorder %s189, %s190
      %p199 = scmp.eq.s32.totalorder %s32, 0
      %p200 = por %p198, %p199
      %p201 = scmp.ne.s32.totalorder %s189, %s190
      %p202 = scmp.eq.s32.totalorder %s33, 1
      %p203 = por %p201, %p202
      %p205 = scmp.ne.s32.totalorder %s190, %s204
      %p206 = scmp.eq.s32.totalorder %s33, 0
      %p207 = por %p205, %p206
      %s209 = sadd.s32 %s208, 1
      %p212 = scmp.eq.s32.totalorder %s27, 1
      %p213 = scmp.ne.s32.totalorder %s208, %s210
      %p214 = scmp.eq.s32.totalorder %s27, 0
      %p215 = por %p213, %p214
      %p216 = scmp.ne.s32.totalorder %s208, %s210
      %p217 = scmp.eq.s32.totalorder %s32, 1
      %p218 = por %p216, %p217
      %p219 = scmp.ne.s32.totalorder %s210, %s211
      %p220 = scmp.eq.s32.totalorder %s32, 0
      %p221 = por %p219, %p220
      %p222 = scmp.ne.s32.totalorder %s210, %s211
      %p223 = scmp.eq.s32.totalorder %s33, 1
      %p224 = por %p222, %p223
      %p226 = scmp.ne.s32.totalorder %s211, %s225
      %p227 = scmp.eq.s32.totalorder %s33, 0
      %p228 = por %p226, %p227
      %s230 = sadd.s32 %s229, 1
      %p233 = scmp.eq.s32.totalorder %s27, 1
      %p234 = scmp.ne.s32.totalorder %s229, %s231
      %p235 = scmp.eq.s32.totalorder %s27, 0
      %p236 = por %p234, %p235
      %p237 = scmp.ne.s32.totalorder %s229, %s231
      %p238 = scmp.eq.s32.totalorder %s32, 1
      %p239 = por %p237, %p238
      %p240 = scmp.ne.s32.totalorder %s231, %s232
      %p241 = scmp.eq.s32.totalorder %s32, 0
      %p242 = por %p240, %p241
      %p243 = scmp.ne.s32.totalorder %s231, %s232
      %p244 = scmp.eq.s32.totalorder %s33, 1
      %p245 = por %p243, %p244
      %p247 = scmp.ne.s32.totalorder %s232, %s246
      %p248 = scmp.eq.s32.totalorder %s33, 0
      %p249 = por %p247, %p248
      %s251 = sadd.s32 %s250, 1
      %p254 = scmp.eq.s32.totalorder %s27, 1
      %p255 = scmp.ne.s32.totalorder %s250, %s252
      %p256 = scmp.eq.s32.totalorder %s27, 0
      %p257 = por %p255, %p256
      %p258 = scmp.ne.s32.totalorder %s250, %s252
      %p259 = scmp.eq.s32.totalorder %s32, 1
      %p260 = por %p258, %p259
      %p261 = scmp.ne.s32.totalorder %s252, %s253
      %p262 = scmp.eq.s32.totalorder %s32, 0
      %p263 = por %p261, %p262
      %p264 = scmp.ne.s32.totalorder %s252, %s253
      %p265 = scmp.eq.s32.totalorder %s33, 1
      %p266 = por %p264, %p265
      %p268 = scmp.ne.s32.totalorder %s253, %s267
      %p269 = scmp.eq.s32.totalorder %s33, 0
      %p270 = por %p268, %p269
      %s272 = sadd.s32 %s271, 1
      %p275 = scmp.eq.s32.totalorder %s27, 1
      %p276 = scmp.ne.s32.totalorder %s271, %s273
      %p277 = scmp.eq.s32.totalorder %s27, 0
      %p278 = por %p276, %p277
      %p279 = scmp.ne.s32.totalorder %s271, %s273
      %p280 = scmp.eq.s32.totalorder %s32, 1
      %p281 = por %p279, %p280
      %p282 = scmp.ne.s32.totalorder %s273, %s274
      %p283 = scmp.eq.s32.totalorder %s32, 0
      %p284 = por %p282, %p283
      %p285 = scmp.ne.s32.totalorder %s273, %s274
      %p286 = scmp.eq.s32.totalorder %s33, 1
      %p287 = por %p285, %p286
      %p289 = scmp.ne.s32.totalorder %s274, %s288
      %p290 = scmp.eq.s32.totalorder %s33, 0
      %p291 = por %p289, %p290
      %s292 = ssub.s32 %s27, %s34
      %p293 = scmp.eq.s32.totalorder %s292, 0
      %s295 = sadd.s32 %s294, 1
      %s296 = scalar_select %p293, %s294, %s295
      %p299 = pneg %p293
      %p300 = scmp.eq.s32.totalorder %s27, 1
      %p301 = por %p299, %p300
      %p302 = scmp.ne.s32.totalorder %s294, %s297
      %p303 = scmp.eq.s32.totalorder %s27, 0
      %p304 = por %p302, %p303
      %p305 = scmp.ne.s32.totalorder %s294, %s297
      %p306 = scmp.eq.s32.totalorder %s32, 1
      %p307 = por %p305, %p306
      %p308 = scmp.ne.s32.totalorder %s297, %s298
      %p309 = scmp.eq.s32.totalorder %s32, 0
      %p310 = por %p308, %p309
      %p311 = scmp.ne.s32.totalorder %s297, %s298
      %p312 = scmp.eq.s32.totalorder %s33, 1
      %p313 = por %p311, %p312
      %p315 = scmp.ne.s32.totalorder %s298, %s314
      %p316 = scmp.eq.s32.totalorder %s33, 0
      %p317 = por %p315, %p316
      %p318 = scmp.le.s32.totalorder 1, %s27
      %p319 = scmp.lt.s32.totalorder %s27, 3
      %p320 = pnand %p318, %p319
      %p321 = pneg %p320
      // Predicated region
      $region9: #{tpu_custom_call.1} parent=5 // pred_check
        _
      $region10: #{tpu_custom_call.1} parent=5 // pred_check_branch
        %323 = sbr.rel (%p320) target = $region12
      $region11: #{tpu_custom_call.1} parent=5 // pred_region
        %s324 = ssub.s32 %s27, 1
        // Predicated region
        $region13: #{tpu_custom_call.1} parent=11 // pred_check
          %p325 = pneg %p74
        $region14: #{tpu_custom_call.1} parent=11 // pred_check_branch
          %327 = sbr.rel (%p325) target = $region16
        $region15: #{tpu_custom_call.1} parent=11 // pred_region
          %329 = vsyncadd [#allocation7], 0
          %s331 = sshll.u32 %s1, 4
          %s332 = int_to_ptr.hbm [resolvable:$true] %s331
          %s333 = sshll.u32 [#allocation6], 4
          %s334 = int_to_ptr.vmem [resolvable:$true] %s333
          %336 = dma.hbm_to_vmem [thread:$0]  %s332, 16, %s334, [#allocation7]
        $region16: #{tpu_custom_call.1} parent=11 // pred_fallthru
          _
        // Predicated region
        $region17: #{tpu_custom_call.1} parent=11 // pred_check
          %p337 = pneg %p95
        $region18: #{tpu_custom_call.1} parent=11 // pred_check_branch
          %339 = sbr.rel (%p337) target = $region20
        $region19: #{tpu_custom_call.1} parent=11 // pred_region
          _
        $region20: #{tpu_custom_call.1} parent=11 // pred_fallthru
          _
        // Predicated region
        $region21: #{tpu_custom_call.1} parent=11 // pred_check
          %p340 = pneg %p116
        $region22: #{tpu_custom_call.1} parent=11 // pred_check_branch
          %342 = sbr.rel (%p340) target = $region24
        $region23: #{tpu_custom_call.1} parent=11 // pred_region
          %344 = vsyncadd [#allocation7], 0
          %s345 = sshll.u32 %s3, 4
          %s346 = int_to_ptr.hbm [resolvable:$true] %s345
          %s347 = sshll.u32 [#allocation8], 4
          %s348 = int_to_ptr.vmem [resolvable:$true] %s347
          %353 = dma.hbm_to_vmem [thread:$0]  %s346, 3072, %s348, [#allocation7], 192, 192, 12
        $region24: #{tpu_custom_call.1} parent=11 // pred_fallthru
          _
        // Predicated region
        $region25: #{tpu_custom_call.1} parent=11 // pred_check
          %p354 = pneg %p137
        $region26: #{tpu_custom_call.1} parent=11 // pred_check_branch
          %356 = sbr.rel (%p354) target = $region28
        $region27: #{tpu_custom_call.1} parent=11 // pred_region
          %358 = vsyncadd [#allocation10], 0
          %s359 = sshll.u32 %s4, 4
          %s360 = int_to_ptr.hbm [resolvable:$true] %s359
          %s361 = sshll.u32 [#allocation9], 4
          %s362 = int_to_ptr.vmem [resolvable:$true] %s361
          %367 = dma.hbm_to_vmem [thread:$0]  %s360, 1024, %s362, [#allocation10], 64, 64, 4
        $region28: #{tpu_custom_call.1} parent=11 // pred_fallthru
          _
        // Predicated region
        $region29: #{tpu_custom_call.1} parent=11 // pred_check
          %p368 = pneg %p158
        $region30: #{tpu_custom_call.1} parent=11 // pred_check_branch
          %370 = sbr.rel (%p368) target = $region32
        $region31: #{tpu_custom_call.1} parent=11 // pred_region
          _
        $region32: #{tpu_custom_call.1} parent=11 // pred_fallthru
          _
        // Predicated region
        $region33: #{tpu_custom_call.1} parent=11 // pred_check
          %p371 = pneg %p179
        $region34: #{tpu_custom_call.1} parent=11 // pred_check_branch
          %373 = sbr.rel (%p371) target = $region36
        $region35: #{tpu_custom_call.1} parent=11 // pred_region
          _
        $region36: #{tpu_custom_call.1} parent=11 // pred_fallthru
          _
        // Predicated region
        $region37: #{tpu_custom_call.1} parent=11 // pred_check
          %p374 = pneg %p200
        $region38: #{tpu_custom_call.1} parent=11 // pred_check_branch
          %376 = sbr.rel (%p374) target = $region40
        $region39: #{tpu_custom_call.1} parent=11 // pred_region
          %378 = vsyncadd [#allocation10], 0
          %s380 = sshll.u32 %s7, 4
          %s381 = int_to_ptr.hbm [resolvable:$true] %s380
          %s382 = sshll.u32 [#allocation11], 4
          %s383 = int_to_ptr.vmem [resolvable:$true] %s382
          %385 = dma.hbm_to_vmem [thread:$0]  %s381, 16, %s383, [#allocation10]
        $region40: #{tpu_custom_call.1} parent=11 // pred_fallthru
          _
        // Predicated region
        $region41: #{tpu_custom_call.1} parent=11 // pred_check
          %p386 = pneg %p221
        $region42: #{tpu_custom_call.1} parent=11 // pred_check_branch
          %388 = sbr.rel (%p386) target = $region44
        $region43: #{tpu_custom_call.1} parent=11 // pred_region
          %390 = vsyncadd [#allocation13], 0
          %s391 = sshll.u32 %s8, 4
          %s392 = int_to_ptr.hbm [resolvable:$true] %s391
          %s393 = sshll.u32 [#allocation12], 4
          %s394 = int_to_ptr.vmem [resolvable:$true] %s393
          %399 = dma.hbm_to_vmem [thread:$0]  %s392, 4096, %s394, [#allocation13], 256, 256, 16
        $region44: #{tpu_custom_call.1} parent=11 // pred_fallthru
          _
        // Predicated region
        $region45: #{tpu_custom_call.1} parent=11 // pred_check
          %p400 = pneg %p242
        $region46: #{tpu_custom_call.1} parent=11 // pred_check_branch
          %402 = sbr.rel (%p400) target = $region48
        $region47: #{tpu_custom_call.1} parent=11 // pred_region
          _
        $region48: #{tpu_custom_call.1} parent=11 // pred_fallthru
          _
        // Predicated region
        $region49: #{tpu_custom_call.1} parent=11 // pred_check
          %p403 = pneg %p263
        $region50: #{tpu_custom_call.1} parent=11 // pred_check_branch
          %405 = sbr.rel (%p403) target = $region52
        $region51: #{tpu_custom_call.1} parent=11 // pred_region
          %407 = vsyncadd [#allocation13], 0
          %s408 = sshll.u32 %s10, 4
          %s409 = int_to_ptr.hbm [resolvable:$true] %s408
          %s410 = sshll.u32 [#allocation14], 4
          %s411 = int_to_ptr.vmem [resolvable:$true] %s410
          %416 = dma.hbm_to_vmem [thread:$0]  %s409, 4096, %s411, [#allocation13], 64, 64, 4
        $region52: #{tpu_custom_call.1} parent=11 // pred_fallthru
          _
        // Predicated region
        $region53: #{tpu_custom_call.1} parent=11 // pred_check
          %p417 = pneg %p284
        $region54: #{tpu_custom_call.1} parent=11 // pred_check_branch
          %419 = sbr.rel (%p417) target = $region56
        $region55: #{tpu_custom_call.1} parent=11 // pred_region
          _
        $region56: #{tpu_custom_call.1} parent=11 // pred_fallthru
          _
      $region12: #{tpu_custom_call.1} parent=5 // pred_fallthru
        _
      %p420 = scmp.lt.s32.totalorder %s27, 2
      // Predicated region
      $region57: #{tpu_custom_call.1} parent=5 // pred_check
        %p421 = pneg %p420
      $region58: #{tpu_custom_call.1} parent=5 // pred_check_branch
        %423 = sbr.rel (%p421) target = $region60
      $region59: #{tpu_custom_call.1} parent=5 // pred_region
        // Predicated region
        $region61: #{tpu_custom_call.1} parent=59 // pred_check
          %p424 = pneg %p47
        $region62: #{tpu_custom_call.1} parent=59 // pred_check_branch
          %426 = sbr.rel (%p424) target = $region64
        $region63: #{tpu_custom_call.1} parent=59 // pred_region
          %s427 = sand.u32 %s37, 1
          %s428 = scalar_lea.sflag [#allocation4], %s427
          %s429 = sand.u32 %s37, 1
          %s430 = smul.addr %s429, 128
          %s431 = scalar_lea.vmem [#allocation3], %s430
          %s432 = smul.u32 2, %s27
          %434 = vsyncadd %s428, 0
          %s435 = smul.addr %s432, 8
          %s436 = smul.addr %s435, 8
          %s437 = scalar_lea.hbm %s0, %s436
          %s438 = sshll.u32 %s437, 4
          %s439 = int_to_ptr.hbm [resolvable:$true] %s438
          %s440 = sshll.u32 %s431, 4
          %s441 = int_to_ptr.vmem [resolvable:$true] %s440
          %446 = dma.hbm_to_vmem [thread:$0]  %s439, 2048, %s441, %s428, 128, 128, 8
        $region64: #{tpu_custom_call.1} parent=59 // pred_fallthru
          _
      $region60: #{tpu_custom_call.1} parent=5 // pred_fallthru
        _
      %p447 = scmp.le.s32.totalorder 1, %s27
      %p448 = scmp.lt.s32.totalorder %s27, 3
      %p449 = pnand %p447, %p448
      %p450 = pneg %p449
      // Predicated region
      $region65: #{tpu_custom_call.1} parent=5 // pred_check
        _
      $region66: #{tpu_custom_call.1} parent=5 // pred_check_branch
        %452 = sbr.rel (%p449) target = $region68
      $region67: #{tpu_custom_call.1} parent=5 // pred_region
        %s453 = ssub.s32 %s27, 1
        %s454 = sand.u32 %s40, 1
        %s455 = scalar_lea.sflag [#allocation4], %s454
        %s456 = sand.u32 %s40, 1
        %s457 = smul.addr %s456, 128
        %s458 = scalar_lea.vmem [#allocation3], %s457
        // Predicated region
        $region69: #{tpu_custom_call.1} parent=67 // pred_check
          %p459 = pneg %p53
        $region70: #{tpu_custom_call.1} parent=67 // pred_check_branch
          %461 = sbr.rel (%p459) target = $region72
        $region71: #{tpu_custom_call.1} parent=67 // pred_region
          %463 = dma.done %s455, 2048
        $region72: #{tpu_custom_call.1} parent=67 // pred_fallthru
          _
        // Predicated region
        $region73: #{tpu_custom_call.1} parent=67 // pred_check
          %p464 = pneg %p74
        $region74: #{tpu_custom_call.1} parent=67 // pred_check_branch
          %466 = sbr.rel (%p464) target = $region76
        $region75: #{tpu_custom_call.1} parent=67 // pred_region
          %468 = dma.done [#allocation7], 16
        $region76: #{tpu_custom_call.1} parent=67 // pred_fallthru
          _
        // Predicated region
        $region77: #{tpu_custom_call.1} parent=67 // pred_check
          %p469 = pneg %p116
        $region78: #{tpu_custom_call.1} parent=67 // pred_check_branch
          %471 = sbr.rel (%p469) target = $region80
        $region79: #{tpu_custom_call.1} parent=67 // pred_region
          %473 = dma.done [#allocation7], 3072
        $region80: #{tpu_custom_call.1} parent=67 // pred_fallthru
          _
        // Predicated region
        $region81: #{tpu_custom_call.1} parent=67 // pred_check
          %p474 = pneg %p137
        $region82: #{tpu_custom_call.1} parent=67 // pred_check_branch
          %476 = sbr.rel (%p474) target = $region84
        $region83: #{tpu_custom_call.1} parent=67 // pred_region
          %478 = dma.done [#allocation10], 1024
        $region84: #{tpu_custom_call.1} parent=67 // pred_fallthru
          _
        // Predicated region
        $region85: #{tpu_custom_call.1} parent=67 // pred_check
          %p479 = pneg %p200
        $region86: #{tpu_custom_call.1} parent=67 // pred_check_branch
          %481 = sbr.rel (%p479) target = $region88
        $region87: #{tpu_custom_call.1} parent=67 // pred_region
          %483 = dma.done [#allocation10], 16
        $region88: #{tpu_custom_call.1} parent=67 // pred_fallthru
          _
        // Predicated region
        $region89: #{tpu_custom_call.1} parent=67 // pred_check
          %p484 = pneg %p221
        $region90: #{tpu_custom_call.1} parent=67 // pred_check_branch
          %486 = sbr.rel (%p484) target = $region92
        $region91: #{tpu_custom_call.1} parent=67 // pred_region
          %488 = dma.done [#allocation13], 4096
        $region92: #{tpu_custom_call.1} parent=67 // pred_fallthru
          _
        // Predicated region
        $region93: #{tpu_custom_call.1} parent=67 // pred_check
          %p489 = pneg %p263
        $region94: #{tpu_custom_call.1} parent=67 // pred_check_branch
          %491 = sbr.rel (%p489) target = $region96
        $region95: #{tpu_custom_call.1} parent=67 // pred_region
          %493 = dma.done [#allocation13], 4096
        $region96: #{tpu_custom_call.1} parent=67 // pred_fallthru
          _
        %s494 = sand.u32 %s40, 1
        %s495 = scalar_lea.sflag [#allocation4], %s494
        %s496 = sand.u32 %s40, 1
        %s497 = smul.addr %s496, 128
        %s498 = scalar_lea.vmem [#allocation3], %s497
        %p499 = pneg %p53
        %p500 = pneg %p50
        %p501 = pneg %p74
        %p502 = pneg %p71
        %p503 = pneg %p95
        %p504 = pneg %p92
        %p505 = pneg %p116
        %p506 = pneg %p113
        %p507 = pneg %p137
        %p508 = pneg %p134
        %p509 = pneg %p158
        %p510 = pneg %p155
        %p511 = pneg %p179
        %p512 = pneg %p176
        %p513 = pneg %p200
        %p514 = pneg %p197
        %p515 = pneg %p221
        %p516 = pneg %p218
        %p517 = pneg %p242
        %p518 = pneg %p239
        %p519 = pneg %p263
        %p520 = pneg %p260
        %p521 = pneg %p284
        %p522 = pneg %p281
        %p523 = pneg %p310
        %p524 = pneg %p307
        %s525 = sand.u32 %s297, 1
        %s526 = scalar_lea.sflag [#allocation5], %s525
        %s527 = sand.u32 %s297, 1
        %s528 = smul.addr %s527, 128
        %s529 = scalar_lea.vmem [#allocation15], %s528
        %s530 = smul.u32 2, %s32
        %s531 = smul.u32 2, %s32
        %v533 = vld [vmem:[%s458] sm:$0xff]
        %v534 = vld [vmem:[%s458 + $0x8] sm:$0xff]
        %v535 = vld [vmem:[%s458 + $0x10] sm:$0xff]
        %v536 = vld [vmem:[%s458 + $0x18] sm:$0xff]
        %v537 = vld [vmem:[%s458 + $0x20] sm:$0xff]
        %v538 = vld [vmem:[%s458 + $0x28] sm:$0xff]
        %v539 = vld [vmem:[%s458 + $0x30] sm:$0xff]
        %v540 = vld [vmem:[%s458 + $0x38] sm:$0xff]
        %v541 = vld [vmem:[%s458 + $0x40] sm:$0xff]
        %v542 = vld [vmem:[%s458 + $0x48] sm:$0xff]
        %v543 = vld [vmem:[%s458 + $0x50] sm:$0xff]
        %v544 = vld [vmem:[%s458 + $0x58] sm:$0xff]
        %v545 = vld [vmem:[%s458 + $0x60] sm:$0xff]
        %v546 = vld [vmem:[%s458 + $0x68] sm:$0xff]
        %v547 = vld [vmem:[%s458 + $0x70] sm:$0xff]
        %v548 = vld [vmem:[%s458 + $0x78] sm:$0xff]
        %v549 = vld [vmem:[#allocation6] sm:$0x1]
        %v550 = vld [vmem:[%s2] sm:$0x1]
        %551 = vadd.xlane.f32.xlu0 %v533
        %v552 = vpop.xlane.xlu0 %551
        %553 = vadd.xlane.f32.xlu0 %v534
        %v554 = vpop.xlane.xlu0 %553
        %555 = vadd.xlane.f32.xlu0 %v535
        %v556 = vpop.xlane.xlu0 %555
        %557 = vadd.xlane.f32.xlu0 %v536
        %v558 = vpop.xlane.xlu0 %557
        %559 = vadd.xlane.f32.xlu0 %v537
        %v560 = vpop.xlane.xlu0 %559
        %561 = vadd.xlane.f32.xlu0 %v538
        %v562 = vpop.xlane.xlu0 %561
        %563 = vadd.xlane.f32.xlu0 %v539
        %v564 = vpop.xlane.xlu0 %563
        %565 = vadd.xlane.f32.xlu0 %v540
        %v566 = vpop.xlane.xlu0 %565
        %567 = vadd.xlane.f32.xlu0 %v541
        %v568 = vpop.xlane.xlu0 %567
        %569 = vadd.xlane.f32.xlu0 %v542
        %v570 = vpop.xlane.xlu0 %569
        %571 = vadd.xlane.f32.xlu0 %v543
        %v572 = vpop.xlane.xlu0 %571
        %573 = vadd.xlane.f32.xlu0 %v544
        %v574 = vpop.xlane.xlu0 %573
        %575 = vadd.xlane.f32.xlu0 %v545
        %v576 = vpop.xlane.xlu0 %575
        %577 = vadd.xlane.f32.xlu0 %v546
        %v578 = vpop.xlane.xlu0 %577
        %579 = vadd.xlane.f32.xlu0 %v547
        %v580 = vpop.xlane.xlu0 %579
        %581 = vadd.xlane.f32.xlu0 %v548
        %v582 = vpop.xlane.xlu0 %581
        %v583 = vrcp.pop 128.0
        %v584 = vmul.f32 128.0, %v583
        %v585 = vsub.f32 1.0, %v584
        %v586 = vmul.f32 %v583, %v585
        %v587 = vadd.f32 %v583, %v586
        %vm588 = vweird.f32 %v583
        %v589 = vsel %vm588, %v583, %v587
        %v590 = vmul.f32 %v552, %v589
        %v591 = vmul.f32 %v554, %v589
        %v592 = vmul.f32 %v556, %v589
        %v593 = vmul.f32 %v558, %v589
        %v594 = vmul.f32 %v560, %v589
        %v595 = vmul.f32 %v562, %v589
        %v596 = vmul.f32 %v564, %v589
        %v597 = vmul.f32 %v566, %v589
        %v598 = vmul.f32 %v568, %v589
        %v599 = vmul.f32 %v570, %v589
        %v600 = vmul.f32 %v572, %v589
        %v601 = vmul.f32 %v574, %v589
        %v602 = vmul.f32 %v576, %v589
        %v603 = vmul.f32 %v578, %v589
        %v604 = vmul.f32 %v580, %v589
        %v605 = vmul.f32 %v582, %v589
        %v606 = vsub.f32 %v533, %v590
        %v607 = vsub.f32 %v534, %v591
        %v608 = vsub.f32 %v535, %v592
        %v609 = vsub.f32 %v536, %v593
        %v610 = vsub.f32 %v537, %v594
        %v611 = vsub.f32 %v538, %v595
        %v612 = vsub.f32 %v539, %v596
        %v613 = vsub.f32 %v540, %v597
        %v614 = vsub.f32 %v541, %v598
        %v615 = vsub.f32 %v542, %v599
        %v616 = vsub.f32 %v543, %v600
        %v617 = vsub.f32 %v544, %v601
        %v618 = vsub.f32 %v545, %v602
        %v619 = vsub.f32 %v546, %v603
        %v620 = vsub.f32 %v547, %v604
        %v621 = vsub.f32 %v548, %v605
        %v622 = vmul.f32 %v606, %v606
        %v623 = vmul.f32 %v607, %v607
        %v624 = vmul.f32 %v608, %v608
        %v625 = vmul.f32 %v609, %v609
        %v626 = vmul.f32 %v610, %v610
        %v627 = vmul.f32 %v611, %v611
        %v628 = vmul.f32 %v612, %v612
        %v629 = vmul.f32 %v613, %v613
        %v630 = vmul.f32 %v614, %v614
        %v631 = vmul.f32 %v615, %v615
        %v632 = vmul.f32 %v616, %v616
        %v633 = vmul.f32 %v617, %v617
        %v634 = vmul.f32 %v618, %v618
        %v635 = vmul.f32 %v619, %v619
        %v636 = vmul.f32 %v620, %v620
        %v637 = vmul.f32 %v621, %v621
        %638 = vadd.xlane.f32.xlu0 %v622
        %v639 = vpop.xlane.xlu0 %638
        %640 = vadd.xlane.f32.xlu0 %v623
        %v641 = vpop.xlane.xlu0 %640
        %642 = vadd.xlane.f32.xlu0 %v624
        %v643 = vpop.xlane.xlu0 %642
        %644 = vadd.xlane.f32.xlu0 %v625
        %v645 = vpop.xlane.xlu0 %644
        %646 = vadd.xlane.f32.xlu0 %v626
        %v647 = vpop.xlane.xlu0 %646
        %648 = vadd.xlane.f32.xlu0 %v627
        %v649 = vpop.xlane.xlu0 %648
        %650 = vadd.xlane.f32.xlu0 %v628
        %v651 = vpop.xlane.xlu0 %650
        %652 = vadd.xlane.f32.xlu0 %v629
        %v653 = vpop.xlane.xlu0 %652
        %654 = vadd.xlane.f32.xlu0 %v630
        %v655 = vpop.xlane.xlu0 %654
        %656 = vadd.xlane.f32.xlu0 %v631
        %v657 = vpop.xlane.xlu0 %656
        %658 = vadd.xlane.f32.xlu0 %v632
        %v659 = vpop.xlane.xlu0 %658
        %660 = vadd.xlane.f32.xlu0 %v633
        %v661 = vpop.xlane.xlu0 %660
        %662 = vadd.xlane.f32.xlu0 %v634
        %v663 = vpop.xlane.xlu0 %662
        %664 = vadd.xlane.f32.xlu0 %v635
        %v665 = vpop.xlane.xlu0 %664
        %666 = vadd.xlane.f32.xlu0 %v636
        %v667 = vpop.xlane.xlu0 %666
        %668 = vadd.xlane.f32.xlu0 %v637
        %v669 = vpop.xlane.xlu0 %668
        %v670 = vmul.f32 %v639, %v589
        %v671 = vmul.f32 %v641, %v589
        %v672 = vmul.f32 %v643, %v589
        %v673 = vmul.f32 %v645, %v589
        %v674 = vmul.f32 %v647, %v589
        %v675 = vmul.f32 %v649, %v589
        %v676 = vmul.f32 %v651, %v589
        %v677 = vmul.f32 %v653, %v589
        %v678 = vmul.f32 %v655, %v589
        %v679 = vmul.f32 %v657, %v589
        %v680 = vmul.f32 %v659, %v589
        %v681 = vmul.f32 %v661, %v589
        %v682 = vmul.f32 %v663, %v589
        %v683 = vmul.f32 %v665, %v589
        %v684 = vmul.f32 %v667, %v589
        %v685 = vmul.f32 %v669, %v589
        %v686 = vadd.f32 %v670, 1e-05
        %v687 = vadd.f32 %v671, 1e-05
        %v688 = vadd.f32 %v672, 1e-05
        %v689 = vadd.f32 %v673, 1e-05
        %v690 = vadd.f32 %v674, 1e-05
        %v691 = vadd.f32 %v675, 1e-05
        %v692 = vadd.f32 %v676, 1e-05
        %v693 = vadd.f32 %v677, 1e-05
        %v694 = vadd.f32 %v678, 1e-05
        %v695 = vadd.f32 %v679, 1e-05
        %v696 = vadd.f32 %v680, 1e-05
        %v697 = vadd.f32 %v681, 1e-05
        %v698 = vadd.f32 %v682, 1e-05
        %v699 = vadd.f32 %v683, 1e-05
        %v700 = vadd.f32 %v684, 1e-05
        %v701 = vadd.f32 %v685, 1e-05
        %v702 = vrsqrt.pop %v686
        %v703 = vmul.f32 %v702, %v686
        %v704 = vmul.f32 %v703, %v702
        %v705 = vmul.f32 0.5, %v704
        %v706 = vsub.f32 1.5, %v705
        %v707 = vmul.f32 %v702, %v706
        %vm708 = vweird.f32 %v686
        %vm709 = vweird.f32 %v702
        %vm710 = vmor %vm708, %vm709
        %v711 = vsel %vm710, %v702, %v707
        %v712 = vrsqrt.pop %v687
        %v713 = vmul.f32 %v712, %v687
        %v714 = vmul.f32 %v713, %v712
        %v715 = vmul.f32 0.5, %v714
        %v716 = vsub.f32 1.5, %v715
        %v717 = vmul.f32 %v712, %v716
        %vm718 = vweird.f32 %v687
        %vm719 = vweird.f32 %v712
        %vm720 = vmor %vm718, %vm719
        %v721 = vsel %vm720, %v712, %v717
        %v722 = vrsqrt.pop %v688
        %v723 = vmul.f32 %v722, %v688
        %v724 = vmul.f32 %v723, %v722
        %v725 = vmul.f32 0.5, %v724
        %v726 = vsub.f32 1.5, %v725
        %v727 = vmul.f32 %v722, %v726
        %vm728 = vweird.f32 %v688
        %vm729 = vweird.f32 %v722
        %vm730 = vmor %vm728, %vm729
        %v731 = vsel %vm730, %v722, %v727
        %v732 = vrsqrt.pop %v689
        %v733 = vmul.f32 %v732, %v689
        %v734 = vmul.f32 %v733, %v732
        %v735 = vmul.f32 0.5, %v734
        %v736 = vsub.f32 1.5, %v735
        %v737 = vmul.f32 %v732, %v736
        %vm738 = vweird.f32 %v689
        %vm739 = vweird.f32 %v732
        %vm740 = vmor %vm738, %vm739
        %v741 = vsel %vm740, %v732, %v737
        %v742 = vrsqrt.pop %v690
        %v743 = vmul.f32 %v742, %v690
        %v744 = vmul.f32 %v743, %v742
        %v745 = vmul.f32 0.5, %v744
        %v746 = vsub.f32 1.5, %v745
        %v747 = vmul.f32 %v742, %v746
        %vm748 = vweird.f32 %v690
        %vm749 = vweird.f32 %v742
        %vm750 = vmor %vm748, %vm749
        %v751 = vsel %vm750, %v742, %v747
        %v752 = vrsqrt.pop %v691
        %v753 = vmul.f32 %v752, %v691
        %v754 = vmul.f32 %v753, %v752
        %v755 = vmul.f32 0.5, %v754
        %v756 = vsub.f32 1.5, %v755
        %v757 = vmul.f32 %v752, %v756
        %vm758 = vweird.f32 %v691
        %vm759 = vweird.f32 %v752
        %vm760 = vmor %vm758, %vm759
        %v761 = vsel %vm760, %v752, %v757
        %v762 = vrsqrt.pop %v692
        %v763 = vmul.f32 %v762, %v692
        %v764 = vmul.f32 %v763, %v762
        %v765 = vmul.f32 0.5, %v764
        %v766 = vsub.f32 1.5, %v765
        %v767 = vmul.f32 %v762, %v766
        %vm768 = vweird.f32 %v692
        %vm769 = vweird.f32 %v762
        %vm770 = vmor %vm768, %vm769
        %v771 = vsel %vm770, %v762, %v767
        %v772 = vrsqrt.pop %v693
        %v773 = vmul.f32 %v772, %v693
        %v774 = vmul.f32 %v773, %v772
        %v775 = vmul.f32 0.5, %v774
        %v776 = vsub.f32 1.5, %v775
        %v777 = vmul.f32 %v772, %v776
        %vm778 = vweird.f32 %v693
        %vm779 = vweird.f32 %v772
        %vm780 = vmor %vm778, %vm779
        %v781 = vsel %vm780, %v772, %v777
        %v782 = vrsqrt.pop %v694
        %v783 = vmul.f32 %v782, %v694
        %v784 = vmul.f32 %v783, %v782
        %v785 = vmul.f32 0.5, %v784
        %v786 = vsub.f32 1.5, %v785
        %v787 = vmul.f32 %v782, %v786
        %vm788 = vweird.f32 %v694
        %vm789 = vweird.f32 %v782
        %vm790 = vmor %vm788, %vm789
        %v791 = vsel %vm790, %v782, %v787
        %v792 = vrsqrt.pop %v695
        %v793 = vmul.f32 %v792, %v695
        %v794 = vmul.f32 %v793, %v792
        %v795 = vmul.f32 0.5, %v794
        %v796 = vsub.f32 1.5, %v795
        %v797 = vmul.f32 %v792, %v796
        %vm798 = vweird.f32 %v695
        %vm799 = vweird.f32 %v792
        %vm800 = vmor %vm798, %vm799
        %v801 = vsel %vm800, %v792, %v797
        %v802 = vrsqrt.pop %v696
        %v803 = vmul.f32 %v802, %v696
        %v804 = vmul.f32 %v803, %v802
        %v805 = vmul.f32 0.5, %v804
        %v806 = vsub.f32 1.5, %v805
        %v807 = vmul.f32 %v802, %v806
        %vm808 = vweird.f32 %v696
        %vm809 = vweird.f32 %v802
        %vm810 = vmor %vm808, %vm809
        %v811 = vsel %vm810, %v802, %v807
        %v812 = vrsqrt.pop %v697
        %v813 = vmul.f32 %v812, %v697
        %v814 = vmul.f32 %v813, %v812
        %v815 = vmul.f32 0.5, %v814
        %v816 = vsub.f32 1.5, %v815
        %v817 = vmul.f32 %v812, %v816
        %vm818 = vweird.f32 %v697
        %vm819 = vweird.f32 %v812
        %vm820 = vmor %vm818, %vm819
        %v821 = vsel %vm820, %v812, %v817
        %v822 = vrsqrt.pop %v698
        %v823 = vmul.f32 %v822, %v698
        %v824 = vmul.f32 %v823, %v822
        %v825 = vmul.f32 0.5, %v824
        %v826 = vsub.f32 1.5, %v825
        %v827 = vmul.f32 %v822, %v826
        %vm828 = vweird.f32 %v698
        %vm829 = vweird.f32 %v822
        %vm830 = vmor %vm828, %vm829
        %v831 = vsel %vm830, %v822, %v827
        %v832 = vrsqrt.pop %v699
        %v833 = vmul.f32 %v832, %v699
        %v834 = vmul.f32 %v833, %v832
        %v835 = vmul.f32 0.5, %v834
        %v836 = vsub.f32 1.5, %v835
        %v837 = vmul.f32 %v832, %v836
        %vm838 = vweird.f32 %v699
        %vm839 = vweird.f32 %v832
        %vm840 = vmor %vm838, %vm839
        %v841 = vsel %vm840, %v832, %v837
        %v842 = vrsqrt.pop %v700
        %v843 = vmul.f32 %v842, %v700
        %v844 = vmul.f32 %v843, %v842
        %v845 = vmul.f32 0.5, %v844
        %v846 = vsub.f32 1.5, %v845
        %v847 = vmul.f32 %v842, %v846
        %vm848 = vweird.f32 %v700
        %vm849 = vweird.f32 %v842
        %vm850 = vmor %vm848, %vm849
        %v851 = vsel %vm850, %v842, %v847
        %v852 = vrsqrt.pop %v701
        %v853 = vmul.f32 %v852, %v701
        %v854 = vmul.f32 %v853, %v852
        %v855 = vmul.f32 0.5, %v854
        %v856 = vsub.f32 1.5, %v855
        %v857 = vmul.f32 %v852, %v856
        %vm858 = vweird.f32 %v701
        %vm859 = vweird.f32 %v852
        %vm860 = vmor %vm858, %vm859
        %v861 = vsel %vm860, %v852, %v857
        %v862 = vmul.f32 %v606, %v711
        %v863 = vmul.f32 %v607, %v721
        %v864 = vmul.f32 %v608, %v731
        %v865 = vmul.f32 %v609, %v741
        %v866 = vmul.f32 %v610, %v751
        %v867 = vmul.f32 %v611, %v761
        %v868 = vmul.f32 %v612, %v771
        %v869 = vmul.f32 %v613, %v781
        %v870 = vmul.f32 %v614, %v791
        %v871 = vmul.f32 %v615, %v801
        %v872 = vmul.f32 %v616, %v811
        %v873 = vmul.f32 %v617, %v821
        %v874 = vmul.f32 %v618, %v831
        %v875 = vmul.f32 %v619, %v841
        %v876 = vmul.f32 %v620, %v851
        %v877 = vmul.f32 %v621, %v861
        %v879 = vperm.slane %v549, 0
        %v881 = vmul.f32 %v862, %v879
        %v882 = vmul.f32 %v863, %v879
        %v883 = vmul.f32 %v864, %v879
        %v884 = vmul.f32 %v865, %v879
        %v885 = vmul.f32 %v866, %v879
        %v886 = vmul.f32 %v867, %v879
        %v887 = vmul.f32 %v868, %v879
        %v888 = vmul.f32 %v869, %v879
        %v889 = vmul.f32 %v870, %v879
        %v890 = vmul.f32 %v871, %v879
        %v891 = vmul.f32 %v872, %v879
        %v892 = vmul.f32 %v873, %v879
        %v893 = vmul.f32 %v874, %v879
        %v894 = vmul.f32 %v875, %v879
        %v895 = vmul.f32 %v876, %v879
        %v896 = vmul.f32 %v877, %v879
        %v898 = vperm.slane %v550, 0
        %v900 = vadd.f32 %v881, %v898
        %v901 = vadd.f32 %v882, %v898
        %v902 = vadd.f32 %v883, %v898
        %v903 = vadd.f32 %v884, %v898
        %v904 = vadd.f32 %v885, %v898
        %v905 = vadd.f32 %v886, %v898
        %v906 = vadd.f32 %v887, %v898
        %v907 = vadd.f32 %v888, %v898
        %v908 = vadd.f32 %v889, %v898
        %v909 = vadd.f32 %v890, %v898
        %v910 = vadd.f32 %v891, %v898
        %v911 = vadd.f32 %v892, %v898
        %v912 = vadd.f32 %v893, %v898
        %v913 = vadd.f32 %v894, %v898
        %v914 = vadd.f32 %v895, %v898
        %v915 = vadd.f32 %v896, %v898
        %v916 = vpack.c.bf16 %v901, %v900
        %v917 = vpack.c.bf16 %v903, %v902
        %v918 = vpack.c.bf16 %v905, %v904
        %v919 = vpack.c.bf16 %v907, %v906
        %v920 = vpack.c.bf16 %v909, %v908
        %v921 = vpack.c.bf16 %v911, %v910
        %v922 = vpack.c.bf16 %v913, %v912
        %v923 = vpack.c.bf16 %v915, %v914
        %v924 = vld [vmem:[#allocation8] sm:$0xff]
        %v925 = vld [vmem:[#allocation8 + $0x8] sm:$0xf]
        %v926 = vld [vmem:[#allocation8 + $0xc] sm:$0xff]
        %v927 = vld [vmem:[#allocation8 + $0x14] sm:$0xf]
        %v928 = vld [vmem:[#allocation8 + $0x18] sm:$0xff]
        %v929 = vld [vmem:[#allocation8 + $0x20] sm:$0xf]
        %v930 = vld [vmem:[#allocation8 + $0x24] sm:$0xff]
        %v931 = vld [vmem:[#allocation8 + $0x2c] sm:$0xf]
        %v932 = vld [vmem:[#allocation8 + $0x30] sm:$0xff]
        %v933 = vld [vmem:[#allocation8 + $0x38] sm:$0xf]
        %v934 = vld [vmem:[#allocation8 + $0x3c] sm:$0xff]
        %v935 = vld [vmem:[#allocation8 + $0x44] sm:$0xf]
        %v936 = vld [vmem:[#allocation8 + $0x48] sm:$0xff]
        %v937 = vld [vmem:[#allocation8 + $0x50] sm:$0xf]
        %v938 = vld [vmem:[#allocation8 + $0x54] sm:$0xff]
        %v939 = vld [vmem:[#allocation8 + $0x5c] sm:$0xf]
        %v940 = vld [vmem:[#allocation8 + $0x60] sm:$0xff]
        %v941 = vld [vmem:[#allocation8 + $0x68] sm:$0xf]
        %v942 = vld [vmem:[#allocation8 + $0x6c] sm:$0xff]
        %v943 = vld [vmem:[#allocation8 + $0x74] sm:$0xf]
        %v944 = vld [vmem:[#allocation8 + $0x78] sm:$0xff]
        %v945 = vld [vmem:[#allocation8 + $0x80] sm:$0xf]
        %v946 = vld [vmem:[#allocation8 + $0x84] sm:$0xff]
        %v947 = vld [vmem:[#allocation8 + $0x8c] sm:$0xf]
        %v948 = vld [vmem:[#allocation8 + $0x90] sm:$0xff]
        %v949 = vld [vmem:[#allocation8 + $0x98] sm:$0xf]
        %v950 = vld [vmem:[#allocation8 + $0x9c] sm:$0xff]
        %v951 = vld [vmem:[#allocation8 + $0xa4] sm:$0xf]
        %v952 = vld [vmem:[#allocation8 + $0xa8] sm:$0xff]
        %v953 = vld [vmem:[#allocation8 + $0xb0] sm:$0xf]
        %v954 = vld [vmem:[#allocation8 + $0xb4] sm:$0xff]
        %v955 = vld [vmem:[#allocation8 + $0xbc] sm:$0xf]
        %v988 = vunpack.c.l.b16 %v924
        %v989 = vunpack.c.h.b16 %v924
        %v990 = vunpack.c.l.b16 %v925
        %v991 = vunpack.c.l.b16 %v926
        %v992 = vunpack.c.h.b16 %v926
        %v993 = vunpack.c.l.b16 %v927
        %v994 = vunpack.c.l.b16 %v928
        %v995 = vunpack.c.h.b16 %v928
        %v996 = vunpack.c.l.b16 %v929
        %v997 = vunpack.c.l.b16 %v930
        %v998 = vunpack.c.h.b16 %v930
        %v999 = vunpack.c.l.b16 %v931
        %v1000 = vunpack.c.l.b16 %v932
        %v1001 = vunpack.c.h.b16 %v932
        %v1002 = vunpack.c.l.b16 %v933
        %v1003 = vunpack.c.l.b16 %v934
        %v1004 = vunpack.c.h.b16 %v934
        %v1005 = vunpack.c.l.b16 %v935
        %v1006 = vunpack.c.l.b16 %v936
        %v1007 = vunpack.c.h.b16 %v936
        %v1008 = vunpack.c.l.b16 %v937
        %v1009 = vunpack.c.l.b16 %v938
        %v1010 = vunpack.c.h.b16 %v938
        %v1011 = vunpack.c.l.b16 %v939
        %v1012 = vunpack.c.l.b16 %v940
        %v1013 = vunpack.c.h.b16 %v940
        %v1014 = vunpack.c.l.b16 %v941
        %v1015 = vunpack.c.l.b16 %v942
        %v1016 = vunpack.c.h.b16 %v942
        %v1017 = vunpack.c.l.b16 %v943
        %v1018 = vunpack.c.l.b16 %v944
        %v1019 = vunpack.c.h.b16 %v944
        %v1020 = vunpack.c.l.b16 %v945
        %v1021 = vunpack.c.l.b16 %v946
        %v1022 = vunpack.c.h.b16 %v946
        %v1023 = vunpack.c.l.b16 %v947
        %v1024 = vunpack.c.l.b16 %v948
        %v1025 = vunpack.c.h.b16 %v948
        %v1026 = vunpack.c.l.b16 %v949
        %v1027 = vunpack.c.l.b16 %v950
        %v1028 = vunpack.c.h.b16 %v950
        %v1029 = vunpack.c.l.b16 %v951
        %v1030 = vunpack.c.l.b16 %v952
        %v1031 = vunpack.c.h.b16 %v952
        %v1032 = vunpack.c.l.b16 %v953
        %v1033 = vunpack.c.l.b16 %v954
        %v1034 = vunpack.c.h.b16 %v954
        %v1035 = vunpack.c.l.b16 %v955
        %v1036 = vpack.c.b16 %v991, %v988
        %v1037 = vpack.c.b16 %v992, %v989
        %v1038 = vpack.c.b16 %v993, %v990
        %v1039 = vpack.c.b16 %v997, %v994
        %v1040 = vpack.c.b16 %v998, %v995
        %v1041 = vpack.c.b16 %v999, %v996
        %v1042 = vpack.c.b16 %v1003, %v1000
        %v1043 = vpack.c.b16 %v1004, %v1001
        %v1044 = vpack.c.b16 %v1005, %v1002
        %v1045 = vpack.c.b16 %v1009, %v1006
        %v1046 = vpack.c.b16 %v1010, %v1007
        %v1047 = vpack.c.b16 %v1011, %v1008
        %v1048 = vpack.c.b16 %v1015, %v1012
        %v1049 = vpack.c.b16 %v1016, %v1013
        %v1050 = vpack.c.b16 %v1017, %v1014
        %v1051 = vpack.c.b16 %v1021, %v1018
        %v1052 = vpack.c.b16 %v1022, %v1019
        %v1053 = vpack.c.b16 %v1023, %v1020
        %v1054 = vpack.c.b16 %v1027, %v1024
        %v1055 = vpack.c.b16 %v1028, %v1025
        %v1056 = vpack.c.b16 %v1029, %v1026
        %v1057 = vpack.c.b16 %v1033, %v1030
        %v1058 = vpack.c.b16 %v1034, %v1031
        %v1059 = vpack.c.b16 %v1035, %v1032
        %1084 = vmatpush.bf16.msra.mxu0 %v1057
        %1085 = vmatpush.bf16.msra.mxu0 %v1054
        %1086 = vmatpush.bf16.msra.mxu0 %v1051
        %1087 = vmatpush.bf16.msra.mxu0 %v1048
        %1088 = vmatpush.bf16.msra.mxu0 %v1045
        %1089 = vmatpush.bf16.msra.mxu0 %v1042
        %1090 = vmatpush.bf16.msra.mxu0 %v1039
        %1091 = vmatpush.bf16.msra.mxu0 %v1036
        %1092 = vmatmul.bf16.gmra.mxu0 %v916
        %v1093 = vpop.f32.mrf.mxu0
        %v1094 = vadd.f32 0.0, %v1093
        %v1095 = vpop.f32.mrf.mxu0
        %v1096 = vadd.f32 0.0, %v1095
        %1097 = vmatmul.bf16.gmra.mxu0 %v917
        %v1098 = vpop.f32.mrf.mxu0
        %v1099 = vadd.f32 0.0, %v1098
        %v1100 = vpop.f32.mrf.mxu0
        %v1101 = vadd.f32 0.0, %v1100
        %1102 = vmatmul.bf16.gmra.mxu0 %v918
        %v1103 = vpop.f32.mrf.mxu0
        %v1104 = vadd.f32 0.0, %v1103
        %v1105 = vpop.f32.mrf.mxu0
        %v1106 = vadd.f32 0.0, %v1105
        %1107 = vmatmul.bf16.gmra.mxu0 %v919
        %v1108 = vpop.f32.mrf.mxu0
        %v1109 = vadd.f32 0.0, %v1108
        %v1110 = vpop.f32.mrf.mxu0
        %v1111 = vadd.f32 0.0, %v1110
        %1112 = vmatmul.bf16.gmra.mxu0 %v920
        %v1113 = vpop.f32.mrf.mxu0
        %v1114 = vadd.f32 0.0, %v1113
        %v1115 = vpop.f32.mrf.mxu0
        %v1116 = vadd.f32 0.0, %v1115
        %1117 = vmatmul.bf16.gmra.mxu0 %v921
        %v1118 = vpop.f32.mrf.mxu0
        %v1119 = vadd.f32 0.0, %v1118
        %v1120 = vpop.f32.mrf.mxu0
        %v1121 = vadd.f32 0.0, %v1120
        %1122 = vmatmul.bf16.gmra.mxu0 %v922
        %v1123 = vpop.f32.mrf.mxu0
        %v1124 = vadd.f32 0.0, %v1123
        %v1125 = vpop.f32.mrf.mxu0
        %v1126 = vadd.f32 0.0, %v1125
        %1127 = vmatmul.bf16.gmra.mxu0 %v923
        %v1128 = vpop.f32.mrf.mxu0
        %v1129 = vadd.f32 0.0, %v1128
        %v1130 = vpop.f32.mrf.mxu0
        %v1131 = vadd.f32 0.0, %v1130
        %1132 = vdwg.mxu0
        %1133 = vmatpush.bf16.msra.mxu0 %v1058
        %1134 = vmatpush.bf16.msra.mxu0 %v1055
        %1135 = vmatpush.bf16.msra.mxu0 %v1052
        %1136 = vmatpush.bf16.msra.mxu0 %v1049
        %1137 = vmatpush.bf16.msra.mxu0 %v1046
        %1138 = vmatpush.bf16.msra.mxu0 %v1043
        %1139 = vmatpush.bf16.msra.mxu0 %v1040
        %1140 = vmatpush.bf16.msra.mxu0 %v1037
        %1141 = vmatmul.bf16.gmra.mxu0 %v916
        %v1142 = vpop.f32.mrf.mxu0
        %v1143 = vadd.f32 0.0, %v1142
        %v1144 = vpop.f32.mrf.mxu0
        %v1145 = vadd.f32 0.0, %v1144
        %1146 = vmatmul.bf16.gmra.mxu0 %v917
        %v1147 = vpop.f32.mrf.mxu0
        %v1148 = vadd.f32 0.0, %v1147
        %v1149 = vpop.f32.mrf.mxu0
        %v1150 = vadd.f32 0.0, %v1149
        %1151 = vmatmul.bf16.gmra.mxu0 %v918
        %v1152 = vpop.f32.mrf.mxu0
        %v1153 = vadd.f32 0.0, %v1152
        %v1154 = vpop.f32.mrf.mxu0
        %v1155 = vadd.f32 0.0, %v1154
        %1156 = vmatmul.bf16.gmra.mxu0 %v919
        %v1157 = vpop.f32.mrf.mxu0
        %v1158 = vadd.f32 0.0, %v1157
        %v1159 = vpop.f32.mrf.mxu0
        %v1160 = vadd.f32 0.0, %v1159
        %1161 = vmatmul.bf16.gmra.mxu0 %v920
        %v1162 = vpop.f32.mrf.mxu0
        %v1163 = vadd.f32 0.0, %v1162
        %v1164 = vpop.f32.mrf.mxu0
        %v1165 = vadd.f32 0.0, %v1164
        %1166 = vmatmul.bf16.gmra.mxu0 %v921
        %v1167 = vpop.f32.mrf.mxu0
        %v1168 = vadd.f32 0.0, %v1167
        %v1169 = vpop.f32.mrf.mxu0
        %v1170 = vadd.f32 0.0, %v1169
        %1171 = vmatmul.bf16.gmra.mxu0 %v922
        %v1172 = vpop.f32.mrf.mxu0
        %v1173 = vadd.f32 0.0, %v1172
        %v1174 = vpop.f32.mrf.mxu0
        %v1175 = vadd.f32 0.0, %v1174
        %1176 = vmatmul.bf16.gmra.mxu0 %v923
        %v1177 = vpop.f32.mrf.mxu0
        %v1178 = vadd.f32 0.0, %v1177
        %v1179 = vpop.f32.mrf.mxu0
        %v1180 = vadd.f32 0.0, %v1179
        %1181 = vdwg.mxu0
        %1182 = vmatpush.bf16.msra.mxu0 %v1059
        %1183 = vmatpush.bf16.msra.mxu0 %v1056
        %1184 = vmatpush.bf16.msra.mxu0 %v1053
        %1185 = vmatpush.bf16.msra.mxu0 %v1050
        %1186 = vmatpush.bf16.msra.mxu0 %v1047
        %1187 = vmatpush.bf16.msra.mxu0 %v1044
        %1188 = vmatpush.bf16.msra.mxu0 %v1041
        %1189 = vmatpush.bf16.msra.mxu0 %v1038
        %1190 = vmatmul.bf16.gmra.mxu0 %v916
        %v1191 = vpop.f32.mrf.mxu0
        %v1192 = vadd.f32 0.0, %v1191
        %v1193 = vpop.f32.mrf.mxu0
        %v1194 = vadd.f32 0.0, %v1193
        %1195 = vmatmul.bf16.gmra.mxu0 %v917
        %v1196 = vpop.f32.mrf.mxu0
        %v1197 = vadd.f32 0.0, %v1196
        %v1198 = vpop.f32.mrf.mxu0
        %v1199 = vadd.f32 0.0, %v1198
        %1200 = vmatmul.bf16.gmra.mxu0 %v918
        %v1201 = vpop.f32.mrf.mxu0
        %v1202 = vadd.f32 0.0, %v1201
        %v1203 = vpop.f32.mrf.mxu0
        %v1204 = vadd.f32 0.0, %v1203
        %1205 = vmatmul.bf16.gmra.mxu0 %v919
        %v1206 = vpop.f32.mrf.mxu0
        %v1207 = vadd.f32 0.0, %v1206
        %v1208 = vpop.f32.mrf.mxu0
        %v1209 = vadd.f32 0.0, %v1208
        %1210 = vmatmul.bf16.gmra.mxu0 %v920
        %v1211 = vpop.f32.mrf.mxu0
        %v1212 = vadd.f32 0.0, %v1211
        %v1213 = vpop.f32.mrf.mxu0
        %v1214 = vadd.f32 0.0, %v1213
        %1215 = vmatmul.bf16.gmra.mxu0 %v921
        %v1216 = vpop.f32.mrf.mxu0
        %v1217 = vadd.f32 0.0, %v1216
        %v1218 = vpop.f32.mrf.mxu0
        %v1219 = vadd.f32 0.0, %v1218
        %1220 = vmatmul.bf16.gmra.mxu0 %v922
        %v1221 = vpop.f32.mrf.mxu0
        %v1222 = vadd.f32 0.0, %v1221
        %v1223 = vpop.f32.mrf.mxu0
        %v1224 = vadd.f32 0.0, %v1223
        %1225 = vmatmul.bf16.gmra.mxu0 %v923
        %v1226 = vpop.f32.mrf.mxu0
        %v1227 = vadd.f32 0.0, %v1226
        %v1228 = vpop.f32.mrf.mxu0
        %v1229 = vadd.f32 0.0, %v1228
        %1230 = vdwg.mxu0
        %v1231 = vmul.f32 %v1094, 0.17677669
        %v1232 = vmul.f32 %v1096, 0.17677669
        %v1233 = vmul.f32 %v1099, 0.17677669
        %v1234 = vmul.f32 %v1101, 0.17677669
        %v1235 = vmul.f32 %v1104, 0.17677669
        %v1236 = vmul.f32 %v1106, 0.17677669
        %v1237 = vmul.f32 %v1109, 0.17677669
        %v1238 = vmul.f32 %v1111, 0.17677669
        %v1239 = vmul.f32 %v1114, 0.17677669
        %v1240 = vmul.f32 %v1116, 0.17677669
        %v1241 = vmul.f32 %v1119, 0.17677669
        %v1242 = vmul.f32 %v1121, 0.17677669
        %v1243 = vmul.f32 %v1124, 0.17677669
        %v1244 = vmul.f32 %v1126, 0.17677669
        %v1245 = vmul.f32 %v1129, 0.17677669
        %v1246 = vmul.f32 %v1131, 0.17677669
        %v1247 = vpack.c.bf16 %v1231, %v1231
        %v1248 = vpack.c.bf16 %v1232, %v1232
        %v1249 = vpack.c.bf16 %v1233, %v1233
        %v1250 = vpack.c.bf16 %v1234, %v1234
        %v1251 = vpack.c.bf16 %v1235, %v1235
        %v1252 = vpack.c.bf16 %v1236, %v1236
        %v1253 = vpack.c.bf16 %v1237, %v1237
        %v1254 = vpack.c.bf16 %v1238, %v1238
        %v1255 = vpack.c.bf16 %v1239, %v1239
        %v1256 = vpack.c.bf16 %v1240, %v1240
        %v1257 = vpack.c.bf16 %v1241, %v1241
        %v1258 = vpack.c.bf16 %v1242, %v1242
        %v1259 = vpack.c.bf16 %v1243, %v1243
        %v1260 = vpack.c.bf16 %v1244, %v1244
        %v1261 = vpack.c.bf16 %v1245, %v1245
        %v1262 = vpack.c.bf16 %v1246, %v1246
        %v1263 = vpack.c.bf16 %v1143, %v1143
        %v1264 = vpack.c.bf16 %v1145, %v1145
        %v1265 = vpack.c.bf16 %v1148, %v1148
        %v1266 = vpack.c.bf16 %v1150, %v1150
        %v1267 = vpack.c.bf16 %v1153, %v1153
        %v1268 = vpack.c.bf16 %v1155, %v1155
        %v1269 = vpack.c.bf16 %v1158, %v1158
        %v1270 = vpack.c.bf16 %v1160, %v1160
        %v1271 = vpack.c.bf16 %v1163, %v1163
        %v1272 = vpack.c.bf16 %v1165, %v1165
        %v1273 = vpack.c.bf16 %v1168, %v1168
        %v1274 = vpack.c.bf16 %v1170, %v1170
        %v1275 = vpack.c.bf16 %v1173, %v1173
        %v1276 = vpack.c.bf16 %v1175, %v1175
        %v1277 = vpack.c.bf16 %v1178, %v1178
        %v1278 = vpack.c.bf16 %v1180, %v1180
        %v1279 = vpack.c.bf16 %v1192, %v1192
        %v1280 = vpack.c.bf16 %v1194, %v1194
        %v1281 = vpack.c.bf16 %v1197, %v1197
        %v1282 = vpack.c.bf16 %v1199, %v1199
        %v1283 = vpack.c.bf16 %v1202, %v1202
        %v1284 = vpack.c.bf16 %v1204, %v1204
        %v1285 = vpack.c.bf16 %v1207, %v1207
        %v1286 = vpack.c.bf16 %v1209, %v1209
        %v1287 = vpack.c.bf16 %v1212, %v1212
        %v1288 = vpack.c.bf16 %v1214, %v1214
        %v1289 = vpack.c.bf16 %v1217, %v1217
        %v1290 = vpack.c.bf16 %v1219, %v1219
        %v1291 = vpack.c.bf16 %v1222, %v1222
        %v1292 = vpack.c.bf16 %v1224, %v1224
        %v1293 = vpack.c.bf16 %v1227, %v1227
        %v1294 = vpack.c.bf16 %v1229, %v1229
        %v1303 = vunpack.c.l.b16 %v1247
        %v1304 = vunpack.c.l.b16 %v1248
        %v1305 = vunpack.c.l.b16 %v1249
        %v1306 = vunpack.c.l.b16 %v1250
        %v1307 = vunpack.c.l.b16 %v1251
        %v1308 = vunpack.c.l.b16 %v1252
        %v1309 = vunpack.c.l.b16 %v1253
        %v1310 = vunpack.c.l.b16 %v1254
        %v1311 = vpack.c.b16 %v1304, %v1303
        %v1312 = vpack.c.b16 %v1306, %v1305
        %v1313 = vpack.c.b16 %v1308, %v1307
        %v1314 = vpack.c.b16 %v1310, %v1309
        %v1323 = vunpack.c.l.b16 %v1263
        %v1324 = vunpack.c.l.b16 %v1264
        %v1325 = vunpack.c.l.b16 %v1265
        %v1326 = vunpack.c.l.b16 %v1266
        %v1327 = vunpack.c.l.b16 %v1267
        %v1328 = vunpack.c.l.b16 %v1268
        %v1329 = vunpack.c.l.b16 %v1269
        %v1330 = vunpack.c.l.b16 %v1270
        %v1331 = vpack.c.b16 %v1324, %v1323
        %v1332 = vpack.c.b16 %v1326, %v1325
        %v1333 = vpack.c.b16 %v1328, %v1327
        %v1334 = vpack.c.b16 %v1330, %v1329
        %vm1335 = vcmask 261120
        %v1337 = vsel %vm1335, %v1311, 0
        %v1340 = vsel %vm1335, %v1312, 0
        %v1343 = vsel %vm1335, %v1313, 0
        %v1346 = vsel %vm1335, %v1314, 0
        %v1349 = vsel %vm1335, %v1331, 0
        %v1352 = vsel %vm1335, %v1332, 0
        %v1355 = vsel %vm1335, %v1333, 0
        %v1358 = vsel %vm1335, %v1334, 0
        %1360 = vmatpush.bf16.xpose.msra.mxu0 0
        %1361 = vmatpush.bf16.xpose.msra.mxu0 0
        %1362 = vmatpush.bf16.xpose.msra.mxu0 0
        %1363 = vmatpush.bf16.xpose.msra.mxu0 0
        %1364 = vmatpush.bf16.xpose.msra.mxu0 %v1358
        %1365 = vmatpush.bf16.xpose.msra.mxu0 %v1355
        %1366 = vmatpush.bf16.xpose.msra.mxu0 %v1352
        %1367 = vmatpush.bf16.xpose.msra.mxu0 %v1349
        %1368 = vmatmul.bf16.gmra.mxu0 %v1337
        %v1369 = vpop.f32.mrf.mxu0
        %v1370 = vadd.f32 0.0, %v1369
        %v1371 = vpop.f32.mrf.mxu0
        %v1372 = vadd.f32 0.0, %v1371
        %1373 = vmatmul.bf16.gmra.mxu0 %v1340
        %v1374 = vpop.f32.mrf.mxu0
        %v1375 = vadd.f32 0.0, %v1374
        %v1376 = vpop.f32.mrf.mxu0
        %v1377 = vadd.f32 0.0, %v1376
        %1378 = vmatmul.bf16.gmra.mxu0 %v1343
        %v1379 = vpop.f32.mrf.mxu0
        %v1380 = vadd.f32 0.0, %v1379
        %v1381 = vpop.f32.mrf.mxu0
        %v1382 = vadd.f32 0.0, %v1381
        %1383 = vmatmul.bf16.gmra.mxu0 %v1346
        %v1384 = vpop.f32.mrf.mxu0
        %v1385 = vadd.f32 0.0, %v1384
        %v1386 = vpop.f32.mrf.mxu0
        %v1387 = vadd.f32 0.0, %v1386
        %1388 = vdwg.mxu0
        %vm1389 = vcmask 523264
        %v1390 = vsel %vm1389, %v1370, -inf
        %1391 = vmax.xlane.f32.xlu0 %v1390
        %v1392 = vpop.xlane.xlu0 %1391
        %v1393 = vsel %vm1389, %v1372, -inf
        %1394 = vmax.xlane.f32.xlu0 %v1393
        %v1395 = vpop.xlane.xlu0 %1394
        %v1396 = vsel %vm1389, %v1375, -inf
        %1397 = vmax.xlane.f32.xlu0 %v1396
        %v1398 = vpop.xlane.xlu0 %1397
        %v1399 = vsel %vm1389, %v1377, -inf
        %1400 = vmax.xlane.f32.xlu0 %v1399
        %v1401 = vpop.xlane.xlu0 %1400
        %v1402 = vsel %vm1389, %v1380, -inf
        %1403 = vmax.xlane.f32.xlu0 %v1402
        %v1404 = vpop.xlane.xlu0 %1403
        %v1405 = vsel %vm1389, %v1382, -inf
        %1406 = vmax.xlane.f32.xlu0 %v1405
        %v1407 = vpop.xlane.xlu0 %1406
        %v1408 = vsel %vm1389, %v1385, -inf
        %1409 = vmax.xlane.f32.xlu0 %v1408
        %v1410 = vpop.xlane.xlu0 %1409
        %v1411 = vsel %vm1389, %v1387, -inf
        %1412 = vmax.xlane.f32.xlu0 %v1411
        %v1413 = vpop.xlane.xlu0 %1412
        %v1414 = vsub.f32 %v1370, %v1392
        %v1415 = vsub.f32 %v1372, %v1395
        %v1416 = vsub.f32 %v1375, %v1398
        %v1417 = vsub.f32 %v1377, %v1401
        %v1418 = vsub.f32 %v1380, %v1404
        %v1419 = vsub.f32 %v1382, %v1407
        %v1420 = vsub.f32 %v1385, %v1410
        %v1421 = vsub.f32 %v1387, %v1413
        %v1422 = vmul.f32 %v1414, 1.442695
        %v1423 = vpow.pop %v1422
        %v1424 = vmul.f32 %v1415, 1.442695
        %v1425 = vpow.pop %v1424
        %v1426 = vmul.f32 %v1416, 1.442695
        %v1427 = vpow.pop %v1426
        %v1428 = vmul.f32 %v1417, 1.442695
        %v1429 = vpow.pop %v1428
        %v1430 = vmul.f32 %v1418, 1.442695
        %v1431 = vpow.pop %v1430
        %v1432 = vmul.f32 %v1419, 1.442695
        %v1433 = vpow.pop %v1432
        %v1434 = vmul.f32 %v1420, 1.442695
        %v1435 = vpow.pop %v1434
        %v1436 = vmul.f32 %v1421, 1.442695
        %v1437 = vpow.pop %v1436
        %v1438 = vsel %vm1389, %v1423, 0.0
        %1439 = vadd.xlane.f32.xlu0 %v1438
        %v1440 = vpop.xlane.xlu0 %1439
        %v1441 = vsel %vm1389, %v1425, 0.0
        %1442 = vadd.xlane.f32.xlu0 %v1441
        %v1443 = vpop.xlane.xlu0 %1442
        %v1444 = vsel %vm1389, %v1427, 0.0
        %1445 = vadd.xlane.f32.xlu0 %v1444
        %v1446 = vpop.xlane.xlu0 %1445
        %v1447 = vsel %vm1389, %v1429, 0.0
        %1448 = vadd.xlane.f32.xlu0 %v1447
        %v1449 = vpop.xlane.xlu0 %1448
        %v1450 = vsel %vm1389, %v1431, 0.0
        %1451 = vadd.xlane.f32.xlu0 %v1450
        %v1452 = vpop.xlane.xlu0 %1451
        %v1453 = vsel %vm1389, %v1433, 0.0
        %1454 = vadd.xlane.f32.xlu0 %v1453
        %v1455 = vpop.xlane.xlu0 %1454
        %v1456 = vsel %vm1389, %v1435, 0.0
        %1457 = vadd.xlane.f32.xlu0 %v1456
        %v1458 = vpop.xlane.xlu0 %1457
        %v1459 = vsel %vm1389, %v1437, 0.0
        %1460 = vadd.xlane.f32.xlu0 %v1459
        %v1461 = vpop.xlane.xlu0 %1460
        %v1462 = vrcp.pop %v1440
        %v1463 = vrcp.pop %v1443
        %v1464 = vrcp.pop %v1446
        %v1465 = vrcp.pop %v1449
        %v1466 = vrcp.pop %v1452
        %v1467 = vrcp.pop %v1455
        %v1468 = vrcp.pop %v1458
        %v1469 = vrcp.pop %v1461
        %v1470 = vmul.f32 %v1423, %v1462
        %v1471 = vmul.f32 %v1425, %v1463
        %v1472 = vmul.f32 %v1427, %v1464
        %v1473 = vmul.f32 %v1429, %v1465
        %v1474 = vmul.f32 %v1431, %v1466
        %v1475 = vmul.f32 %v1433, %v1467
        %v1476 = vmul.f32 %v1435, %v1468
        %v1477 = vmul.f32 %v1437, %v1469
        %v1478 = vpack.c.bf16 %v1471, %v1470
        %v1479 = vpack.c.bf16 %v1473, %v1472
        %v1480 = vpack.c.bf16 %v1475, %v1474
        %v1481 = vpack.c.bf16 %v1477, %v1476
        %v1490 = vunpack.c.l.b16 %v1279
        %v1491 = vunpack.c.l.b16 %v1280
        %v1492 = vunpack.c.l.b16 %v1281
        %v1493 = vunpack.c.l.b16 %v1282
        %v1494 = vunpack.c.l.b16 %v1283
        %v1495 = vunpack.c.l.b16 %v1284
        %v1496 = vunpack.c.l.b16 %v1285
        %v1497 = vunpack.c.l.b16 %v1286
        %v1498 = vpack.c.b16 %v1491, %v1490
        %v1499 = vpack.c.b16 %v1493, %v1492
        %v1500 = vpack.c.b16 %v1495, %v1494
        %v1501 = vpack.c.b16 %v1497, %v1496
        %v1507 = vsel %vm1389, %v1478, 0
        %v1510 = vsel %vm1389, %v1479, 0
        %v1513 = vsel %vm1389, %v1480, 0
        %v1516 = vsel %vm1389, %v1481, 0
        %1518 = vmatpush.bf16.msra.mxu0 0
        %1519 = vmatpush.bf16.msra.mxu0 0
        %1520 = vmatpush.bf16.msra.mxu0 0
        %1521 = vmatpush.bf16.msra.mxu0 0
        %1522 = vmatpush.bf16.msra.mxu0 %v1501
        %1523 = vmatpush.bf16.msra.mxu0 %v1500
        %1524 = vmatpush.bf16.msra.mxu0 %v1499
        %1525 = vmatpush.bf16.msra.mxu0 %v1498
        %1526 = vmatmul.bf16.gmra.mxu0 %v1507
        %v1527 = vpop.f32.mrf.mxu0
        %v1528 = vadd.f32 0.0, %v1527
        %v1529 = vpop.f32.mrf.mxu0
        %v1530 = vadd.f32 0.0, %v1529
        %1531 = vmatmul.bf16.gmra.mxu0 %v1510
        %v1532 = vpop.f32.mrf.mxu0
        %v1533 = vadd.f32 0.0, %v1532
        %v1534 = vpop.f32.mrf.mxu0
        %v1535 = vadd.f32 0.0, %v1534
        %1536 = vmatmul.bf16.gmra.mxu0 %v1513
        %v1537 = vpop.f32.mrf.mxu0
        %v1538 = vadd.f32 0.0, %v1537
        %v1539 = vpop.f32.mrf.mxu0
        %v1540 = vadd.f32 0.0, %v1539
        %1541 = vmatmul.bf16.gmra.mxu0 %v1516
        %v1542 = vpop.f32.mrf.mxu0
        %v1543 = vadd.f32 0.0, %v1542
        %v1544 = vpop.f32.mrf.mxu0
        %v1545 = vadd.f32 0.0, %v1544
        %1546 = vdwg.mxu0
        %1547 = vst.msk [vmem:[#allocation2] sm:$0xff] %vm1335, %v1528
        %1548 = vst.msk [vmem:[#allocation2 + $0x8] sm:$0xff] %vm1335, %v1530
        %1549 = vst.msk [vmem:[#allocation2 + $0x10] sm:$0xff] %vm1335, %v1533
        %1550 = vst.msk [vmem:[#allocation2 + $0x18] sm:$0xff] %vm1335, %v1535
        %1551 = vst.msk [vmem:[#allocation2 + $0x20] sm:$0xff] %vm1335, %v1538
        %1552 = vst.msk [vmem:[#allocation2 + $0x28] sm:$0xff] %vm1335, %v1540
        %1553 = vst.msk [vmem:[#allocation2 + $0x30] sm:$0xff] %vm1335, %v1543
        %1554 = vst.msk [vmem:[#allocation2 + $0x38] sm:$0xff] %vm1335, %v1545
        %1555 = vrot.lane.b32.xlu0 %v1311, 96
        %v1556 = vpop.permute.xlu0 %1555
        %1557 = vrot.lane.b32.xlu0 %v1312, 96
        %v1558 = vpop.permute.xlu0 %1557
        %1559 = vrot.lane.b32.xlu0 %v1313, 96
        %v1560 = vpop.permute.xlu0 %1559
        %1561 = vrot.lane.b32.xlu0 %v1314, 96
        %v1562 = vpop.permute.xlu0 %1561
        %1563 = vrot.lane.b32.xlu0 %v1331, 96
        %v1564 = vpop.permute.xlu0 %1563
        %1565 = vrot.lane.b32.xlu0 %v1332, 96
        %v1566 = vpop.permute.xlu0 %1565
        %1567 = vrot.lane.b32.xlu0 %v1333, 96
        %v1568 = vpop.permute.xlu0 %1567
        %1569 = vrot.lane.b32.xlu0 %v1334, 96
        %v1570 = vpop.permute.xlu0 %1569
        %v1572 = vsel %vm1335, %v1556, 0
        %v1575 = vsel %vm1335, %v1558, 0
        %v1578 = vsel %vm1335, %v1560, 0
        %v1581 = vsel %vm1335, %v1562, 0
        %v1584 = vsel %vm1335, %v1564, 0
        %v1587 = vsel %vm1335, %v1566, 0
        %v1590 = vsel %vm1335, %v1568, 0
        %v1593 = vsel %vm1335, %v1570, 0
        %1595 = vmatpush.bf16.xpose.msra.mxu0 0
        %1596 = vmatpush.bf16.xpose.msra.mxu0 0
        %1597 = vmatpush.bf16.xpose.msra.mxu0 0
        %1598 = vmatpush.bf16.xpose.msra.mxu0 0
        %1599 = vmatpush.bf16.xpose.msra.mxu0 %v1593
        %1600 = vmatpush.bf16.xpose.msra.mxu0 %v1590
        %1601 = vmatpush.bf16.xpose.msra.mxu0 %v1587
        %1602 = vmatpush.bf16.xpose.msra.mxu0 %v1584
        %1603 = vmatmul.bf16.gmra.mxu0 %v1572
        %v1604 = vpop.f32.mrf.mxu0
        %v1605 = vadd.f32 0.0, %v1604
        %v1606 = vpop.f32.mrf.mxu0
        %v1607 = vadd.f32 0.0, %v1606
        %1608 = vmatmul.bf16.gmra.mxu0 %v1575
        %v1609 = vpop.f32.mrf.mxu0
        %v1610 = vadd.f32 0.0, %v1609
        %v1611 = vpop.f32.mrf.mxu0
        %v1612 = vadd.f32 0.0, %v1611
        %1613 = vmatmul.bf16.gmra.mxu0 %v1578
        %v1614 = vpop.f32.mrf.mxu0
        %v1615 = vadd.f32 0.0, %v1614
        %v1616 = vpop.f32.mrf.mxu0
        %v1617 = vadd.f32 0.0, %v1616
        %1618 = vmatmul.bf16.gmra.mxu0 %v1581
        %v1619 = vpop.f32.mrf.mxu0
        %v1620 = vadd.f32 0.0, %v1619
        %v1621 = vpop.f32.mrf.mxu0
        %v1622 = vadd.f32 0.0, %v1621
        %1623 = vdwg.mxu0
        %v1624 = vsel %vm1389, %v1605, -inf
        %1625 = vmax.xlane.f32.xlu0 %v1624
        %v1626 = vpop.xlane.xlu0 %1625
        %v1627 = vsel %vm1389, %v1607, -inf
        %1628 = vmax.xlane.f32.xlu0 %v1627
        %v1629 = vpop.xlane.xlu0 %1628
        %v1630 = vsel %vm1389, %v1610, -inf
        %1631 = vmax.xlane.f32.xlu0 %v1630
        %v1632 = vpop.xlane.xlu0 %1631
        %v1633 = vsel %vm1389, %v1612, -inf
        %1634 = vmax.xlane.f32.xlu0 %v1633
        %v1635 = vpop.xlane.xlu0 %1634
        %v1636 = vsel %vm1389, %v1615, -inf
        %1637 = vmax.xlane.f32.xlu0 %v1636
        %v1638 = vpop.xlane.xlu0 %1637
        %v1639 = vsel %vm1389, %v1617, -inf
        %1640 = vmax.xlane.f32.xlu0 %v1639
        %v1641 = vpop.xlane.xlu0 %1640
        %v1642 = vsel %vm1389, %v1620, -inf
        %1643 = vmax.xlane.f32.xlu0 %v1642
        %v1644 = vpop.xlane.xlu0 %1643
        %v1645 = vsel %vm1389, %v1622, -inf
        %1646 = vmax.xlane.f32.xlu0 %v1645
        %v1647 = vpop.xlane.xlu0 %1646
        %v1648 = vsub.f32 %v1605, %v1626
        %v1649 = vsub.f32 %v1607, %v1629
        %v1650 = vsub.f32 %v1610, %v1632
        %v1651 = vsub.f32 %v1612, %v1635
        %v1652 = vsub.f32 %v1615, %v1638
        %v1653 = vsub.f32 %v1617, %v1641
        %v1654 = vsub.f32 %v1620, %v1644
        %v1655 = vsub.f32 %v1622, %v1647
        %v1656 = vmul.f32 %v1648, 1.442695
        %v1657 = vpow.pop %v1656
        %v1658 = vmul.f32 %v1649, 1.442695
        %v1659 = vpow.pop %v1658
        %v1660 = vmul.f32 %v1650, 1.442695
        %v1661 = vpow.pop %v1660
        %v1662 = vmul.f32 %v1651, 1.442695
        %v1663 = vpow.pop %v1662
        %v1664 = vmul.f32 %v1652, 1.442695
        %v1665 = vpow.pop %v1664
        %v1666 = vmul.f32 %v1653, 1.442695
        %v1667 = vpow.pop %v1666
        %v1668 = vmul.f32 %v1654, 1.442695
        %v1669 = vpow.pop %v1668
        %v1670 = vmul.f32 %v1655, 1.442695
        %v1671 = vpow.pop %v1670
        %v1672 = vsel %vm1389, %v1657, 0.0
        %1673 = vadd.xlane.f32.xlu0 %v1672
        %v1674 = vpop.xlane.xlu0 %1673
        %v1675 = vsel %vm1389, %v1659, 0.0
        %1676 = vadd.xlane.f32.xlu0 %v1675
        %v1677 = vpop.xlane.xlu0 %1676
        %v1678 = vsel %vm1389, %v1661, 0.0
        %1679 = vadd.xlane.f32.xlu0 %v1678
        %v1680 = vpop.xlane.xlu0 %1679
        %v1681 = vsel %vm1389, %v1663, 0.0
        %1682 = vadd.xlane.f32.xlu0 %v1681
        %v1683 = vpop.xlane.xlu0 %1682
        %v1684 = vsel %vm1389, %v1665, 0.0
        %1685 = vadd.xlane.f32.xlu0 %v1684
        %v1686 = vpop.xlane.xlu0 %1685
        %v1687 = vsel %vm1389, %v1667, 0.0
        %1688 = vadd.xlane.f32.xlu0 %v1687
        %v1689 = vpop.xlane.xlu0 %1688
        %v1690 = vsel %vm1389, %v1669, 0.0
        %1691 = vadd.xlane.f32.xlu0 %v1690
        %v1692 = vpop.xlane.xlu0 %1691
        %v1693 = vsel %vm1389, %v1671, 0.0
        %1694 = vadd.xlane.f32.xlu0 %v1693
        %v1695 = vpop.xlane.xlu0 %1694
        %v1696 = vrcp.pop %v1674
        %v1697 = vrcp.pop %v1677
        %v1698 = vrcp.pop %v1680
        %v1699 = vrcp.pop %v1683
        %v1700 = vrcp.pop %v1686
        %v1701 = vrcp.pop %v1689
        %v1702 = vrcp.pop %v1692
        %v1703 = vrcp.pop %v1695
        %v1704 = vmul.f32 %v1657, %v1696
        %v1705 = vmul.f32 %v1659, %v1697
        %v1706 = vmul.f32 %v1661, %v1698
        %v1707 = vmul.f32 %v1663, %v1699
        %v1708 = vmul.f32 %v1665, %v1700
        %v1709 = vmul.f32 %v1667, %v1701
        %v1710 = vmul.f32 %v1669, %v1702
        %v1711 = vmul.f32 %v1671, %v1703
        %v1712 = vpack.c.bf16 %v1705, %v1704
        %v1713 = vpack.c.bf16 %v1707, %v1706
        %v1714 = vpack.c.bf16 %v1709, %v1708
        %v1715 = vpack.c.bf16 %v1711, %v1710
        %1716 = vrot.lane.b32.xlu0 %v1498, 96
        %v1717 = vpop.permute.xlu0 %1716
        %1718 = vrot.lane.b32.xlu0 %v1499, 96
        %v1719 = vpop.permute.xlu0 %1718
        %1720 = vrot.lane.b32.xlu0 %v1500, 96
        %v1721 = vpop.permute.xlu0 %1720
        %1722 = vrot.lane.b32.xlu0 %v1501, 96
        %v1723 = vpop.permute.xlu0 %1722
        %v1729 = vsel %vm1389, %v1712, 0
        %v1732 = vsel %vm1389, %v1713, 0
        %v1735 = vsel %vm1389, %v1714, 0
        %v1738 = vsel %vm1389, %v1715, 0
        %1740 = vmatpush.bf16.msra.mxu0 0
        %1741 = vmatpush.bf16.msra.mxu0 0
        %1742 = vmatpush.bf16.msra.mxu0 0
        %1743 = vmatpush.bf16.msra.mxu0 0
        %1744 = vmatpush.bf16.msra.mxu0 %v1723
        %1745 = vmatpush.bf16.msra.mxu0 %v1721
        %1746 = vmatpush.bf16.msra.mxu0 %v1719
        %1747 = vmatpush.bf16.msra.mxu0 %v1717
        %1748 = vmatmul.bf16.gmra.mxu0 %v1729
        %v1749 = vpop.f32.mrf.mxu0
        %v1750 = vadd.f32 0.0, %v1749
        %v1751 = vpop.f32.mrf.mxu0
        %v1752 = vadd.f32 0.0, %v1751
        %1753 = vmatmul.bf16.gmra.mxu0 %v1732
        %v1754 = vpop.f32.mrf.mxu0
        %v1755 = vadd.f32 0.0, %v1754
        %v1756 = vpop.f32.mrf.mxu0
        %v1757 = vadd.f32 0.0, %v1756
        %1758 = vmatmul.bf16.gmra.mxu0 %v1735
        %v1759 = vpop.f32.mrf.mxu0
        %v1760 = vadd.f32 0.0, %v1759
        %v1761 = vpop.f32.mrf.mxu0
        %v1762 = vadd.f32 0.0, %v1761
        %1763 = vmatmul.bf16.gmra.mxu0 %v1738
        %v1764 = vpop.f32.mrf.mxu0
        %v1765 = vadd.f32 0.0, %v1764
        %v1766 = vpop.f32.mrf.mxu0
        %v1767 = vadd.f32 0.0, %v1766
        %1768 = vdwg.mxu0
        %1777 = vrot.lane.b32.xlu0 %v1750, 32
        %v1778 = vpop.permute.xlu0 %1777
        %1779 = vrot.lane.b32.xlu0 %v1752, 32
        %v1780 = vpop.permute.xlu0 %1779
        %1781 = vrot.lane.b32.xlu0 %v1755, 32
        %v1782 = vpop.permute.xlu0 %1781
        %1783 = vrot.lane.b32.xlu0 %v1757, 32
        %v1784 = vpop.permute.xlu0 %1783
        %1785 = vrot.lane.b32.xlu0 %v1760, 32
        %v1786 = vpop.permute.xlu0 %1785
        %1787 = vrot.lane.b32.xlu0 %v1762, 32
        %v1788 = vpop.permute.xlu0 %1787
        %1789 = vrot.lane.b32.xlu0 %v1765, 32
        %v1790 = vpop.permute.xlu0 %1789
        %1791 = vrot.lane.b32.xlu0 %v1767, 32
        %v1792 = vpop.permute.xlu0 %1791
        %vm1801 = vcmask 523520
        %1802 = vst.msk [vmem:[#allocation2] sm:$0xff] %vm1801, %v1778
        %1803 = vst.msk [vmem:[#allocation2 + $0x8] sm:$0xff] %vm1801, %v1780
        %1804 = vst.msk [vmem:[#allocation2 + $0x10] sm:$0xff] %vm1801, %v1782
        %1805 = vst.msk [vmem:[#allocation2 + $0x18] sm:$0xff] %vm1801, %v1784
        %1806 = vst.msk [vmem:[#allocation2 + $0x20] sm:$0xff] %vm1801, %v1786
        %1807 = vst.msk [vmem:[#allocation2 + $0x28] sm:$0xff] %vm1801, %v1788
        %1808 = vst.msk [vmem:[#allocation2 + $0x30] sm:$0xff] %vm1801, %v1790
        %1809 = vst.msk [vmem:[#allocation2 + $0x38] sm:$0xff] %vm1801, %v1792
        %1810 = vrot.lane.b32.xlu0 %v1311, 64
        %v1811 = vpop.permute.xlu0 %1810
        %1812 = vrot.lane.b32.xlu0 %v1312, 64
        %v1813 = vpop.permute.xlu0 %1812
        %1814 = vrot.lane.b32.xlu0 %v1313, 64
        %v1815 = vpop.permute.xlu0 %1814
        %1816 = vrot.lane.b32.xlu0 %v1314, 64
        %v1817 = vpop.permute.xlu0 %1816
        %1818 = vrot.lane.b32.xlu0 %v1331, 64
        %v1819 = vpop.permute.xlu0 %1818
        %1820 = vrot.lane.b32.xlu0 %v1332, 64
        %v1821 = vpop.permute.xlu0 %1820
        %1822 = vrot.lane.b32.xlu0 %v1333, 64
        %v1823 = vpop.permute.xlu0 %1822
        %1824 = vrot.lane.b32.xlu0 %v1334, 64
        %v1825 = vpop.permute.xlu0 %1824
        %v1827 = vsel %vm1335, %v1811, 0
        %v1830 = vsel %vm1335, %v1813, 0
        %v1833 = vsel %vm1335, %v1815, 0
        %v1836 = vsel %vm1335, %v1817, 0
        %v1839 = vsel %vm1335, %v1819, 0
        %v1842 = vsel %vm1335, %v1821, 0
        %v1845 = vsel %vm1335, %v1823, 0
        %v1848 = vsel %vm1335, %v1825, 0
        %1850 = vmatpush.bf16.xpose.msra.mxu0 0
        %1851 = vmatpush.bf16.xpose.msra.mxu0 0
        %1852 = vmatpush.bf16.xpose.msra.mxu0 0
        %1853 = vmatpush.bf16.xpose.msra.mxu0 0
        %1854 = vmatpush.bf16.xpose.msra.mxu0 %v1848
        %1855 = vmatpush.bf16.xpose.msra.mxu0 %v1845
        %1856 = vmatpush.bf16.xpose.msra.mxu0 %v1842
        %1857 = vmatpush.bf16.xpose.msra.mxu0 %v1839
        %1858 = vmatmul.bf16.gmra.mxu0 %v1827
        %v1859 = vpop.f32.mrf.mxu0
        %v1860 = vadd.f32 0.0, %v1859
        %v1861 = vpop.f32.mrf.mxu0
        %v1862 = vadd.f32 0.0, %v1861
        %1863 = vmatmul.bf16.gmra.mxu0 %v1830
        %v1864 = vpop.f32.mrf.mxu0
        %v1865 = vadd.f32 0.0, %v1864
        %v1866 = vpop.f32.mrf.mxu0
        %v1867 = vadd.f32 0.0, %v1866
        %1868 = vmatmul.bf16.gmra.mxu0 %v1833
        %v1869 = vpop.f32.mrf.mxu0
        %v1870 = vadd.f32 0.0, %v1869
        %v1871 = vpop.f32.mrf.mxu0
        %v1872 = vadd.f32 0.0, %v1871
        %1873 = vmatmul.bf16.gmra.mxu0 %v1836
        %v1874 = vpop.f32.mrf.mxu0
        %v1875 = vadd.f32 0.0, %v1874
        %v1876 = vpop.f32.mrf.mxu0
        %v1877 = vadd.f32 0.0, %v1876
        %1878 = vdwg.mxu0
        %v1879 = vsel %vm1389, %v1860, -inf
        %1880 = vmax.xlane.f32.xlu0 %v1879
        %v1881 = vpop.xlane.xlu0 %1880
        %v1882 = vsel %vm1389, %v1862, -inf
        %1883 = vmax.xlane.f32.xlu0 %v1882
        %v1884 = vpop.xlane.xlu0 %1883
        %v1885 = vsel %vm1389, %v1865, -inf
        %1886 = vmax.xlane.f32.xlu0 %v1885
        %v1887 = vpop.xlane.xlu0 %1886
        %v1888 = vsel %vm1389, %v1867, -inf
        %1889 = vmax.xlane.f32.xlu0 %v1888
        %v1890 = vpop.xlane.xlu0 %1889
        %v1891 = vsel %vm1389, %v1870, -inf
        %1892 = vmax.xlane.f32.xlu0 %v1891
        %v1893 = vpop.xlane.xlu0 %1892
        %v1894 = vsel %vm1389, %v1872, -inf
        %1895 = vmax.xlane.f32.xlu0 %v1894
        %v1896 = vpop.xlane.xlu0 %1895
        %v1897 = vsel %vm1389, %v1875, -inf
        %1898 = vmax.xlane.f32.xlu0 %v1897
        %v1899 = vpop.xlane.xlu0 %1898
        %v1900 = vsel %vm1389, %v1877, -inf
        %1901 = vmax.xlane.f32.xlu0 %v1900
        %v1902 = vpop.xlane.xlu0 %1901
        %v1903 = vsub.f32 %v1860, %v1881
        %v1904 = vsub.f32 %v1862, %v1884
        %v1905 = vsub.f32 %v1865, %v1887
        %v1906 = vsub.f32 %v1867, %v1890
        %v1907 = vsub.f32 %v1870, %v1893
        %v1908 = vsub.f32 %v1872, %v1896
        %v1909 = vsub.f32 %v1875, %v1899
        %v1910 = vsub.f32 %v1877, %v1902
        %v1911 = vmul.f32 %v1903, 1.442695
        %v1912 = vpow.pop %v1911
        %v1913 = vmul.f32 %v1904, 1.442695
        %v1914 = vpow.pop %v1913
        %v1915 = vmul.f32 %v1905, 1.442695
        %v1916 = vpow.pop %v1915
        %v1917 = vmul.f32 %v1906, 1.442695
        %v1918 = vpow.pop %v1917
        %v1919 = vmul.f32 %v1907, 1.442695
        %v1920 = vpow.pop %v1919
        %v1921 = vmul.f32 %v1908, 1.442695
        %v1922 = vpow.pop %v1921
        %v1923 = vmul.f32 %v1909, 1.442695
        %v1924 = vpow.pop %v1923
        %v1925 = vmul.f32 %v1910, 1.442695
        %v1926 = vpow.pop %v1925
        %v1927 = vsel %vm1389, %v1912, 0.0
        %1928 = vadd.xlane.f32.xlu0 %v1927
        %v1929 = vpop.xlane.xlu0 %1928
        %v1930 = vsel %vm1389, %v1914, 0.0
        %1931 = vadd.xlane.f32.xlu0 %v1930
        %v1932 = vpop.xlane.xlu0 %1931
        %v1933 = vsel %vm1389, %v1916, 0.0
        %1934 = vadd.xlane.f32.xlu0 %v1933
        %v1935 = vpop.xlane.xlu0 %1934
        %v1936 = vsel %vm1389, %v1918, 0.0
        %1937 = vadd.xlane.f32.xlu0 %v1936
        %v1938 = vpop.xlane.xlu0 %1937
        %v1939 = vsel %vm1389, %v1920, 0.0
        %1940 = vadd.xlane.f32.xlu0 %v1939
        %v1941 = vpop.xlane.xlu0 %1940
        %v1942 = vsel %vm1389, %v1922, 0.0
        %1943 = vadd.xlane.f32.xlu0 %v1942
        %v1944 = vpop.xlane.xlu0 %1943
        %v1945 = vsel %vm1389, %v1924, 0.0
        %1946 = vadd.xlane.f32.xlu0 %v1945
        %v1947 = vpop.xlane.xlu0 %1946
        %v1948 = vsel %vm1389, %v1926, 0.0
        %1949 = vadd.xlane.f32.xlu0 %v1948
        %v1950 = vpop.xlane.xlu0 %1949
        %v1951 = vrcp.pop %v1929
        %v1952 = vrcp.pop %v1932
        %v1953 = vrcp.pop %v1935
        %v1954 = vrcp.pop %v1938
        %v1955 = vrcp.pop %v1941
        %v1956 = vrcp.pop %v1944
        %v1957 = vrcp.pop %v1947
        %v1958 = vrcp.pop %v1950
        %v1959 = vmul.f32 %v1912, %v1951
        %v1960 = vmul.f32 %v1914, %v1952
        %v1961 = vmul.f32 %v1916, %v1953
        %v1962 = vmul.f32 %v1918, %v1954
        %v1963 = vmul.f32 %v1920, %v1955
        %v1964 = vmul.f32 %v1922, %v1956
        %v1965 = vmul.f32 %v1924, %v1957
        %v1966 = vmul.f32 %v1926, %v1958
        %v1967 = vpack.c.bf16 %v1960, %v1959
        %v1968 = vpack.c.bf16 %v1962, %v1961
        %v1969 = vpack.c.bf16 %v1964, %v1963
        %v1970 = vpack.c.bf16 %v1966, %v1965
        %1971 = vrot.lane.b32.xlu0 %v1498, 64
        %v1972 = vpop.permute.xlu0 %1971
        %1973 = vrot.lane.b32.xlu0 %v1499, 64
        %v1974 = vpop.permute.xlu0 %1973
        %1975 = vrot.lane.b32.xlu0 %v1500, 64
        %v1976 = vpop.permute.xlu0 %1975
        %1977 = vrot.lane.b32.xlu0 %v1501, 64
        %v1978 = vpop.permute.xlu0 %1977
        %v1984 = vsel %vm1389, %v1967, 0
        %v1987 = vsel %vm1389, %v1968, 0
        %v1990 = vsel %vm1389, %v1969, 0
        %v1993 = vsel %vm1389, %v1970, 0
        %1995 = vmatpush.bf16.msra.mxu0 0
        %1996 = vmatpush.bf16.msra.mxu0 0
        %1997 = vmatpush.bf16.msra.mxu0 0
        %1998 = vmatpush.bf16.msra.mxu0 0
        %1999 = vmatpush.bf16.msra.mxu0 %v1978
        %2000 = vmatpush.bf16.msra.mxu0 %v1976
        %2001 = vmatpush.bf16.msra.mxu0 %v1974
        %2002 = vmatpush.bf16.msra.mxu0 %v1972
        %2003 = vmatmul.bf16.gmra.mxu0 %v1984
        %v2004 = vpop.f32.mrf.mxu0
        %v2005 = vadd.f32 0.0, %v2004
        %v2006 = vpop.f32.mrf.mxu0
        %v2007 = vadd.f32 0.0, %v2006
        %2008 = vmatmul.bf16.gmra.mxu0 %v1987
        %v2009 = vpop.f32.mrf.mxu0
        %v2010 = vadd.f32 0.0, %v2009
        %v2011 = vpop.f32.mrf.mxu0
        %v2012 = vadd.f32 0.0, %v2011
        %2013 = vmatmul.bf16.gmra.mxu0 %v1990
        %v2014 = vpop.f32.mrf.mxu0
        %v2015 = vadd.f32 0.0, %v2014
        %v2016 = vpop.f32.mrf.mxu0
        %v2017 = vadd.f32 0.0, %v2016
        %2018 = vmatmul.bf16.gmra.mxu0 %v1993
        %v2019 = vpop.f32.mrf.mxu0
        %v2020 = vadd.f32 0.0, %v2019
        %v2021 = vpop.f32.mrf.mxu0
        %v2022 = vadd.f32 0.0, %v2021
        %2023 = vdwg.mxu0
        %2032 = vrot.lane.b32.xlu0 %v2005, 64
        %v2033 = vpop.permute.xlu0 %2032
        %2034 = vrot.lane.b32.xlu0 %v2007, 64
        %v2035 = vpop.permute.xlu0 %2034
        %2036 = vrot.lane.b32.xlu0 %v2010, 64
        %v2037 = vpop.permute.xlu0 %2036
        %2038 = vrot.lane.b32.xlu0 %v2012, 64
        %v2039 = vpop.permute.xlu0 %2038
        %2040 = vrot.lane.b32.xlu0 %v2015, 64
        %v2041 = vpop.permute.xlu0 %2040
        %2042 = vrot.lane.b32.xlu0 %v2017, 64
        %v2043 = vpop.permute.xlu0 %2042
        %2044 = vrot.lane.b32.xlu0 %v2020, 64
        %v2045 = vpop.permute.xlu0 %2044
        %2046 = vrot.lane.b32.xlu0 %v2022, 64
        %v2047 = vpop.permute.xlu0 %2046
        %vm2056 = vcmask 785920
        %2057 = vst.msk [vmem:[#allocation2] sm:$0xff] %vm2056, %v2033
        %2058 = vst.msk [vmem:[#allocation2 + $0x8] sm:$0xff] %vm2056, %v2035
        %2059 = vst.msk [vmem:[#allocation2 + $0x10] sm:$0xff] %vm2056, %v2037
        %2060 = vst.msk [vmem:[#allocation2 + $0x18] sm:$0xff] %vm2056, %v2039
        %2061 = vst.msk [vmem:[#allocation2 + $0x20] sm:$0xff] %vm2056, %v2041
        %2062 = vst.msk [vmem:[#allocation2 + $0x28] sm:$0xff] %vm2056, %v2043
        %2063 = vst.msk [vmem:[#allocation2 + $0x30] sm:$0xff] %vm2056, %v2045
        %2064 = vst.msk [vmem:[#allocation2 + $0x38] sm:$0xff] %vm2056, %v2047
        %2065 = vrot.lane.b32.xlu0 %v1311, 32
        %v2066 = vpop.permute.xlu0 %2065
        %2067 = vrot.lane.b32.xlu0 %v1312, 32
        %v2068 = vpop.permute.xlu0 %2067
        %2069 = vrot.lane.b32.xlu0 %v1313, 32
        %v2070 = vpop.permute.xlu0 %2069
        %2071 = vrot.lane.b32.xlu0 %v1314, 32
        %v2072 = vpop.permute.xlu0 %2071
        %2073 = vrot.lane.b32.xlu0 %v1331, 32
        %v2074 = vpop.permute.xlu0 %2073
        %2075 = vrot.lane.b32.xlu0 %v1332, 32
        %v2076 = vpop.permute.xlu0 %2075
        %2077 = vrot.lane.b32.xlu0 %v1333, 32
        %v2078 = vpop.permute.xlu0 %2077
        %2079 = vrot.lane.b32.xlu0 %v1334, 32
        %v2080 = vpop.permute.xlu0 %2079
        %v2082 = vsel %vm1335, %v2066, 0
        %v2085 = vsel %vm1335, %v2068, 0
        %v2088 = vsel %vm1335, %v2070, 0
        %v2091 = vsel %vm1335, %v2072, 0
        %v2094 = vsel %vm1335, %v2074, 0
        %v2097 = vsel %vm1335, %v2076, 0
        %v2100 = vsel %vm1335, %v2078, 0
        %v2103 = vsel %vm1335, %v2080, 0
        %2105 = vmatpush.bf16.xpose.msra.mxu0 0
        %2106 = vmatpush.bf16.xpose.msra.mxu0 0
        %2107 = vmatpush.bf16.xpose.msra.mxu0 0
        %2108 = vmatpush.bf16.xpose.msra.mxu0 0
        %2109 = vmatpush.bf16.xpose.msra.mxu0 %v2103
        %2110 = vmatpush.bf16.xpose.msra.mxu0 %v2100
        %2111 = vmatpush.bf16.xpose.msra.mxu0 %v2097
        %2112 = vmatpush.bf16.xpose.msra.mxu0 %v2094
        %2113 = vmatmul.bf16.gmra.mxu0 %v2082
        %v2114 = vpop.f32.mrf.mxu0
        %v2115 = vadd.f32 0.0, %v2114
        %v2116 = vpop.f32.mrf.mxu0
        %v2117 = vadd.f32 0.0, %v2116
        %2118 = vmatmul.bf16.gmra.mxu0 %v2085
        %v2119 = vpop.f32.mrf.mxu0
        %v2120 = vadd.f32 0.0, %v2119
        %v2121 = vpop.f32.mrf.mxu0
        %v2122 = vadd.f32 0.0, %v2121
        %2123 = vmatmul.bf16.gmra.mxu0 %v2088
        %v2124 = vpop.f32.mrf.mxu0
        %v2125 = vadd.f32 0.0, %v2124
        %v2126 = vpop.f32.mrf.mxu0
        %v2127 = vadd.f32 0.0, %v2126
        %2128 = vmatmul.bf16.gmra.mxu0 %v2091
        %v2129 = vpop.f32.mrf.mxu0
        %v2130 = vadd.f32 0.0, %v2129
        %v2131 = vpop.f32.mrf.mxu0
        %v2132 = vadd.f32 0.0, %v2131
        %2133 = vdwg.mxu0
        %v2134 = vsel %vm1389, %v2115, -inf
        %2135 = vmax.xlane.f32.xlu0 %v2134
        %v2136 = vpop.xlane.xlu0 %2135
        %v2137 = vsel %vm1389, %v2117, -inf
        %2138 = vmax.xlane.f32.xlu0 %v2137
        %v2139 = vpop.xlane.xlu0 %2138
        %v2140 = vsel %vm1389, %v2120, -inf
        %2141 = vmax.xlane.f32.xlu0 %v2140
        %v2142 = vpop.xlane.xlu0 %2141
        %v2143 = vsel %vm1389, %v2122, -inf
        %2144 = vmax.xlane.f32.xlu0 %v2143
        %v2145 = vpop.xlane.xlu0 %2144
        %v2146 = vsel %vm1389, %v2125, -inf
        %2147 = vmax.xlane.f32.xlu0 %v2146
        %v2148 = vpop.xlane.xlu0 %2147
        %v2149 = vsel %vm1389, %v2127, -inf
        %2150 = vmax.xlane.f32.xlu0 %v2149
        %v2151 = vpop.xlane.xlu0 %2150
        %v2152 = vsel %vm1389, %v2130, -inf
        %2153 = vmax.xlane.f32.xlu0 %v2152
        %v2154 = vpop.xlane.xlu0 %2153
        %v2155 = vsel %vm1389, %v2132, -inf
        %2156 = vmax.xlane.f32.xlu0 %v2155
        %v2157 = vpop.xlane.xlu0 %2156
        %v2158 = vsub.f32 %v2115, %v2136
        %v2159 = vsub.f32 %v2117, %v2139
        %v2160 = vsub.f32 %v2120, %v2142
        %v2161 = vsub.f32 %v2122, %v2145
        %v2162 = vsub.f32 %v2125, %v2148
        %v2163 = vsub.f32 %v2127, %v2151
        %v2164 = vsub.f32 %v2130, %v2154
        %v2165 = vsub.f32 %v2132, %v2157
        %v2166 = vmul.f32 %v2158, 1.442695
        %v2167 = vpow.pop %v2166
        %v2168 = vmul.f32 %v2159, 1.442695
        %v2169 = vpow.pop %v2168
        %v2170 = vmul.f32 %v2160, 1.442695
        %v2171 = vpow.pop %v2170
        %v2172 = vmul.f32 %v2161, 1.442695
        %v2173 = vpow.pop %v2172
        %v2174 = vmul.f32 %v2162, 1.442695
        %v2175 = vpow.pop %v2174
        %v2176 = vmul.f32 %v2163, 1.442695
        %v2177 = vpow.pop %v2176
        %v2178 = vmul.f32 %v2164, 1.442695
        %v2179 = vpow.pop %v2178
        %v2180 = vmul.f32 %v2165, 1.442695
        %v2181 = vpow.pop %v2180
        %v2182 = vsel %vm1389, %v2167, 0.0
        %2183 = vadd.xlane.f32.xlu0 %v2182
        %v2184 = vpop.xlane.xlu0 %2183
        %v2185 = vsel %vm1389, %v2169, 0.0
        %2186 = vadd.xlane.f32.xlu0 %v2185
        %v2187 = vpop.xlane.xlu0 %2186
        %v2188 = vsel %vm1389, %v2171, 0.0
        %2189 = vadd.xlane.f32.xlu0 %v2188
        %v2190 = vpop.xlane.xlu0 %2189
        %v2191 = vsel %vm1389, %v2173, 0.0
        %2192 = vadd.xlane.f32.xlu0 %v2191
        %v2193 = vpop.xlane.xlu0 %2192
        %v2194 = vsel %vm1389, %v2175, 0.0
        %2195 = vadd.xlane.f32.xlu0 %v2194
        %v2196 = vpop.xlane.xlu0 %2195
        %v2197 = vsel %vm1389, %v2177, 0.0
        %2198 = vadd.xlane.f32.xlu0 %v2197
        %v2199 = vpop.xlane.xlu0 %2198
        %v2200 = vsel %vm1389, %v2179, 0.0
        %2201 = vadd.xlane.f32.xlu0 %v2200
        %v2202 = vpop.xlane.xlu0 %2201
        %v2203 = vsel %vm1389, %v2181, 0.0
        %2204 = vadd.xlane.f32.xlu0 %v2203
        %v2205 = vpop.xlane.xlu0 %2204
        %v2206 = vrcp.pop %v2184
        %v2207 = vrcp.pop %v2187
        %v2208 = vrcp.pop %v2190
        %v2209 = vrcp.pop %v2193
        %v2210 = vrcp.pop %v2196
        %v2211 = vrcp.pop %v2199
        %v2212 = vrcp.pop %v2202
        %v2213 = vrcp.pop %v2205
        %v2214 = vmul.f32 %v2167, %v2206
        %v2215 = vmul.f32 %v2169, %v2207
        %v2216 = vmul.f32 %v2171, %v2208
        %v2217 = vmul.f32 %v2173, %v2209
        %v2218 = vmul.f32 %v2175, %v2210
        %v2219 = vmul.f32 %v2177, %v2211
        %v2220 = vmul.f32 %v2179, %v2212
        %v2221 = vmul.f32 %v2181, %v2213
        %v2222 = vpack.c.bf16 %v2215, %v2214
        %v2223 = vpack.c.bf16 %v2217, %v2216
        %v2224 = vpack.c.bf16 %v2219, %v2218
        %v2225 = vpack.c.bf16 %v2221, %v2220
        %2226 = vrot.lane.b32.xlu0 %v1498, 32
        %v2227 = vpop.permute.xlu0 %2226
        %2228 = vrot.lane.b32.xlu0 %v1499, 32
        %v2229 = vpop.permute.xlu0 %2228
        %2230 = vrot.lane.b32.xlu0 %v1500, 32
        %v2231 = vpop.permute.xlu0 %2230
        %2232 = vrot.lane.b32.xlu0 %v1501, 32
        %v2233 = vpop.permute.xlu0 %2232
        %v2239 = vsel %vm1389, %v2222, 0
        %v2242 = vsel %vm1389, %v2223, 0
        %v2245 = vsel %vm1389, %v2224, 0
        %v2248 = vsel %vm1389, %v2225, 0
        %2250 = vmatpush.bf16.msra.mxu0 0
        %2251 = vmatpush.bf16.msra.mxu0 0
        %2252 = vmatpush.bf16.msra.mxu0 0
        %2253 = vmatpush.bf16.msra.mxu0 0
        %2254 = vmatpush.bf16.msra.mxu0 %v2233
        %2255 = vmatpush.bf16.msra.mxu0 %v2231
        %2256 = vmatpush.bf16.msra.mxu0 %v2229
        %2257 = vmatpush.bf16.msra.mxu0 %v2227
        %2258 = vmatmul.bf16.gmra.mxu0 %v2239
        %v2259 = vpop.f32.mrf.mxu0
        %v2260 = vadd.f32 0.0, %v2259
        %v2261 = vpop.f32.mrf.mxu0
        %v2262 = vadd.f32 0.0, %v2261
        %2263 = vmatmul.bf16.gmra.mxu0 %v2242
        %v2264 = vpop.f32.mrf.mxu0
        %v2265 = vadd.f32 0.0, %v2264
        %v2266 = vpop.f32.mrf.mxu0
        %v2267 = vadd.f32 0.0, %v2266
        %2268 = vmatmul.bf16.gmra.mxu0 %v2245
        %v2269 = vpop.f32.mrf.mxu0
        %v2270 = vadd.f32 0.0, %v2269
        %v2271 = vpop.f32.mrf.mxu0
        %v2272 = vadd.f32 0.0, %v2271
        %2273 = vmatmul.bf16.gmra.mxu0 %v2248
        %v2274 = vpop.f32.mrf.mxu0
        %v2275 = vadd.f32 0.0, %v2274
        %v2276 = vpop.f32.mrf.mxu0
        %v2277 = vadd.f32 0.0, %v2276
        %2278 = vdwg.mxu0
        %2287 = vrot.lane.b32.xlu0 %v2260, 96
        %v2288 = vpop.permute.xlu0 %2287
        %2289 = vrot.lane.b32.xlu0 %v2262, 96
        %v2290 = vpop.permute.xlu0 %2289
        %2291 = vrot.lane.b32.xlu0 %v2265, 96
        %v2292 = vpop.permute.xlu0 %2291
        %2293 = vrot.lane.b32.xlu0 %v2267, 96
        %v2294 = vpop.permute.xlu0 %2293
        %2295 = vrot.lane.b32.xlu0 %v2270, 96
        %v2296 = vpop.permute.xlu0 %2295
        %2297 = vrot.lane.b32.xlu0 %v2272, 96
        %v2298 = vpop.permute.xlu0 %2297
        %2299 = vrot.lane.b32.xlu0 %v2275, 96
        %v2300 = vpop.permute.xlu0 %2299
        %2301 = vrot.lane.b32.xlu0 %v2277, 96
        %v2302 = vpop.permute.xlu0 %2301
        %vm2311 = vcmask 1048320
        %2312 = vst.msk [vmem:[#allocation2] sm:$0xff] %vm2311, %v2288
        %2313 = vst.msk [vmem:[#allocation2 + $0x8] sm:$0xff] %vm2311, %v2290
        %2314 = vst.msk [vmem:[#allocation2 + $0x10] sm:$0xff] %vm2311, %v2292
        %2315 = vst.msk [vmem:[#allocation2 + $0x18] sm:$0xff] %vm2311, %v2294
        %2316 = vst.msk [vmem:[#allocation2 + $0x20] sm:$0xff] %vm2311, %v2296
        %2317 = vst.msk [vmem:[#allocation2 + $0x28] sm:$0xff] %vm2311, %v2298
        %2318 = vst.msk [vmem:[#allocation2 + $0x30] sm:$0xff] %vm2311, %v2300
        %2319 = vst.msk [vmem:[#allocation2 + $0x38] sm:$0xff] %vm2311, %v2302
        %v2328 = vunpack.c.l.b16 %v1255
        %v2329 = vunpack.c.l.b16 %v1256
        %v2330 = vunpack.c.l.b16 %v1257
        %v2331 = vunpack.c.l.b16 %v1258
        %v2332 = vunpack.c.l.b16 %v1259
        %v2333 = vunpack.c.l.b16 %v1260
        %v2334 = vunpack.c.l.b16 %v1261
        %v2335 = vunpack.c.l.b16 %v1262
        %v2336 = vpack.c.b16 %v2329, %v2328
        %v2337 = vpack.c.b16 %v2331, %v2330
        %v2338 = vpack.c.b16 %v2333, %v2332
        %v2339 = vpack.c.b16 %v2335, %v2334
        %v2348 = vunpack.c.l.b16 %v1271
        %v2349 = vunpack.c.l.b16 %v1272
        %v2350 = vunpack.c.l.b16 %v1273
        %v2351 = vunpack.c.l.b16 %v1274
        %v2352 = vunpack.c.l.b16 %v1275
        %v2353 = vunpack.c.l.b16 %v1276
        %v2354 = vunpack.c.l.b16 %v1277
        %v2355 = vunpack.c.l.b16 %v1278
        %v2356 = vpack.c.b16 %v2349, %v2348
        %v2357 = vpack.c.b16 %v2351, %v2350
        %v2358 = vpack.c.b16 %v2353, %v2352
        %v2359 = vpack.c.b16 %v2355, %v2354
        %v2361 = vsel %vm1335, %v2336, 0
        %v2364 = vsel %vm1335, %v2337, 0
        %v2367 = vsel %vm1335, %v2338, 0
        %v2370 = vsel %vm1335, %v2339, 0
        %v2373 = vsel %vm1335, %v2356, 0
        %v2376 = vsel %vm1335, %v2357, 0
        %v2379 = vsel %vm1335, %v2358, 0
        %v2382 = vsel %vm1335, %v2359, 0
        %2384 = vmatpush.bf16.xpose.msra.mxu0 0
        %2385 = vmatpush.bf16.xpose.msra.mxu0 0
        %2386 = vmatpush.bf16.xpose.msra.mxu0 0
        %2387 = vmatpush.bf16.xpose.msra.mxu0 0
        %2388 = vmatpush.bf16.xpose.msra.mxu0 %v2382
        %2389 = vmatpush.bf16.xpose.msra.mxu0 %v2379
        %2390 = vmatpush.bf16.xpose.msra.mxu0 %v2376
        %2391 = vmatpush.bf16.xpose.msra.mxu0 %v2373
        %2392 = vmatmul.bf16.gmra.mxu0 %v2361
        %v2393 = vpop.f32.mrf.mxu0
        %v2394 = vadd.f32 0.0, %v2393
        %v2395 = vpop.f32.mrf.mxu0
        %v2396 = vadd.f32 0.0, %v2395
        %2397 = vmatmul.bf16.gmra.mxu0 %v2364
        %v2398 = vpop.f32.mrf.mxu0
        %v2399 = vadd.f32 0.0, %v2398
        %v2400 = vpop.f32.mrf.mxu0
        %v2401 = vadd.f32 0.0, %v2400
        %2402 = vmatmul.bf16.gmra.mxu0 %v2367
        %v2403 = vpop.f32.mrf.mxu0
        %v2404 = vadd.f32 0.0, %v2403
        %v2405 = vpop.f32.mrf.mxu0
        %v2406 = vadd.f32 0.0, %v2405
        %2407 = vmatmul.bf16.gmra.mxu0 %v2370
        %v2408 = vpop.f32.mrf.mxu0
        %v2409 = vadd.f32 0.0, %v2408
        %v2410 = vpop.f32.mrf.mxu0
        %v2411 = vadd.f32 0.0, %v2410
        %2412 = vdwg.mxu0
        %v2413 = vsel %vm1389, %v2394, -inf
        %2414 = vmax.xlane.f32.xlu0 %v2413
        %v2415 = vpop.xlane.xlu0 %2414
        %v2416 = vsel %vm1389, %v2396, -inf
        %2417 = vmax.xlane.f32.xlu0 %v2416
        %v2418 = vpop.xlane.xlu0 %2417
        %v2419 = vsel %vm1389, %v2399, -inf
        %2420 = vmax.xlane.f32.xlu0 %v2419
        %v2421 = vpop.xlane.xlu0 %2420
        %v2422 = vsel %vm1389, %v2401, -inf
        %2423 = vmax.xlane.f32.xlu0 %v2422
        %v2424 = vpop.xlane.xlu0 %2423
        %v2425 = vsel %vm1389, %v2404, -inf
        %2426 = vmax.xlane.f32.xlu0 %v2425
        %v2427 = vpop.xlane.xlu0 %2426
        %v2428 = vsel %vm1389, %v2406, -inf
        %2429 = vmax.xlane.f32.xlu0 %v2428
        %v2430 = vpop.xlane.xlu0 %2429
        %v2431 = vsel %vm1389, %v2409, -inf
        %2432 = vmax.xlane.f32.xlu0 %v2431
        %v2433 = vpop.xlane.xlu0 %2432
        %v2434 = vsel %vm1389, %v2411, -inf
        %2435 = vmax.xlane.f32.xlu0 %v2434
        %v2436 = vpop.xlane.xlu0 %2435
        %v2437 = vsub.f32 %v2394, %v2415
        %v2438 = vsub.f32 %v2396, %v2418
        %v2439 = vsub.f32 %v2399, %v2421
        %v2440 = vsub.f32 %v2401, %v2424
        %v2441 = vsub.f32 %v2404, %v2427
        %v2442 = vsub.f32 %v2406, %v2430
        %v2443 = vsub.f32 %v2409, %v2433
        %v2444 = vsub.f32 %v2411, %v2436
        %v2445 = vmul.f32 %v2437, 1.442695
        %v2446 = vpow.pop %v2445
        %v2447 = vmul.f32 %v2438, 1.442695
        %v2448 = vpow.pop %v2447
        %v2449 = vmul.f32 %v2439, 1.442695
        %v2450 = vpow.pop %v2449
        %v2451 = vmul.f32 %v2440, 1.442695
        %v2452 = vpow.pop %v2451
        %v2453 = vmul.f32 %v2441, 1.442695
        %v2454 = vpow.pop %v2453
        %v2455 = vmul.f32 %v2442, 1.442695
        %v2456 = vpow.pop %v2455
        %v2457 = vmul.f32 %v2443, 1.442695
        %v2458 = vpow.pop %v2457
        %v2459 = vmul.f32 %v2444, 1.442695
        %v2460 = vpow.pop %v2459
        %v2461 = vsel %vm1389, %v2446, 0.0
        %2462 = vadd.xlane.f32.xlu0 %v2461
        %v2463 = vpop.xlane.xlu0 %2462
        %v2464 = vsel %vm1389, %v2448, 0.0
        %2465 = vadd.xlane.f32.xlu0 %v2464
        %v2466 = vpop.xlane.xlu0 %2465
        %v2467 = vsel %vm1389, %v2450, 0.0
        %2468 = vadd.xlane.f32.xlu0 %v2467
        %v2469 = vpop.xlane.xlu0 %2468
        %v2470 = vsel %vm1389, %v2452, 0.0
        %2471 = vadd.xlane.f32.xlu0 %v2470
        %v2472 = vpop.xlane.xlu0 %2471
        %v2473 = vsel %vm1389, %v2454, 0.0
        %2474 = vadd.xlane.f32.xlu0 %v2473
        %v2475 = vpop.xlane.xlu0 %2474
        %v2476 = vsel %vm1389, %v2456, 0.0
        %2477 = vadd.xlane.f32.xlu0 %v2476
        %v2478 = vpop.xlane.xlu0 %2477
        %v2479 = vsel %vm1389, %v2458, 0.0
        %2480 = vadd.xlane.f32.xlu0 %v2479
        %v2481 = vpop.xlane.xlu0 %2480
        %v2482 = vsel %vm1389, %v2460, 0.0
        %2483 = vadd.xlane.f32.xlu0 %v2482
        %v2484 = vpop.xlane.xlu0 %2483
        %v2485 = vrcp.pop %v2463
        %v2486 = vrcp.pop %v2466
        %v2487 = vrcp.pop %v2469
        %v2488 = vrcp.pop %v2472
        %v2489 = vrcp.pop %v2475
        %v2490 = vrcp.pop %v2478
        %v2491 = vrcp.pop %v2481
        %v2492 = vrcp.pop %v2484
        %v2493 = vmul.f32 %v2446, %v2485
        %v2494 = vmul.f32 %v2448, %v2486
        %v2495 = vmul.f32 %v2450, %v2487
        %v2496 = vmul.f32 %v2452, %v2488
        %v2497 = vmul.f32 %v2454, %v2489
        %v2498 = vmul.f32 %v2456, %v2490
        %v2499 = vmul.f32 %v2458, %v2491
        %v2500 = vmul.f32 %v2460, %v2492
        %v2501 = vpack.c.bf16 %v2494, %v2493
        %v2502 = vpack.c.bf16 %v2496, %v2495
        %v2503 = vpack.c.bf16 %v2498, %v2497
        %v2504 = vpack.c.bf16 %v2500, %v2499
        %v2513 = vunpack.c.l.b16 %v1287
        %v2514 = vunpack.c.l.b16 %v1288
        %v2515 = vunpack.c.l.b16 %v1289
        %v2516 = vunpack.c.l.b16 %v1290
        %v2517 = vunpack.c.l.b16 %v1291
        %v2518 = vunpack.c.l.b16 %v1292
        %v2519 = vunpack.c.l.b16 %v1293
        %v2520 = vunpack.c.l.b16 %v1294
        %v2521 = vpack.c.b16 %v2514, %v2513
        %v2522 = vpack.c.b16 %v2516, %v2515
        %v2523 = vpack.c.b16 %v2518, %v2517
        %v2524 = vpack.c.b16 %v2520, %v2519
        %v2530 = vsel %vm1389, %v2501, 0
        %v2533 = vsel %vm1389, %v2502, 0
        %v2536 = vsel %vm1389, %v2503, 0
        %v2539 = vsel %vm1389, %v2504, 0
        %2541 = vmatpush.bf16.msra.mxu0 0
        %2542 = vmatpush.bf16.msra.mxu0 0
        %2543 = vmatpush.bf16.msra.mxu0 0
        %2544 = vmatpush.bf16.msra.mxu0 0
        %2545 = vmatpush.bf16.msra.mxu0 %v2524
        %2546 = vmatpush.bf16.msra.mxu0 %v2523
        %2547 = vmatpush.bf16.msra.mxu0 %v2522
        %2548 = vmatpush.bf16.msra.mxu0 %v2521
        %2549 = vmatmul.bf16.gmra.mxu0 %v2530
        %v2550 = vpop.f32.mrf.mxu0
        %v2551 = vadd.f32 0.0, %v2550
        %v2552 = vpop.f32.mrf.mxu0
        %v2553 = vadd.f32 0.0, %v2552
        %2554 = vmatmul.bf16.gmra.mxu0 %v2533
        %v2555 = vpop.f32.mrf.mxu0
        %v2556 = vadd.f32 0.0, %v2555
        %v2557 = vpop.f32.mrf.mxu0
        %v2558 = vadd.f32 0.0, %v2557
        %2559 = vmatmul.bf16.gmra.mxu0 %v2536
        %v2560 = vpop.f32.mrf.mxu0
        %v2561 = vadd.f32 0.0, %v2560
        %v2562 = vpop.f32.mrf.mxu0
        %v2563 = vadd.f32 0.0, %v2562
        %2564 = vmatmul.bf16.gmra.mxu0 %v2539
        %v2565 = vpop.f32.mrf.mxu0
        %v2566 = vadd.f32 0.0, %v2565
        %v2567 = vpop.f32.mrf.mxu0
        %v2568 = vadd.f32 0.0, %v2567
        %2569 = vdwg.mxu0
        %2570 = vst.msk [vmem:[#allocation2 + $0x40] sm:$0xff] %vm1335, %v2551
        %2571 = vst.msk [vmem:[#allocation2 + $0x48] sm:$0xff] %vm1335, %v2553
        %2572 = vst.msk [vmem:[#allocation2 + $0x50] sm:$0xff] %vm1335, %v2556
        %2573 = vst.msk [vmem:[#allocation2 + $0x58] sm:$0xff] %vm1335, %v2558
        %2574 = vst.msk [vmem:[#allocation2 + $0x60] sm:$0xff] %vm1335, %v2561
        %2575 = vst.msk [vmem:[#allocation2 + $0x68] sm:$0xff] %vm1335, %v2563
        %2576 = vst.msk [vmem:[#allocation2 + $0x70] sm:$0xff] %vm1335, %v2566
        %2577 = vst.msk [vmem:[#allocation2 + $0x78] sm:$0xff] %vm1335, %v2568
        %2578 = vrot.lane.b32.xlu0 %v2336, 96
        %v2579 = vpop.permute.xlu0 %2578
        %2580 = vrot.lane.b32.xlu0 %v2337, 96
        %v2581 = vpop.permute.xlu0 %2580
        %2582 = vrot.lane.b32.xlu0 %v2338, 96
        %v2583 = vpop.permute.xlu0 %2582
        %2584 = vrot.lane.b32.xlu0 %v2339, 96
        %v2585 = vpop.permute.xlu0 %2584
        %2586 = vrot.lane.b32.xlu0 %v2356, 96
        %v2587 = vpop.permute.xlu0 %2586
        %2588 = vrot.lane.b32.xlu0 %v2357, 96
        %v2589 = vpop.permute.xlu0 %2588
        %2590 = vrot.lane.b32.xlu0 %v2358, 96
        %v2591 = vpop.permute.xlu0 %2590
        %2592 = vrot.lane.b32.xlu0 %v2359, 96
        %v2593 = vpop.permute.xlu0 %2592
        %v2595 = vsel %vm1335, %v2579, 0
        %v2598 = vsel %vm1335, %v2581, 0
        %v2601 = vsel %vm1335, %v2583, 0
        %v2604 = vsel %vm1335, %v2585, 0
        %v2607 = vsel %vm1335, %v2587, 0
        %v2610 = vsel %vm1335, %v2589, 0
        %v2613 = vsel %vm1335, %v2591, 0
        %v2616 = vsel %vm1335, %v2593, 0
        %2618 = vmatpush.bf16.xpose.msra.mxu0 0
        %2619 = vmatpush.bf16.xpose.msra.mxu0 0
        %2620 = vmatpush.bf16.xpose.msra.mxu0 0
        %2621 = vmatpush.bf16.xpose.msra.mxu0 0
        %2622 = vmatpush.bf16.xpose.msra.mxu0 %v2616
        %2623 = vmatpush.bf16.xpose.msra.mxu0 %v2613
        %2624 = vmatpush.bf16.xpose.msra.mxu0 %v2610
        %2625 = vmatpush.bf16.xpose.msra.mxu0 %v2607
        %2626 = vmatmul.bf16.gmra.mxu0 %v2595
        %v2627 = vpop.f32.mrf.mxu0
        %v2628 = vadd.f32 0.0, %v2627
        %v2629 = vpop.f32.mrf.mxu0
        %v2630 = vadd.f32 0.0, %v2629
        %2631 = vmatmul.bf16.gmra.mxu0 %v2598
        %v2632 = vpop.f32.mrf.mxu0
        %v2633 = vadd.f32 0.0, %v2632
        %v2634 = vpop.f32.mrf.mxu0
        %v2635 = vadd.f32 0.0, %v2634
        %2636 = vmatmul.bf16.gmra.mxu0 %v2601
        %v2637 = vpop.f32.mrf.mxu0
        %v2638 = vadd.f32 0.0, %v2637
        %v2639 = vpop.f32.mrf.mxu0
        %v2640 = vadd.f32 0.0, %v2639
        %2641 = vmatmul.bf16.gmra.mxu0 %v2604
        %v2642 = vpop.f32.mrf.mxu0
        %v2643 = vadd.f32 0.0, %v2642
        %v2644 = vpop.f32.mrf.mxu0
        %v2645 = vadd.f32 0.0, %v2644
        %2646 = vdwg.mxu0
        %v2647 = vsel %vm1389, %v2628, -inf
        %2648 = vmax.xlane.f32.xlu0 %v2647
        %v2649 = vpop.xlane.xlu0 %2648
        %v2650 = vsel %vm1389, %v2630, -inf
        %2651 = vmax.xlane.f32.xlu0 %v2650
        %v2652 = vpop.xlane.xlu0 %2651
        %v2653 = vsel %vm1389, %v2633, -inf
        %2654 = vmax.xlane.f32.xlu0 %v2653
        %v2655 = vpop.xlane.xlu0 %2654
        %v2656 = vsel %vm1389, %v2635, -inf
        %2657 = vmax.xlane.f32.xlu0 %v2656
        %v2658 = vpop.xlane.xlu0 %2657
        %v2659 = vsel %vm1389, %v2638, -inf
        %2660 = vmax.xlane.f32.xlu0 %v2659
        %v2661 = vpop.xlane.xlu0 %2660
        %v2662 = vsel %vm1389, %v2640, -inf
        %2663 = vmax.xlane.f32.xlu0 %v2662
        %v2664 = vpop.xlane.xlu0 %2663
        %v2665 = vsel %vm1389, %v2643, -inf
        %2666 = vmax.xlane.f32.xlu0 %v2665
        %v2667 = vpop.xlane.xlu0 %2666
        %v2668 = vsel %vm1389, %v2645, -inf
        %2669 = vmax.xlane.f32.xlu0 %v2668
        %v2670 = vpop.xlane.xlu0 %2669
        %v2671 = vsub.f32 %v2628, %v2649
        %v2672 = vsub.f32 %v2630, %v2652
        %v2673 = vsub.f32 %v2633, %v2655
        %v2674 = vsub.f32 %v2635, %v2658
        %v2675 = vsub.f32 %v2638, %v2661
        %v2676 = vsub.f32 %v2640, %v2664
        %v2677 = vsub.f32 %v2643, %v2667
        %v2678 = vsub.f32 %v2645, %v2670
        %v2679 = vmul.f32 %v2671, 1.442695
        %v2680 = vpow.pop %v2679
        %v2681 = vmul.f32 %v2672, 1.442695
        %v2682 = vpow.pop %v2681
        %v2683 = vmul.f32 %v2673, 1.442695
        %v2684 = vpow.pop %v2683
        %v2685 = vmul.f32 %v2674, 1.442695
        %v2686 = vpow.pop %v2685
        %v2687 = vmul.f32 %v2675, 1.442695
        %v2688 = vpow.pop %v2687
        %v2689 = vmul.f32 %v2676, 1.442695
        %v2690 = vpow.pop %v2689
        %v2691 = vmul.f32 %v2677, 1.442695
        %v2692 = vpow.pop %v2691
        %v2693 = vmul.f32 %v2678, 1.442695
        %v2694 = vpow.pop %v2693
        %v2695 = vsel %vm1389, %v2680, 0.0
        %2696 = vadd.xlane.f32.xlu0 %v2695
        %v2697 = vpop.xlane.xlu0 %2696
        %v2698 = vsel %vm1389, %v2682, 0.0
        %2699 = vadd.xlane.f32.xlu0 %v2698
        %v2700 = vpop.xlane.xlu0 %2699
        %v2701 = vsel %vm1389, %v2684, 0.0
        %2702 = vadd.xlane.f32.xlu0 %v2701
        %v2703 = vpop.xlane.xlu0 %2702
        %v2704 = vsel %vm1389, %v2686, 0.0
        %2705 = vadd.xlane.f32.xlu0 %v2704
        %v2706 = vpop.xlane.xlu0 %2705
        %v2707 = vsel %vm1389, %v2688, 0.0
        %2708 = vadd.xlane.f32.xlu0 %v2707
        %v2709 = vpop.xlane.xlu0 %2708
        %v2710 = vsel %vm1389, %v2690, 0.0
        %2711 = vadd.xlane.f32.xlu0 %v2710
        %v2712 = vpop.xlane.xlu0 %2711
        %v2713 = vsel %vm1389, %v2692, 0.0
        %2714 = vadd.xlane.f32.xlu0 %v2713
        %v2715 = vpop.xlane.xlu0 %2714
        %v2716 = vsel %vm1389, %v2694, 0.0
        %2717 = vadd.xlane.f32.xlu0 %v2716
        %v2718 = vpop.xlane.xlu0 %2717
        %v2719 = vrcp.pop %v2697
        %v2720 = vrcp.pop %v2700
        %v2721 = vrcp.pop %v2703
        %v2722 = vrcp.pop %v2706
        %v2723 = vrcp.pop %v2709
        %v2724 = vrcp.pop %v2712
        %v2725 = vrcp.pop %v2715
        %v2726 = vrcp.pop %v2718
        %v2727 = vmul.f32 %v2680, %v2719
        %v2728 = vmul.f32 %v2682, %v2720
        %v2729 = vmul.f32 %v2684, %v2721
        %v2730 = vmul.f32 %v2686, %v2722
        %v2731 = vmul.f32 %v2688, %v2723
        %v2732 = vmul.f32 %v2690, %v2724
        %v2733 = vmul.f32 %v2692, %v2725
        %v2734 = vmul.f32 %v2694, %v2726
        %v2735 = vpack.c.bf16 %v2728, %v2727
        %v2736 = vpack.c.bf16 %v2730, %v2729
        %v2737 = vpack.c.bf16 %v2732, %v2731
        %v2738 = vpack.c.bf16 %v2734, %v2733
        %2739 = vrot.lane.b32.xlu0 %v2521, 96
        %v2740 = vpop.permute.xlu0 %2739
        %2741 = vrot.lane.b32.xlu0 %v2522, 96
        %v2742 = vpop.permute.xlu0 %2741
        %2743 = vrot.lane.b32.xlu0 %v2523, 96
        %v2744 = vpop.permute.xlu0 %2743
        %2745 = vrot.lane.b32.xlu0 %v2524, 96
        %v2746 = vpop.permute.xlu0 %2745
        %v2752 = vsel %vm1389, %v2735, 0
        %v2755 = vsel %vm1389, %v2736, 0
        %v2758 = vsel %vm1389, %v2737, 0
        %v2761 = vsel %vm1389, %v2738, 0
        %2763 = vmatpush.bf16.msra.mxu0 0
        %2764 = vmatpush.bf16.msra.mxu0 0
        %2765 = vmatpush.bf16.msra.mxu0 0
        %2766 = vmatpush.bf16.msra.mxu0 0
        %2767 = vmatpush.bf16.msra.mxu0 %v2746
        %2768 = vmatpush.bf16.msra.mxu0 %v2744
        %2769 = vmatpush.bf16.msra.mxu0 %v2742
        %2770 = vmatpush.bf16.msra.mxu0 %v2740
        %2771 = vmatmul.bf16.gmra.mxu0 %v2752
        %v2772 = vpop.f32.mrf.mxu0
        %v2773 = vadd.f32 0.0, %v2772
        %v2774 = vpop.f32.mrf.mxu0
        %v2775 = vadd.f32 0.0, %v2774
        %2776 = vmatmul.bf16.gmra.mxu0 %v2755
        %v2777 = vpop.f32.mrf.mxu0
        %v2778 = vadd.f32 0.0, %v2777
        %v2779 = vpop.f32.mrf.mxu0
        %v2780 = vadd.f32 0.0, %v2779
        %2781 = vmatmul.bf16.gmra.mxu0 %v2758
        %v2782 = vpop.f32.mrf.mxu0
        %v2783 = vadd.f32 0.0, %v2782
        %v2784 = vpop.f32.mrf.mxu0
        %v2785 = vadd.f32 0.0, %v2784
        %2786 = vmatmul.bf16.gmra.mxu0 %v2761
        %v2787 = vpop.f32.mrf.mxu0
        %v2788 = vadd.f32 0.0, %v2787
        %v2789 = vpop.f32.mrf.mxu0
        %v2790 = vadd.f32 0.0, %v2789
        %2791 = vdwg.mxu0
        %2800 = vrot.lane.b32.xlu0 %v2773, 32
        %v2801 = vpop.permute.xlu0 %2800
        %2802 = vrot.lane.b32.xlu0 %v2775, 32
        %v2803 = vpop.permute.xlu0 %2802
        %2804 = vrot.lane.b32.xlu0 %v2778, 32
        %v2805 = vpop.permute.xlu0 %2804
        %2806 = vrot.lane.b32.xlu0 %v2780, 32
        %v2807 = vpop.permute.xlu0 %2806
        %2808 = vrot.lane.b32.xlu0 %v2783, 32
        %v2809 = vpop.permute.xlu0 %2808
        %2810 = vrot.lane.b32.xlu0 %v2785, 32
        %v2811 = vpop.permute.xlu0 %2810
        %2812 = vrot.lane.b32.xlu0 %v2788, 32
        %v2813 = vpop.permute.xlu0 %2812
        %2814 = vrot.lane.b32.xlu0 %v2790, 32
        %v2815 = vpop.permute.xlu0 %2814
        %2824 = vst.msk [vmem:[#allocation2 + $0x40] sm:$0xff] %vm1801, %v2801
        %2825 = vst.msk [vmem:[#allocation2 + $0x48] sm:$0xff] %vm1801, %v2803
        %2826 = vst.msk [vmem:[#allocation2 + $0x50] sm:$0xff] %vm1801, %v2805
        %2827 = vst.msk [vmem:[#allocation2 + $0x58] sm:$0xff] %vm1801, %v2807
        %2828 = vst.msk [vmem:[#allocation2 + $0x60] sm:$0xff] %vm1801, %v2809
        %2829 = vst.msk [vmem:[#allocation2 + $0x68] sm:$0xff] %vm1801, %v2811
        %2830 = vst.msk [vmem:[#allocation2 + $0x70] sm:$0xff] %vm1801, %v2813
        %2831 = vst.msk [vmem:[#allocation2 + $0x78] sm:$0xff] %vm1801, %v2815
        %2832 = vrot.lane.b32.xlu0 %v2336, 64
        %v2833 = vpop.permute.xlu0 %2832
        %2834 = vrot.lane.b32.xlu0 %v2337, 64
        %v2835 = vpop.permute.xlu0 %2834
        %2836 = vrot.lane.b32.xlu0 %v2338, 64
        %v2837 = vpop.permute.xlu0 %2836
        %2838 = vrot.lane.b32.xlu0 %v2339, 64
        %v2839 = vpop.permute.xlu0 %2838
        %2840 = vrot.lane.b32.xlu0 %v2356, 64
        %v2841 = vpop.permute.xlu0 %2840
        %2842 = vrot.lane.b32.xlu0 %v2357, 64
        %v2843 = vpop.permute.xlu0 %2842
        %2844 = vrot.lane.b32.xlu0 %v2358, 64
        %v2845 = vpop.permute.xlu0 %2844
        %2846 = vrot.lane.b32.xlu0 %v2359, 64
        %v2847 = vpop.permute.xlu0 %2846
        %v2849 = vsel %vm1335, %v2833, 0
        %v2852 = vsel %vm1335, %v2835, 0
        %v2855 = vsel %vm1335, %v2837, 0
        %v2858 = vsel %vm1335, %v2839, 0
        %v2861 = vsel %vm1335, %v2841, 0
        %v2864 = vsel %vm1335, %v2843, 0
        %v2867 = vsel %vm1335, %v2845, 0
        %v2870 = vsel %vm1335, %v2847, 0
        %2872 = vmatpush.bf16.xpose.msra.mxu0 0
        %2873 = vmatpush.bf16.xpose.msra.mxu0 0
        %2874 = vmatpush.bf16.xpose.msra.mxu0 0
        %2875 = vmatpush.bf16.xpose.msra.mxu0 0
        %2876 = vmatpush.bf16.xpose.msra.mxu0 %v2870
        %2877 = vmatpush.bf16.xpose.msra.mxu0 %v2867
        %2878 = vmatpush.bf16.xpose.msra.mxu0 %v2864
        %2879 = vmatpush.bf16.xpose.msra.mxu0 %v2861
        %2880 = vmatmul.bf16.gmra.mxu0 %v2849
        %v2881 = vpop.f32.mrf.mxu0
        %v2882 = vadd.f32 0.0, %v2881
        %v2883 = vpop.f32.mrf.mxu0
        %v2884 = vadd.f32 0.0, %v2883
        %2885 = vmatmul.bf16.gmra.mxu0 %v2852
        %v2886 = vpop.f32.mrf.mxu0
        %v2887 = vadd.f32 0.0, %v2886
        %v2888 = vpop.f32.mrf.mxu0
        %v2889 = vadd.f32 0.0, %v2888
        %2890 = vmatmul.bf16.gmra.mxu0 %v2855
        %v2891 = vpop.f32.mrf.mxu0
        %v2892 = vadd.f32 0.0, %v2891
        %v2893 = vpop.f32.mrf.mxu0
        %v2894 = vadd.f32 0.0, %v2893
        %2895 = vmatmul.bf16.gmra.mxu0 %v2858
        %v2896 = vpop.f32.mrf.mxu0
        %v2897 = vadd.f32 0.0, %v2896
        %v2898 = vpop.f32.mrf.mxu0
        %v2899 = vadd.f32 0.0, %v2898
        %2900 = vdwg.mxu0
        %v2901 = vsel %vm1389, %v2882, -inf
        %2902 = vmax.xlane.f32.xlu0 %v2901
        %v2903 = vpop.xlane.xlu0 %2902
        %v2904 = vsel %vm1389, %v2884, -inf
        %2905 = vmax.xlane.f32.xlu0 %v2904
        %v2906 = vpop.xlane.xlu0 %2905
        %v2907 = vsel %vm1389, %v2887, -inf
        %2908 = vmax.xlane.f32.xlu0 %v2907
        %v2909 = vpop.xlane.xlu0 %2908
        %v2910 = vsel %vm1389, %v2889, -inf
        %2911 = vmax.xlane.f32.xlu0 %v2910
        %v2912 = vpop.xlane.xlu0 %2911
        %v2913 = vsel %vm1389, %v2892, -inf
        %2914 = vmax.xlane.f32.xlu0 %v2913
        %v2915 = vpop.xlane.xlu0 %2914
        %v2916 = vsel %vm1389, %v2894, -inf
        %2917 = vmax.xlane.f32.xlu0 %v2916
        %v2918 = vpop.xlane.xlu0 %2917
        %v2919 = vsel %vm1389, %v2897, -inf
        %2920 = vmax.xlane.f32.xlu0 %v2919
        %v2921 = vpop.xlane.xlu0 %2920
        %v2922 = vsel %vm1389, %v2899, -inf
        %2923 = vmax.xlane.f32.xlu0 %v2922
        %v2924 = vpop.xlane.xlu0 %2923
        %v2925 = vsub.f32 %v2882, %v2903
        %v2926 = vsub.f32 %v2884, %v2906
        %v2927 = vsub.f32 %v2887, %v2909
        %v2928 = vsub.f32 %v2889, %v2912
        %v2929 = vsub.f32 %v2892, %v2915
        %v2930 = vsub.f32 %v2894, %v2918
        %v2931 = vsub.f32 %v2897, %v2921
        %v2932 = vsub.f32 %v2899, %v2924
        %v2933 = vmul.f32 %v2925, 1.442695
        %v2934 = vpow.pop %v2933
        %v2935 = vmul.f32 %v2926, 1.442695
        %v2936 = vpow.pop %v2935
        %v2937 = vmul.f32 %v2927, 1.442695
        %v2938 = vpow.pop %v2937
        %v2939 = vmul.f32 %v2928, 1.442695
        %v2940 = vpow.pop %v2939
        %v2941 = vmul.f32 %v2929, 1.442695
        %v2942 = vpow.pop %v2941
        %v2943 = vmul.f32 %v2930, 1.442695
        %v2944 = vpow.pop %v2943
        %v2945 = vmul.f32 %v2931, 1.442695
        %v2946 = vpow.pop %v2945
        %v2947 = vmul.f32 %v2932, 1.442695
        %v2948 = vpow.pop %v2947
        %v2949 = vsel %vm1389, %v2934, 0.0
        %2950 = vadd.xlane.f32.xlu0 %v2949
        %v2951 = vpop.xlane.xlu0 %2950
        %v2952 = vsel %vm1389, %v2936, 0.0
        %2953 = vadd.xlane.f32.xlu0 %v2952
        %v2954 = vpop.xlane.xlu0 %2953
        %v2955 = vsel %vm1389, %v2938, 0.0
        %2956 = vadd.xlane.f32.xlu0 %v2955
        %v2957 = vpop.xlane.xlu0 %2956
        %v2958 = vsel %vm1389, %v2940, 0.0
        %2959 = vadd.xlane.f32.xlu0 %v2958
        %v2960 = vpop.xlane.xlu0 %2959
        %v2961 = vsel %vm1389, %v2942, 0.0
        %2962 = vadd.xlane.f32.xlu0 %v2961
        %v2963 = vpop.xlane.xlu0 %2962
        %v2964 = vsel %vm1389, %v2944, 0.0
        %2965 = vadd.xlane.f32.xlu0 %v2964
        %v2966 = vpop.xlane.xlu0 %2965
        %v2967 = vsel %vm1389, %v2946, 0.0
        %2968 = vadd.xlane.f32.xlu0 %v2967
        %v2969 = vpop.xlane.xlu0 %2968
        %v2970 = vsel %vm1389, %v2948, 0.0
        %2971 = vadd.xlane.f32.xlu0 %v2970
        %v2972 = vpop.xlane.xlu0 %2971
        %v2973 = vrcp.pop %v2951
        %v2974 = vrcp.pop %v2954
        %v2975 = vrcp.pop %v2957
        %v2976 = vrcp.pop %v2960
        %v2977 = vrcp.pop %v2963
        %v2978 = vrcp.pop %v2966
        %v2979 = vrcp.pop %v2969
        %v2980 = vrcp.pop %v2972
        %v2981 = vmul.f32 %v2934, %v2973
        %v2982 = vmul.f32 %v2936, %v2974
        %v2983 = vmul.f32 %v2938, %v2975
        %v2984 = vmul.f32 %v2940, %v2976
        %v2985 = vmul.f32 %v2942, %v2977
        %v2986 = vmul.f32 %v2944, %v2978
        %v2987 = vmul.f32 %v2946, %v2979
        %v2988 = vmul.f32 %v2948, %v2980
        %v2989 = vpack.c.bf16 %v2982, %v2981
        %v2990 = vpack.c.bf16 %v2984, %v2983
        %v2991 = vpack.c.bf16 %v2986, %v2985
        %v2992 = vpack.c.bf16 %v2988, %v2987
        %2993 = vrot.lane.b32.xlu0 %v2521, 64
        %v2994 = vpop.permute.xlu0 %2993
        %2995 = vrot.lane.b32.xlu0 %v2522, 64
        %v2996 = vpop.permute.xlu0 %2995
        %2997 = vrot.lane.b32.xlu0 %v2523, 64
        %v2998 = vpop.permute.xlu0 %2997
        %2999 = vrot.lane.b32.xlu0 %v2524, 64
        %v3000 = vpop.permute.xlu0 %2999
        %v3006 = vsel %vm1389, %v2989, 0
        %v3009 = vsel %vm1389, %v2990, 0
        %v3012 = vsel %vm1389, %v2991, 0
        %v3015 = vsel %vm1389, %v2992, 0
        %3017 = vmatpush.bf16.msra.mxu0 0
        %3018 = vmatpush.bf16.msra.mxu0 0
        %3019 = vmatpush.bf16.msra.mxu0 0
        %3020 = vmatpush.bf16.msra.mxu0 0
        %3021 = vmatpush.bf16.msra.mxu0 %v3000
        %3022 = vmatpush.bf16.msra.mxu0 %v2998
        %3023 = vmatpush.bf16.msra.mxu0 %v2996
        %3024 = vmatpush.bf16.msra.mxu0 %v2994
        %3025 = vmatmul.bf16.gmra.mxu0 %v3006
        %v3026 = vpop.f32.mrf.mxu0
        %v3027 = vadd.f32 0.0, %v3026
        %v3028 = vpop.f32.mrf.mxu0
        %v3029 = vadd.f32 0.0, %v3028
        %3030 = vmatmul.bf16.gmra.mxu0 %v3009
        %v3031 = vpop.f32.mrf.mxu0
        %v3032 = vadd.f32 0.0, %v3031
        %v3033 = vpop.f32.mrf.mxu0
        %v3034 = vadd.f32 0.0, %v3033
        %3035 = vmatmul.bf16.gmra.mxu0 %v3012
        %v3036 = vpop.f32.mrf.mxu0
        %v3037 = vadd.f32 0.0, %v3036
        %v3038 = vpop.f32.mrf.mxu0
        %v3039 = vadd.f32 0.0, %v3038
        %3040 = vmatmul.bf16.gmra.mxu0 %v3015
        %v3041 = vpop.f32.mrf.mxu0
        %v3042 = vadd.f32 0.0, %v3041
        %v3043 = vpop.f32.mrf.mxu0
        %v3044 = vadd.f32 0.0, %v3043
        %3045 = vdwg.mxu0
        %3054 = vrot.lane.b32.xlu0 %v3027, 64
        %v3055 = vpop.permute.xlu0 %3054
        %3056 = vrot.lane.b32.xlu0 %v3029, 64
        %v3057 = vpop.permute.xlu0 %3056
        %3058 = vrot.lane.b32.xlu0 %v3032, 64
        %v3059 = vpop.permute.xlu0 %3058
        %3060 = vrot.lane.b32.xlu0 %v3034, 64
        %v3061 = vpop.permute.xlu0 %3060
        %3062 = vrot.lane.b32.xlu0 %v3037, 64
        %v3063 = vpop.permute.xlu0 %3062
        %3064 = vrot.lane.b32.xlu0 %v3039, 64
        %v3065 = vpop.permute.xlu0 %3064
        %3066 = vrot.lane.b32.xlu0 %v3042, 64
        %v3067 = vpop.permute.xlu0 %3066
        %3068 = vrot.lane.b32.xlu0 %v3044, 64
        %v3069 = vpop.permute.xlu0 %3068
        %3078 = vst.msk [vmem:[#allocation2 + $0x40] sm:$0xff] %vm2056, %v3055
        %3079 = vst.msk [vmem:[#allocation2 + $0x48] sm:$0xff] %vm2056, %v3057
        %3080 = vst.msk [vmem:[#allocation2 + $0x50] sm:$0xff] %vm2056, %v3059
        %3081 = vst.msk [vmem:[#allocation2 + $0x58] sm:$0xff] %vm2056, %v3061
        %3082 = vst.msk [vmem:[#allocation2 + $0x60] sm:$0xff] %vm2056, %v3063
        %3083 = vst.msk [vmem:[#allocation2 + $0x68] sm:$0xff] %vm2056, %v3065
        %3084 = vst.msk [vmem:[#allocation2 + $0x70] sm:$0xff] %vm2056, %v3067
        %3085 = vst.msk [vmem:[#allocation2 + $0x78] sm:$0xff] %vm2056, %v3069
        %3086 = vrot.lane.b32.xlu0 %v2336, 32
        %v3087 = vpop.permute.xlu0 %3086
        %3088 = vrot.lane.b32.xlu0 %v2337, 32
        %v3089 = vpop.permute.xlu0 %3088
        %3090 = vrot.lane.b32.xlu0 %v2338, 32
        %v3091 = vpop.permute.xlu0 %3090
        %3092 = vrot.lane.b32.xlu0 %v2339, 32
        %v3093 = vpop.permute.xlu0 %3092
        %3094 = vrot.lane.b32.xlu0 %v2356, 32
        %v3095 = vpop.permute.xlu0 %3094
        %3096 = vrot.lane.b32.xlu0 %v2357, 32
        %v3097 = vpop.permute.xlu0 %3096
        %3098 = vrot.lane.b32.xlu0 %v2358, 32
        %v3099 = vpop.permute.xlu0 %3098
        %3100 = vrot.lane.b32.xlu0 %v2359, 32
        %v3101 = vpop.permute.xlu0 %3100
        %v3103 = vsel %vm1335, %v3087, 0
        %v3106 = vsel %vm1335, %v3089, 0
        %v3109 = vsel %vm1335, %v3091, 0
        %v3112 = vsel %vm1335, %v3093, 0
        %v3115 = vsel %vm1335, %v3095, 0
        %v3118 = vsel %vm1335, %v3097, 0
        %v3121 = vsel %vm1335, %v3099, 0
        %v3124 = vsel %vm1335, %v3101, 0
        %3126 = vmatpush.bf16.xpose.msra.mxu0 0
        %3127 = vmatpush.bf16.xpose.msra.mxu0 0
        %3128 = vmatpush.bf16.xpose.msra.mxu0 0
        %3129 = vmatpush.bf16.xpose.msra.mxu0 0
        %3130 = vmatpush.bf16.xpose.msra.mxu0 %v3124
        %3131 = vmatpush.bf16.xpose.msra.mxu0 %v3121
        %3132 = vmatpush.bf16.xpose.msra.mxu0 %v3118
        %3133 = vmatpush.bf16.xpose.msra.mxu0 %v3115
        %3134 = vmatmul.bf16.gmra.mxu0 %v3103
        %v3135 = vpop.f32.mrf.mxu0
        %v3136 = vadd.f32 0.0, %v3135
        %v3137 = vpop.f32.mrf.mxu0
        %v3138 = vadd.f32 0.0, %v3137
        %3139 = vmatmul.bf16.gmra.mxu0 %v3106
        %v3140 = vpop.f32.mrf.mxu0
        %v3141 = vadd.f32 0.0, %v3140
        %v3142 = vpop.f32.mrf.mxu0
        %v3143 = vadd.f32 0.0, %v3142
        %3144 = vmatmul.bf16.gmra.mxu0 %v3109
        %v3145 = vpop.f32.mrf.mxu0
        %v3146 = vadd.f32 0.0, %v3145
        %v3147 = vpop.f32.mrf.mxu0
        %v3148 = vadd.f32 0.0, %v3147
        %3149 = vmatmul.bf16.gmra.mxu0 %v3112
        %v3150 = vpop.f32.mrf.mxu0
        %v3151 = vadd.f32 0.0, %v3150
        %v3152 = vpop.f32.mrf.mxu0
        %v3153 = vadd.f32 0.0, %v3152
        %3154 = vdwg.mxu0
        %v3155 = vsel %vm1389, %v3136, -inf
        %3156 = vmax.xlane.f32.xlu0 %v3155
        %v3157 = vpop.xlane.xlu0 %3156
        %v3158 = vsel %vm1389, %v3138, -inf
        %3159 = vmax.xlane.f32.xlu0 %v3158
        %v3160 = vpop.xlane.xlu0 %3159
        %v3161 = vsel %vm1389, %v3141, -inf
        %3162 = vmax.xlane.f32.xlu0 %v3161
        %v3163 = vpop.xlane.xlu0 %3162
        %v3164 = vsel %vm1389, %v3143, -inf
        %3165 = vmax.xlane.f32.xlu0 %v3164
        %v3166 = vpop.xlane.xlu0 %3165
        %v3167 = vsel %vm1389, %v3146, -inf
        %3168 = vmax.xlane.f32.xlu0 %v3167
        %v3169 = vpop.xlane.xlu0 %3168
        %v3170 = vsel %vm1389, %v3148, -inf
        %3171 = vmax.xlane.f32.xlu0 %v3170
        %v3172 = vpop.xlane.xlu0 %3171
        %v3173 = vsel %vm1389, %v3151, -inf
        %3174 = vmax.xlane.f32.xlu0 %v3173
        %v3175 = vpop.xlane.xlu0 %3174
        %v3176 = vsel %vm1389, %v3153, -inf
        %3177 = vmax.xlane.f32.xlu0 %v3176
        %v3178 = vpop.xlane.xlu0 %3177
        %v3179 = vsub.f32 %v3136, %v3157
        %v3180 = vsub.f32 %v3138, %v3160
        %v3181 = vsub.f32 %v3141, %v3163
        %v3182 = vsub.f32 %v3143, %v3166
        %v3183 = vsub.f32 %v3146, %v3169
        %v3184 = vsub.f32 %v3148, %v3172
        %v3185 = vsub.f32 %v3151, %v3175
        %v3186 = vsub.f32 %v3153, %v3178
        %v3187 = vmul.f32 %v3179, 1.442695
        %v3188 = vpow.pop %v3187
        %v3189 = vmul.f32 %v3180, 1.442695
        %v3190 = vpow.pop %v3189
        %v3191 = vmul.f32 %v3181, 1.442695
        %v3192 = vpow.pop %v3191
        %v3193 = vmul.f32 %v3182, 1.442695
        %v3194 = vpow.pop %v3193
        %v3195 = vmul.f32 %v3183, 1.442695
        %v3196 = vpow.pop %v3195
        %v3197 = vmul.f32 %v3184, 1.442695
        %v3198 = vpow.pop %v3197
        %v3199 = vmul.f32 %v3185, 1.442695
        %v3200 = vpow.pop %v3199
        %v3201 = vmul.f32 %v3186, 1.442695
        %v3202 = vpow.pop %v3201
        %v3203 = vsel %vm1389, %v3188, 0.0
        %3204 = vadd.xlane.f32.xlu0 %v3203
        %v3205 = vpop.xlane.xlu0 %3204
        %v3206 = vsel %vm1389, %v3190, 0.0
        %3207 = vadd.xlane.f32.xlu0 %v3206
        %v3208 = vpop.xlane.xlu0 %3207
        %v3209 = vsel %vm1389, %v3192, 0.0
        %3210 = vadd.xlane.f32.xlu0 %v3209
        %v3211 = vpop.xlane.xlu0 %3210
        %v3212 = vsel %vm1389, %v3194, 0.0
        %3213 = vadd.xlane.f32.xlu0 %v3212
        %v3214 = vpop.xlane.xlu0 %3213
        %v3215 = vsel %vm1389, %v3196, 0.0
        %3216 = vadd.xlane.f32.xlu0 %v3215
        %v3217 = vpop.xlane.xlu0 %3216
        %v3218 = vsel %vm1389, %v3198, 0.0
        %3219 = vadd.xlane.f32.xlu0 %v3218
        %v3220 = vpop.xlane.xlu0 %3219
        %v3221 = vsel %vm1389, %v3200, 0.0
        %3222 = vadd.xlane.f32.xlu0 %v3221
        %v3223 = vpop.xlane.xlu0 %3222
        %v3224 = vsel %vm1389, %v3202, 0.0
        %3225 = vadd.xlane.f32.xlu0 %v3224
        %v3226 = vpop.xlane.xlu0 %3225
        %v3227 = vrcp.pop %v3205
        %v3228 = vrcp.pop %v3208
        %v3229 = vrcp.pop %v3211
        %v3230 = vrcp.pop %v3214
        %v3231 = vrcp.pop %v3217
        %v3232 = vrcp.pop %v3220
        %v3233 = vrcp.pop %v3223
        %v3234 = vrcp.pop %v3226
        %v3235 = vmul.f32 %v3188, %v3227
        %v3236 = vmul.f32 %v3190, %v3228
        %v3237 = vmul.f32 %v3192, %v3229
        %v3238 = vmul.f32 %v3194, %v3230
        %v3239 = vmul.f32 %v3196, %v3231
        %v3240 = vmul.f32 %v3198, %v3232
        %v3241 = vmul.f32 %v3200, %v3233
        %v3242 = vmul.f32 %v3202, %v3234
        %v3243 = vpack.c.bf16 %v3236, %v3235
        %v3244 = vpack.c.bf16 %v3238, %v3237
        %v3245 = vpack.c.bf16 %v3240, %v3239
        %v3246 = vpack.c.bf16 %v3242, %v3241
        %3247 = vrot.lane.b32.xlu0 %v2521, 32
        %v3248 = vpop.permute.xlu0 %3247
        %3249 = vrot.lane.b32.xlu0 %v2522, 32
        %v3250 = vpop.permute.xlu0 %3249
        %3251 = vrot.lane.b32.xlu0 %v2523, 32
        %v3252 = vpop.permute.xlu0 %3251
        %3253 = vrot.lane.b32.xlu0 %v2524, 32
        %v3254 = vpop.permute.xlu0 %3253
        %v3260 = vsel %vm1389, %v3243, 0
        %v3263 = vsel %vm1389, %v3244, 0
        %v3266 = vsel %vm1389, %v3245, 0
        %v3269 = vsel %vm1389, %v3246, 0
        %3271 = vmatpush.bf16.msra.mxu0 0
        %3272 = vmatpush.bf16.msra.mxu0 0
        %3273 = vmatpush.bf16.msra.mxu0 0
        %3274 = vmatpush.bf16.msra.mxu0 0
        %3275 = vmatpush.bf16.msra.mxu0 %v3254
        %3276 = vmatpush.bf16.msra.mxu0 %v3252
        %3277 = vmatpush.bf16.msra.mxu0 %v3250
        %3278 = vmatpush.bf16.msra.mxu0 %v3248
        %3279 = vmatmul.bf16.gmra.mxu0 %v3260
        %v3280 = vpop.f32.mrf.mxu0
        %v3281 = vadd.f32 0.0, %v3280
        %v3282 = vpop.f32.mrf.mxu0
        %v3283 = vadd.f32 0.0, %v3282
        %3284 = vmatmul.bf16.gmra.mxu0 %v3263
        %v3285 = vpop.f32.mrf.mxu0
        %v3286 = vadd.f32 0.0, %v3285
        %v3287 = vpop.f32.mrf.mxu0
        %v3288 = vadd.f32 0.0, %v3287
        %3289 = vmatmul.bf16.gmra.mxu0 %v3266
        %v3290 = vpop.f32.mrf.mxu0
        %v3291 = vadd.f32 0.0, %v3290
        %v3292 = vpop.f32.mrf.mxu0
        %v3293 = vadd.f32 0.0, %v3292
        %3294 = vmatmul.bf16.gmra.mxu0 %v3269
        %v3295 = vpop.f32.mrf.mxu0
        %v3296 = vadd.f32 0.0, %v3295
        %v3297 = vpop.f32.mrf.mxu0
        %v3298 = vadd.f32 0.0, %v3297
        %3299 = vdwg.mxu0
        %3308 = vrot.lane.b32.xlu0 %v3281, 96
        %v3309 = vpop.permute.xlu0 %3308
        %3310 = vrot.lane.b32.xlu0 %v3283, 96
        %v3311 = vpop.permute.xlu0 %3310
        %3312 = vrot.lane.b32.xlu0 %v3286, 96
        %v3313 = vpop.permute.xlu0 %3312
        %3314 = vrot.lane.b32.xlu0 %v3288, 96
        %v3315 = vpop.permute.xlu0 %3314
        %3316 = vrot.lane.b32.xlu0 %v3291, 96
        %v3317 = vpop.permute.xlu0 %3316
        %3318 = vrot.lane.b32.xlu0 %v3293, 96
        %v3319 = vpop.permute.xlu0 %3318
        %3320 = vrot.lane.b32.xlu0 %v3296, 96
        %v3321 = vpop.permute.xlu0 %3320
        %3322 = vrot.lane.b32.xlu0 %v3298, 96
        %v3323 = vpop.permute.xlu0 %3322
        %3332 = vst.msk [vmem:[#allocation2 + $0x40] sm:$0xff] %vm2311, %v3309
        %3333 = vst.msk [vmem:[#allocation2 + $0x48] sm:$0xff] %vm2311, %v3311
        %3334 = vst.msk [vmem:[#allocation2 + $0x50] sm:$0xff] %vm2311, %v3313
        %3335 = vst.msk [vmem:[#allocation2 + $0x58] sm:$0xff] %vm2311, %v3315
        %3336 = vst.msk [vmem:[#allocation2 + $0x60] sm:$0xff] %vm2311, %v3317
        %3337 = vst.msk [vmem:[#allocation2 + $0x68] sm:$0xff] %vm2311, %v3319
        %3338 = vst.msk [vmem:[#allocation2 + $0x70] sm:$0xff] %vm2311, %v3321
        %3339 = vst.msk [vmem:[#allocation2 + $0x78] sm:$0xff] %vm2311, %v3323
        %v3340 = vld [vmem:[#allocation2] sm:$0xff]
        %v3341 = vld [vmem:[#allocation2 + $0x8] sm:$0xff]
        %v3342 = vld [vmem:[#allocation2 + $0x10] sm:$0xff]
        %v3343 = vld [vmem:[#allocation2 + $0x18] sm:$0xff]
        %v3344 = vld [vmem:[#allocation2 + $0x20] sm:$0xff]
        %v3345 = vld [vmem:[#allocation2 + $0x28] sm:$0xff]
        %v3346 = vld [vmem:[#allocation2 + $0x30] sm:$0xff]
        %v3347 = vld [vmem:[#allocation2 + $0x38] sm:$0xff]
        %v3348 = vld [vmem:[#allocation2 + $0x40] sm:$0xff]
        %v3349 = vld [vmem:[#allocation2 + $0x48] sm:$0xff]
        %v3350 = vld [vmem:[#allocation2 + $0x50] sm:$0xff]
        %v3351 = vld [vmem:[#allocation2 + $0x58] sm:$0xff]
        %v3352 = vld [vmem:[#allocation2 + $0x60] sm:$0xff]
        %v3353 = vld [vmem:[#allocation2 + $0x68] sm:$0xff]
        %v3354 = vld [vmem:[#allocation2 + $0x70] sm:$0xff]
        %v3355 = vld [vmem:[#allocation2 + $0x78] sm:$0xff]
        %v3356 = vpack.c.bf16 %v3341, %v3340
        %v3357 = vpack.c.bf16 %v3343, %v3342
        %v3358 = vpack.c.bf16 %v3345, %v3344
        %v3359 = vpack.c.bf16 %v3347, %v3346
        %v3360 = vpack.c.bf16 %v3349, %v3348
        %v3361 = vpack.c.bf16 %v3351, %v3350
        %v3362 = vpack.c.bf16 %v3353, %v3352
        %v3363 = vpack.c.bf16 %v3355, %v3354
        %v3364 = vld [vmem:[#allocation9] sm:$0xf]
        %v3365 = vld [vmem:[#allocation9 + $0x4] sm:$0xf]
        %v3366 = vld [vmem:[#allocation9 + $0x8] sm:$0xf]
        %v3367 = vld [vmem:[#allocation9 + $0xc] sm:$0xf]
        %v3368 = vld [vmem:[#allocation9 + $0x10] sm:$0xf]
        %v3369 = vld [vmem:[#allocation9 + $0x14] sm:$0xf]
        %v3370 = vld [vmem:[#allocation9 + $0x18] sm:$0xf]
        %v3371 = vld [vmem:[#allocation9 + $0x1c] sm:$0xf]
        %v3372 = vld [vmem:[#allocation9 + $0x20] sm:$0xf]
        %v3373 = vld [vmem:[#allocation9 + $0x24] sm:$0xf]
        %v3374 = vld [vmem:[#allocation9 + $0x28] sm:$0xf]
        %v3375 = vld [vmem:[#allocation9 + $0x2c] sm:$0xf]
        %v3376 = vld [vmem:[#allocation9 + $0x30] sm:$0xf]
        %v3377 = vld [vmem:[#allocation9 + $0x34] sm:$0xf]
        %v3378 = vld [vmem:[#allocation9 + $0x38] sm:$0xf]
        %v3379 = vld [vmem:[#allocation9 + $0x3c] sm:$0xf]
        %v3380 = vld [vmem:[%s5] sm:$0x1]
        %v3382 = vperm.slane %v3380, 0
        %v3400 = vunpack.c.l.b16 %v3364
        %v3401 = vunpack.c.l.b16 %v3365
        %v3402 = vunpack.c.l.b16 %v3366
        %v3403 = vunpack.c.l.b16 %v3367
        %v3404 = vunpack.c.l.b16 %v3368
        %v3405 = vunpack.c.l.b16 %v3369
        %v3406 = vunpack.c.l.b16 %v3370
        %v3407 = vunpack.c.l.b16 %v3371
        %v3408 = vunpack.c.l.b16 %v3372
        %v3409 = vunpack.c.l.b16 %v3373
        %v3410 = vunpack.c.l.b16 %v3374
        %v3411 = vunpack.c.l.b16 %v3375
        %v3412 = vunpack.c.l.b16 %v3376
        %v3413 = vunpack.c.l.b16 %v3377
        %v3414 = vunpack.c.l.b16 %v3378
        %v3415 = vunpack.c.l.b16 %v3379
        %v3416 = vpack.c.b16 %v3401, %v3400
        %v3417 = vpack.c.b16 %v3403, %v3402
        %v3418 = vpack.c.b16 %v3405, %v3404
        %v3419 = vpack.c.b16 %v3407, %v3406
        %v3420 = vpack.c.b16 %v3409, %v3408
        %v3421 = vpack.c.b16 %v3411, %v3410
        %v3422 = vpack.c.b16 %v3413, %v3412
        %v3423 = vpack.c.b16 %v3415, %v3414
        %3432 = vmatpush.bf16.msra.mxu0 %v3423
        %3433 = vmatpush.bf16.msra.mxu0 %v3422
        %3434 = vmatpush.bf16.msra.mxu0 %v3421
        %3435 = vmatpush.bf16.msra.mxu0 %v3420
        %3436 = vmatpush.bf16.msra.mxu0 %v3419
        %3437 = vmatpush.bf16.msra.mxu0 %v3418
        %3438 = vmatpush.bf16.msra.mxu0 %v3417
        %3439 = vmatpush.bf16.msra.mxu0 %v3416
        %3440 = vmatmul.bf16.gmra.mxu0 %v3356
        %v3441 = vpop.f32.mrf.mxu0
        %v3442 = vadd.f32 %v3382, %v3441
        %v3443 = vpop.f32.mrf.mxu0
        %v3444 = vadd.f32 %v3382, %v3443
        %3445 = vmatmul.bf16.gmra.mxu0 %v3357
        %v3446 = vpop.f32.mrf.mxu0
        %v3447 = vadd.f32 %v3382, %v3446
        %v3448 = vpop.f32.mrf.mxu0
        %v3449 = vadd.f32 %v3382, %v3448
        %3450 = vmatmul.bf16.gmra.mxu0 %v3358
        %v3451 = vpop.f32.mrf.mxu0
        %v3452 = vadd.f32 %v3382, %v3451
        %v3453 = vpop.f32.mrf.mxu0
        %v3454 = vadd.f32 %v3382, %v3453
        %3455 = vmatmul.bf16.gmra.mxu0 %v3359
        %v3456 = vpop.f32.mrf.mxu0
        %v3457 = vadd.f32 %v3382, %v3456
        %v3458 = vpop.f32.mrf.mxu0
        %v3459 = vadd.f32 %v3382, %v3458
        %3460 = vmatmul.bf16.gmra.mxu0 %v3360
        %v3461 = vpop.f32.mrf.mxu0
        %v3462 = vadd.f32 %v3382, %v3461
        %v3463 = vpop.f32.mrf.mxu0
        %v3464 = vadd.f32 %v3382, %v3463
        %3465 = vmatmul.bf16.gmra.mxu0 %v3361
        %v3466 = vpop.f32.mrf.mxu0
        %v3467 = vadd.f32 %v3382, %v3466
        %v3468 = vpop.f32.mrf.mxu0
        %v3469 = vadd.f32 %v3382, %v3468
        %3470 = vmatmul.bf16.gmra.mxu0 %v3362
        %v3471 = vpop.f32.mrf.mxu0
        %v3472 = vadd.f32 %v3382, %v3471
        %v3473 = vpop.f32.mrf.mxu0
        %v3474 = vadd.f32 %v3382, %v3473
        %3475 = vmatmul.bf16.gmra.mxu0 %v3363
        %v3476 = vpop.f32.mrf.mxu0
        %v3477 = vadd.f32 %v3382, %v3476
        %v3478 = vpop.f32.mrf.mxu0
        %v3479 = vadd.f32 %v3382, %v3478
        %3480 = vdwg.mxu0
        %v3481 = vadd.f32 %v533, %v3442
        %v3482 = vadd.f32 %v534, %v3444
        %v3483 = vadd.f32 %v535, %v3447
        %v3484 = vadd.f32 %v536, %v3449
        %v3485 = vadd.f32 %v537, %v3452
        %v3486 = vadd.f32 %v538, %v3454
        %v3487 = vadd.f32 %v539, %v3457
        %v3488 = vadd.f32 %v540, %v3459
        %v3489 = vadd.f32 %v541, %v3462
        %v3490 = vadd.f32 %v542, %v3464
        %v3491 = vadd.f32 %v543, %v3467
        %v3492 = vadd.f32 %v544, %v3469
        %v3493 = vadd.f32 %v545, %v3472
        %v3494 = vadd.f32 %v546, %v3474
        %v3495 = vadd.f32 %v547, %v3477
        %v3496 = vadd.f32 %v548, %v3479
        %v3497 = vld [vmem:[%s6] sm:$0x1]
        %v3498 = vld [vmem:[#allocation11] sm:$0x1]
        %3499 = vadd.xlane.f32.xlu0 %v3481
        %v3500 = vpop.xlane.xlu0 %3499
        %3501 = vadd.xlane.f32.xlu0 %v3482
        %v3502 = vpop.xlane.xlu0 %3501
        %3503 = vadd.xlane.f32.xlu0 %v3483
        %v3504 = vpop.xlane.xlu0 %3503
        %3505 = vadd.xlane.f32.xlu0 %v3484
        %v3506 = vpop.xlane.xlu0 %3505
        %3507 = vadd.xlane.f32.xlu0 %v3485
        %v3508 = vpop.xlane.xlu0 %3507
        %3509 = vadd.xlane.f32.xlu0 %v3486
        %v3510 = vpop.xlane.xlu0 %3509
        %3511 = vadd.xlane.f32.xlu0 %v3487
        %v3512 = vpop.xlane.xlu0 %3511
        %3513 = vadd.xlane.f32.xlu0 %v3488
        %v3514 = vpop.xlane.xlu0 %3513
        %3515 = vadd.xlane.f32.xlu0 %v3489
        %v3516 = vpop.xlane.xlu0 %3515
        %3517 = vadd.xlane.f32.xlu0 %v3490
        %v3518 = vpop.xlane.xlu0 %3517
        %3519 = vadd.xlane.f32.xlu0 %v3491
        %v3520 = vpop.xlane.xlu0 %3519
        %3521 = vadd.xlane.f32.xlu0 %v3492
        %v3522 = vpop.xlane.xlu0 %3521
        %3523 = vadd.xlane.f32.xlu0 %v3493
        %v3524 = vpop.xlane.xlu0 %3523
        %3525 = vadd.xlane.f32.xlu0 %v3494
        %v3526 = vpop.xlane.xlu0 %3525
        %3527 = vadd.xlane.f32.xlu0 %v3495
        %v3528 = vpop.xlane.xlu0 %3527
        %3529 = vadd.xlane.f32.xlu0 %v3496
        %v3530 = vpop.xlane.xlu0 %3529
        %v3531 = vmul.f32 %v3500, %v589
        %v3532 = vmul.f32 %v3502, %v589
        %v3533 = vmul.f32 %v3504, %v589
        %v3534 = vmul.f32 %v3506, %v589
        %v3535 = vmul.f32 %v3508, %v589
        %v3536 = vmul.f32 %v3510, %v589
        %v3537 = vmul.f32 %v3512, %v589
        %v3538 = vmul.f32 %v3514, %v589
        %v3539 = vmul.f32 %v3516, %v589
        %v3540 = vmul.f32 %v3518, %v589
        %v3541 = vmul.f32 %v3520, %v589
        %v3542 = vmul.f32 %v3522, %v589
        %v3543 = vmul.f32 %v3524, %v589
        %v3544 = vmul.f32 %v3526, %v589
        %v3545 = vmul.f32 %v3528, %v589
        %v3546 = vmul.f32 %v3530, %v589
        %v3547 = vsub.f32 %v3481, %v3531
        %v3548 = vsub.f32 %v3482, %v3532
        %v3549 = vsub.f32 %v3483, %v3533
        %v3550 = vsub.f32 %v3484, %v3534
        %v3551 = vsub.f32 %v3485, %v3535
        %v3552 = vsub.f32 %v3486, %v3536
        %v3553 = vsub.f32 %v3487, %v3537
        %v3554 = vsub.f32 %v3488, %v3538
        %v3555 = vsub.f32 %v3489, %v3539
        %v3556 = vsub.f32 %v3490, %v3540
        %v3557 = vsub.f32 %v3491, %v3541
        %v3558 = vsub.f32 %v3492, %v3542
        %v3559 = vsub.f32 %v3493, %v3543
        %v3560 = vsub.f32 %v3494, %v3544
        %v3561 = vsub.f32 %v3495, %v3545
        %v3562 = vsub.f32 %v3496, %v3546
        %v3563 = vmul.f32 %v3547, %v3547
        %v3564 = vmul.f32 %v3548, %v3548
        %v3565 = vmul.f32 %v3549, %v3549
        %v3566 = vmul.f32 %v3550, %v3550
        %v3567 = vmul.f32 %v3551, %v3551
        %v3568 = vmul.f32 %v3552, %v3552
        %v3569 = vmul.f32 %v3553, %v3553
        %v3570 = vmul.f32 %v3554, %v3554
        %v3571 = vmul.f32 %v3555, %v3555
        %v3572 = vmul.f32 %v3556, %v3556
        %v3573 = vmul.f32 %v3557, %v3557
        %v3574 = vmul.f32 %v3558, %v3558
        %v3575 = vmul.f32 %v3559, %v3559
        %v3576 = vmul.f32 %v3560, %v3560
        %v3577 = vmul.f32 %v3561, %v3561
        %v3578 = vmul.f32 %v3562, %v3562
        %3579 = vadd.xlane.f32.xlu0 %v3563
        %v3580 = vpop.xlane.xlu0 %3579
        %3581 = vadd.xlane.f32.xlu0 %v3564
        %v3582 = vpop.xlane.xlu0 %3581
        %3583 = vadd.xlane.f32.xlu0 %v3565
        %v3584 = vpop.xlane.xlu0 %3583
        %3585 = vadd.xlane.f32.xlu0 %v3566
        %v3586 = vpop.xlane.xlu0 %3585
        %3587 = vadd.xlane.f32.xlu0 %v3567
        %v3588 = vpop.xlane.xlu0 %3587
        %3589 = vadd.xlane.f32.xlu0 %v3568
        %v3590 = vpop.xlane.xlu0 %3589
        %3591 = vadd.xlane.f32.xlu0 %v3569
        %v3592 = vpop.xlane.xlu0 %3591
        %3593 = vadd.xlane.f32.xlu0 %v3570
        %v3594 = vpop.xlane.xlu0 %3593
        %3595 = vadd.xlane.f32.xlu0 %v3571
        %v3596 = vpop.xlane.xlu0 %3595
        %3597 = vadd.xlane.f32.xlu0 %v3572
        %v3598 = vpop.xlane.xlu0 %3597
        %3599 = vadd.xlane.f32.xlu0 %v3573
        %v3600 = vpop.xlane.xlu0 %3599
        %3601 = vadd.xlane.f32.xlu0 %v3574
        %v3602 = vpop.xlane.xlu0 %3601
        %3603 = vadd.xlane.f32.xlu0 %v3575
        %v3604 = vpop.xlane.xlu0 %3603
        %3605 = vadd.xlane.f32.xlu0 %v3576
        %v3606 = vpop.xlane.xlu0 %3605
        %3607 = vadd.xlane.f32.xlu0 %v3577
        %v3608 = vpop.xlane.xlu0 %3607
        %3609 = vadd.xlane.f32.xlu0 %v3578
        %v3610 = vpop.xlane.xlu0 %3609
        %v3611 = vmul.f32 %v3580, %v589
        %v3612 = vmul.f32 %v3582, %v589
        %v3613 = vmul.f32 %v3584, %v589
        %v3614 = vmul.f32 %v3586, %v589
        %v3615 = vmul.f32 %v3588, %v589
        %v3616 = vmul.f32 %v3590, %v589
        %v3617 = vmul.f32 %v3592, %v589
        %v3618 = vmul.f32 %v3594, %v589
        %v3619 = vmul.f32 %v3596, %v589
        %v3620 = vmul.f32 %v3598, %v589
        %v3621 = vmul.f32 %v3600, %v589
        %v3622 = vmul.f32 %v3602, %v589
        %v3623 = vmul.f32 %v3604, %v589
        %v3624 = vmul.f32 %v3606, %v589
        %v3625 = vmul.f32 %v3608, %v589
        %v3626 = vmul.f32 %v3610, %v589
        %v3627 = vadd.f32 %v3611, 1e-05
        %v3628 = vadd.f32 %v3612, 1e-05
        %v3629 = vadd.f32 %v3613, 1e-05
        %v3630 = vadd.f32 %v3614, 1e-05
        %v3631 = vadd.f32 %v3615, 1e-05
        %v3632 = vadd.f32 %v3616, 1e-05
        %v3633 = vadd.f32 %v3617, 1e-05
        %v3634 = vadd.f32 %v3618, 1e-05
        %v3635 = vadd.f32 %v3619, 1e-05
        %v3636 = vadd.f32 %v3620, 1e-05
        %v3637 = vadd.f32 %v3621, 1e-05
        %v3638 = vadd.f32 %v3622, 1e-05
        %v3639 = vadd.f32 %v3623, 1e-05
        %v3640 = vadd.f32 %v3624, 1e-05
        %v3641 = vadd.f32 %v3625, 1e-05
        %v3642 = vadd.f32 %v3626, 1e-05
        %v3643 = vrsqrt.pop %v3627
        %v3644 = vmul.f32 %v3643, %v3627
        %v3645 = vmul.f32 %v3644, %v3643
        %v3646 = vmul.f32 0.5, %v3645
        %v3647 = vsub.f32 1.5, %v3646
        %v3648 = vmul.f32 %v3643, %v3647
        %vm3649 = vweird.f32 %v3627
        %vm3650 = vweird.f32 %v3643
        %vm3651 = vmor %vm3649, %vm3650
        %v3652 = vsel %vm3651, %v3643, %v3648
        %v3653 = vrsqrt.pop %v3628
        %v3654 = vmul.f32 %v3653, %v3628
        %v3655 = vmul.f32 %v3654, %v3653
        %v3656 = vmul.f32 0.5, %v3655
        %v3657 = vsub.f32 1.5, %v3656
        %v3658 = vmul.f32 %v3653, %v3657
        %vm3659 = vweird.f32 %v3628
        %vm3660 = vweird.f32 %v3653
        %vm3661 = vmor %vm3659, %vm3660
        %v3662 = vsel %vm3661, %v3653, %v3658
        %v3663 = vrsqrt.pop %v3629
        %v3664 = vmul.f32 %v3663, %v3629
        %v3665 = vmul.f32 %v3664, %v3663
        %v3666 = vmul.f32 0.5, %v3665
        %v3667 = vsub.f32 1.5, %v3666
        %v3668 = vmul.f32 %v3663, %v3667
        %vm3669 = vweird.f32 %v3629
        %vm3670 = vweird.f32 %v3663
        %vm3671 = vmor %vm3669, %vm3670
        %v3672 = vsel %vm3671, %v3663, %v3668
        %v3673 = vrsqrt.pop %v3630
        %v3674 = vmul.f32 %v3673, %v3630
        %v3675 = vmul.f32 %v3674, %v3673
        %v3676 = vmul.f32 0.5, %v3675
        %v3677 = vsub.f32 1.5, %v3676
        %v3678 = vmul.f32 %v3673, %v3677
        %vm3679 = vweird.f32 %v3630
        %vm3680 = vweird.f32 %v3673
        %vm3681 = vmor %vm3679, %vm3680
        %v3682 = vsel %vm3681, %v3673, %v3678
        %v3683 = vrsqrt.pop %v3631
        %v3684 = vmul.f32 %v3683, %v3631
        %v3685 = vmul.f32 %v3684, %v3683
        %v3686 = vmul.f32 0.5, %v3685
        %v3687 = vsub.f32 1.5, %v3686
        %v3688 = vmul.f32 %v3683, %v3687
        %vm3689 = vweird.f32 %v3631
        %vm3690 = vweird.f32 %v3683
        %vm3691 = vmor %vm3689, %vm3690
        %v3692 = vsel %vm3691, %v3683, %v3688
        %v3693 = vrsqrt.pop %v3632
        %v3694 = vmul.f32 %v3693, %v3632
        %v3695 = vmul.f32 %v3694, %v3693
        %v3696 = vmul.f32 0.5, %v3695
        %v3697 = vsub.f32 1.5, %v3696
        %v3698 = vmul.f32 %v3693, %v3697
        %vm3699 = vweird.f32 %v3632
        %vm3700 = vweird.f32 %v3693
        %vm3701 = vmor %vm3699, %vm3700
        %v3702 = vsel %vm3701, %v3693, %v3698
        %v3703 = vrsqrt.pop %v3633
        %v3704 = vmul.f32 %v3703, %v3633
        %v3705 = vmul.f32 %v3704, %v3703
        %v3706 = vmul.f32 0.5, %v3705
        %v3707 = vsub.f32 1.5, %v3706
        %v3708 = vmul.f32 %v3703, %v3707
        %vm3709 = vweird.f32 %v3633
        %vm3710 = vweird.f32 %v3703
        %vm3711 = vmor %vm3709, %vm3710
        %v3712 = vsel %vm3711, %v3703, %v3708
        %v3713 = vrsqrt.pop %v3634
        %v3714 = vmul.f32 %v3713, %v3634
        %v3715 = vmul.f32 %v3714, %v3713
        %v3716 = vmul.f32 0.5, %v3715
        %v3717 = vsub.f32 1.5, %v3716
        %v3718 = vmul.f32 %v3713, %v3717
        %vm3719 = vweird.f32 %v3634
        %vm3720 = vweird.f32 %v3713
        %vm3721 = vmor %vm3719, %vm3720
        %v3722 = vsel %vm3721, %v3713, %v3718
        %v3723 = vrsqrt.pop %v3635
        %v3724 = vmul.f32 %v3723, %v3635
        %v3725 = vmul.f32 %v3724, %v3723
        %v3726 = vmul.f32 0.5, %v3725
        %v3727 = vsub.f32 1.5, %v3726
        %v3728 = vmul.f32 %v3723, %v3727
        %vm3729 = vweird.f32 %v3635
        %vm3730 = vweird.f32 %v3723
        %vm3731 = vmor %vm3729, %vm3730
        %v3732 = vsel %vm3731, %v3723, %v3728
        %v3733 = vrsqrt.pop %v3636
        %v3734 = vmul.f32 %v3733, %v3636
        %v3735 = vmul.f32 %v3734, %v3733
        %v3736 = vmul.f32 0.5, %v3735
        %v3737 = vsub.f32 1.5, %v3736
        %v3738 = vmul.f32 %v3733, %v3737
        %vm3739 = vweird.f32 %v3636
        %vm3740 = vweird.f32 %v3733
        %vm3741 = vmor %vm3739, %vm3740
        %v3742 = vsel %vm3741, %v3733, %v3738
        %v3743 = vrsqrt.pop %v3637
        %v3744 = vmul.f32 %v3743, %v3637
        %v3745 = vmul.f32 %v3744, %v3743
        %v3746 = vmul.f32 0.5, %v3745
        %v3747 = vsub.f32 1.5, %v3746
        %v3748 = vmul.f32 %v3743, %v3747
        %vm3749 = vweird.f32 %v3637
        %vm3750 = vweird.f32 %v3743
        %vm3751 = vmor %vm3749, %vm3750
        %v3752 = vsel %vm3751, %v3743, %v3748
        %v3753 = vrsqrt.pop %v3638
        %v3754 = vmul.f32 %v3753, %v3638
        %v3755 = vmul.f32 %v3754, %v3753
        %v3756 = vmul.f32 0.5, %v3755
        %v3757 = vsub.f32 1.5, %v3756
        %v3758 = vmul.f32 %v3753, %v3757
        %vm3759 = vweird.f32 %v3638
        %vm3760 = vweird.f32 %v3753
        %vm3761 = vmor %vm3759, %vm3760
        %v3762 = vsel %vm3761, %v3753, %v3758
        %v3763 = vrsqrt.pop %v3639
        %v3764 = vmul.f32 %v3763, %v3639
        %v3765 = vmul.f32 %v3764, %v3763
        %v3766 = vmul.f32 0.5, %v3765
        %v3767 = vsub.f32 1.5, %v3766
        %v3768 = vmul.f32 %v3763, %v3767
        %vm3769 = vweird.f32 %v3639
        %vm3770 = vweird.f32 %v3763
        %vm3771 = vmor %vm3769, %vm3770
        %v3772 = vsel %vm3771, %v3763, %v3768
        %v3773 = vrsqrt.pop %v3640
        %v3774 = vmul.f32 %v3773, %v3640
        %v3775 = vmul.f32 %v3774, %v3773
        %v3776 = vmul.f32 0.5, %v3775
        %v3777 = vsub.f32 1.5, %v3776
        %v3778 = vmul.f32 %v3773, %v3777
        %vm3779 = vweird.f32 %v3640
        %vm3780 = vweird.f32 %v3773
        %vm3781 = vmor %vm3779, %vm3780
        %v3782 = vsel %vm3781, %v3773, %v3778
        %v3783 = vrsqrt.pop %v3641
        %v3784 = vmul.f32 %v3783, %v3641
        %v3785 = vmul.f32 %v3784, %v3783
        %v3786 = vmul.f32 0.5, %v3785
        %v3787 = vsub.f32 1.5, %v3786
        %v3788 = vmul.f32 %v3783, %v3787
        %vm3789 = vweird.f32 %v3641
        %vm3790 = vweird.f32 %v3783
        %vm3791 = vmor %vm3789, %vm3790
        %v3792 = vsel %vm3791, %v3783, %v3788
        %v3793 = vrsqrt.pop %v3642
        %v3794 = vmul.f32 %v3793, %v3642
        %v3795 = vmul.f32 %v3794, %v3793
        %v3796 = vmul.f32 0.5, %v3795
        %v3797 = vsub.f32 1.5, %v3796
        %v3798 = vmul.f32 %v3793, %v3797
        %vm3799 = vweird.f32 %v3642
        %vm3800 = vweird.f32 %v3793
        %vm3801 = vmor %vm3799, %vm3800
        %v3802 = vsel %vm3801, %v3793, %v3798
        %v3803 = vmul.f32 %v3547, %v3652
        %v3804 = vmul.f32 %v3548, %v3662
        %v3805 = vmul.f32 %v3549, %v3672
        %v3806 = vmul.f32 %v3550, %v3682
        %v3807 = vmul.f32 %v3551, %v3692
        %v3808 = vmul.f32 %v3552, %v3702
        %v3809 = vmul.f32 %v3553, %v3712
        %v3810 = vmul.f32 %v3554, %v3722
        %v3811 = vmul.f32 %v3555, %v3732
        %v3812 = vmul.f32 %v3556, %v3742
        %v3813 = vmul.f32 %v3557, %v3752
        %v3814 = vmul.f32 %v3558, %v3762
        %v3815 = vmul.f32 %v3559, %v3772
        %v3816 = vmul.f32 %v3560, %v3782
        %v3817 = vmul.f32 %v3561, %v3792
        %v3818 = vmul.f32 %v3562, %v3802
        %v3820 = vperm.slane %v3497, 0
        %v3822 = vmul.f32 %v3803, %v3820
        %v3823 = vmul.f32 %v3804, %v3820
        %v3824 = vmul.f32 %v3805, %v3820
        %v3825 = vmul.f32 %v3806, %v3820
        %v3826 = vmul.f32 %v3807, %v3820
        %v3827 = vmul.f32 %v3808, %v3820
        %v3828 = vmul.f32 %v3809, %v3820
        %v3829 = vmul.f32 %v3810, %v3820
        %v3830 = vmul.f32 %v3811, %v3820
        %v3831 = vmul.f32 %v3812, %v3820
        %v3832 = vmul.f32 %v3813, %v3820
        %v3833 = vmul.f32 %v3814, %v3820
        %v3834 = vmul.f32 %v3815, %v3820
        %v3835 = vmul.f32 %v3816, %v3820
        %v3836 = vmul.f32 %v3817, %v3820
        %v3837 = vmul.f32 %v3818, %v3820
        %v3839 = vperm.slane %v3498, 0
        %v3841 = vadd.f32 %v3822, %v3839
        %v3842 = vadd.f32 %v3823, %v3839
        %v3843 = vadd.f32 %v3824, %v3839
        %v3844 = vadd.f32 %v3825, %v3839
        %v3845 = vadd.f32 %v3826, %v3839
        %v3846 = vadd.f32 %v3827, %v3839
        %v3847 = vadd.f32 %v3828, %v3839
        %v3848 = vadd.f32 %v3829, %v3839
        %v3849 = vadd.f32 %v3830, %v3839
        %v3850 = vadd.f32 %v3831, %v3839
        %v3851 = vadd.f32 %v3832, %v3839
        %v3852 = vadd.f32 %v3833, %v3839
        %v3853 = vadd.f32 %v3834, %v3839
        %v3854 = vadd.f32 %v3835, %v3839
        %v3855 = vadd.f32 %v3836, %v3839
        %v3856 = vadd.f32 %v3837, %v3839
        %v3857 = vpack.c.bf16 %v3842, %v3841
        %v3858 = vpack.c.bf16 %v3844, %v3843
        %v3859 = vpack.c.bf16 %v3846, %v3845
        %v3860 = vpack.c.bf16 %v3848, %v3847
        %v3861 = vpack.c.bf16 %v3850, %v3849
        %v3862 = vpack.c.bf16 %v3852, %v3851
        %v3863 = vpack.c.bf16 %v3854, %v3853
        %v3864 = vpack.c.bf16 %v3856, %v3855
        %v3865 = vld [vmem:[#allocation12] sm:$0xff]
        %v3866 = vld [vmem:[#allocation12 + $0x8] sm:$0xff]
        %v3867 = vld [vmem:[#allocation12 + $0x10] sm:$0xff]
        %v3868 = vld [vmem:[#allocation12 + $0x18] sm:$0xff]
        %v3869 = vld [vmem:[#allocation12 + $0x20] sm:$0xff]
        %v3870 = vld [vmem:[#allocation12 + $0x28] sm:$0xff]
        %v3871 = vld [vmem:[#allocation12 + $0x30] sm:$0xff]
        %v3872 = vld [vmem:[#allocation12 + $0x38] sm:$0xff]
        %v3873 = vld [vmem:[#allocation12 + $0x40] sm:$0xff]
        %v3874 = vld [vmem:[#allocation12 + $0x48] sm:$0xff]
        %v3875 = vld [vmem:[#allocation12 + $0x50] sm:$0xff]
        %v3876 = vld [vmem:[#allocation12 + $0x58] sm:$0xff]
        %v3877 = vld [vmem:[#allocation12 + $0x60] sm:$0xff]
        %v3878 = vld [vmem:[#allocation12 + $0x68] sm:$0xff]
        %v3879 = vld [vmem:[#allocation12 + $0x70] sm:$0xff]
        %v3880 = vld [vmem:[#allocation12 + $0x78] sm:$0xff]
        %v3881 = vld [vmem:[#allocation12 + $0x80] sm:$0xff]
        %v3882 = vld [vmem:[#allocation12 + $0x88] sm:$0xff]
        %v3883 = vld [vmem:[#allocation12 + $0x90] sm:$0xff]
        %v3884 = vld [vmem:[#allocation12 + $0x98] sm:$0xff]
        %v3885 = vld [vmem:[#allocation12 + $0xa0] sm:$0xff]
        %v3886 = vld [vmem:[#allocation12 + $0xa8] sm:$0xff]
        %v3887 = vld [vmem:[#allocation12 + $0xb0] sm:$0xff]
        %v3888 = vld [vmem:[#allocation12 + $0xb8] sm:$0xff]
        %v3889 = vld [vmem:[#allocation12 + $0xc0] sm:$0xff]
        %v3890 = vld [vmem:[#allocation12 + $0xc8] sm:$0xff]
        %v3891 = vld [vmem:[#allocation12 + $0xd0] sm:$0xff]
        %v3892 = vld [vmem:[#allocation12 + $0xd8] sm:$0xff]
        %v3893 = vld [vmem:[#allocation12 + $0xe0] sm:$0xff]
        %v3894 = vld [vmem:[#allocation12 + $0xe8] sm:$0xff]
        %v3895 = vld [vmem:[#allocation12 + $0xf0] sm:$0xff]
        %v3896 = vld [vmem:[#allocation12 + $0xf8] sm:$0xff]
        %v3897 = vld [vmem:[%s9] sm:$0xf]
        %v3899 = vperm.slane %v3897, 0
        %v3900 = vperm.slane %v3897, 1
        %v3901 = vperm.slane %v3897, 2
        %v3902 = vperm.slane %v3897, 3
        %v3939 = vunpack.c.l.b16 %v3865
        %v3940 = vunpack.c.h.b16 %v3865
        %v3941 = vunpack.c.l.b16 %v3866
        %v3942 = vunpack.c.h.b16 %v3866
        %v3943 = vunpack.c.l.b16 %v3867
        %v3944 = vunpack.c.h.b16 %v3867
        %v3945 = vunpack.c.l.b16 %v3868
        %v3946 = vunpack.c.h.b16 %v3868
        %v3947 = vunpack.c.l.b16 %v3869
        %v3948 = vunpack.c.h.b16 %v3869
        %v3949 = vunpack.c.l.b16 %v3870
        %v3950 = vunpack.c.h.b16 %v3870
        %v3951 = vunpack.c.l.b16 %v3871
        %v3952 = vunpack.c.h.b16 %v3871
        %v3953 = vunpack.c.l.b16 %v3872
        %v3954 = vunpack.c.h.b16 %v3872
        %v3955 = vunpack.c.l.b16 %v3873
        %v3956 = vunpack.c.h.b16 %v3873
        %v3957 = vunpack.c.l.b16 %v3874
        %v3958 = vunpack.c.h.b16 %v3874
        %v3959 = vunpack.c.l.b16 %v3875
        %v3960 = vunpack.c.h.b16 %v3875
        %v3961 = vunpack.c.l.b16 %v3876
        %v3962 = vunpack.c.h.b16 %v3876
        %v3963 = vunpack.c.l.b16 %v3877
        %v3964 = vunpack.c.h.b16 %v3877
        %v3965 = vunpack.c.l.b16 %v3878
        %v3966 = vunpack.c.h.b16 %v3878
        %v3967 = vunpack.c.l.b16 %v3879
        %v3968 = vunpack.c.h.b16 %v3879
        %v3969 = vunpack.c.l.b16 %v3880
        %v3970 = vunpack.c.h.b16 %v3880
        %v3971 = vunpack.c.l.b16 %v3881
        %v3972 = vunpack.c.h.b16 %v3881
        %v3973 = vunpack.c.l.b16 %v3882
        %v3974 = vunpack.c.h.b16 %v3882
        %v3975 = vunpack.c.l.b16 %v3883
        %v3976 = vunpack.c.h.b16 %v3883
        %v3977 = vunpack.c.l.b16 %v3884
        %v3978 = vunpack.c.h.b16 %v3884
        %v3979 = vunpack.c.l.b16 %v3885
        %v3980 = vunpack.c.h.b16 %v3885
        %v3981 = vunpack.c.l.b16 %v3886
        %v3982 = vunpack.c.h.b16 %v3886
        %v3983 = vunpack.c.l.b16 %v3887
        %v3984 = vunpack.c.h.b16 %v3887
        %v3985 = vunpack.c.l.b16 %v3888
        %v3986 = vunpack.c.h.b16 %v3888
        %v3987 = vunpack.c.l.b16 %v3889
        %v3988 = vunpack.c.h.b16 %v3889
        %v3989 = vunpack.c.l.b16 %v3890
        %v3990 = vunpack.c.h.b16 %v3890
        %v3991 = vunpack.c.l.b16 %v3891
        %v3992 = vunpack.c.h.b16 %v3891
        %v3993 = vunpack.c.l.b16 %v3892
        %v3994 = vunpack.c.h.b16 %v3892
        %v3995 = vunpack.c.l.b16 %v3893
        %v3996 = vunpack.c.h.b16 %v3893
        %v3997 = vunpack.c.l.b16 %v3894
        %v3998 = vunpack.c.h.b16 %v3894
        %v3999 = vunpack.c.l.b16 %v3895
        %v4000 = vunpack.c.h.b16 %v3895
        %v4001 = vunpack.c.l.b16 %v3896
        %v4002 = vunpack.c.h.b16 %v3896
        %v4003 = vpack.c.b16 %v3943, %v3939
        %v4004 = vpack.c.b16 %v3944, %v3940
        %v4005 = vpack.c.b16 %v3945, %v3941
        %v4006 = vpack.c.b16 %v3946, %v3942
        %v4007 = vpack.c.b16 %v3951, %v3947
        %v4008 = vpack.c.b16 %v3952, %v3948
        %v4009 = vpack.c.b16 %v3953, %v3949
        %v4010 = vpack.c.b16 %v3954, %v3950
        %v4011 = vpack.c.b16 %v3959, %v3955
        %v4012 = vpack.c.b16 %v3960, %v3956
        %v4013 = vpack.c.b16 %v3961, %v3957
        %v4014 = vpack.c.b16 %v3962, %v3958
        %v4015 = vpack.c.b16 %v3967, %v3963
        %v4016 = vpack.c.b16 %v3968, %v3964
        %v4017 = vpack.c.b16 %v3969, %v3965
        %v4018 = vpack.c.b16 %v3970, %v3966
        %v4019 = vpack.c.b16 %v3975, %v3971
        %v4020 = vpack.c.b16 %v3976, %v3972
        %v4021 = vpack.c.b16 %v3977, %v3973
        %v4022 = vpack.c.b16 %v3978, %v3974
        %v4023 = vpack.c.b16 %v3983, %v3979
        %v4024 = vpack.c.b16 %v3984, %v3980
        %v4025 = vpack.c.b16 %v3985, %v3981
        %v4026 = vpack.c.b16 %v3986, %v3982
        %v4027 = vpack.c.b16 %v3991, %v3987
        %v4028 = vpack.c.b16 %v3992, %v3988
        %v4029 = vpack.c.b16 %v3993, %v3989
        %v4030 = vpack.c.b16 %v3994, %v3990
        %v4031 = vpack.c.b16 %v3999, %v3995
        %v4032 = vpack.c.b16 %v4000, %v3996
        %v4033 = vpack.c.b16 %v4001, %v3997
        %v4034 = vpack.c.b16 %v4002, %v3998
        %4067 = vmatpush.bf16.msra.mxu0 %v4031
        %4068 = vmatpush.bf16.msra.mxu0 %v4027
        %4069 = vmatpush.bf16.msra.mxu0 %v4023
        %4070 = vmatpush.bf16.msra.mxu0 %v4019
        %4071 = vmatpush.bf16.msra.mxu0 %v4015
        %4072 = vmatpush.bf16.msra.mxu0 %v4011
        %4073 = vmatpush.bf16.msra.mxu0 %v4007
        %4074 = vmatpush.bf16.msra.mxu0 %v4003
        %4075 = vmatmul.bf16.gmra.mxu0 %v3857
        %v4076 = vpop.f32.mrf.mxu0
        %v4077 = vadd.f32 %v3899, %v4076
        %v4078 = vpop.f32.mrf.mxu0
        %v4079 = vadd.f32 %v3899, %v4078
        %4080 = vmatmul.bf16.gmra.mxu0 %v3858
        %v4081 = vpop.f32.mrf.mxu0
        %v4082 = vadd.f32 %v3899, %v4081
        %v4083 = vpop.f32.mrf.mxu0
        %v4084 = vadd.f32 %v3899, %v4083
        %4085 = vmatmul.bf16.gmra.mxu0 %v3859
        %v4086 = vpop.f32.mrf.mxu0
        %v4087 = vadd.f32 %v3899, %v4086
        %v4088 = vpop.f32.mrf.mxu0
        %v4089 = vadd.f32 %v3899, %v4088
        %4090 = vmatmul.bf16.gmra.mxu0 %v3860
        %v4091 = vpop.f32.mrf.mxu0
        %v4092 = vadd.f32 %v3899, %v4091
        %v4093 = vpop.f32.mrf.mxu0
        %v4094 = vadd.f32 %v3899, %v4093
        %4095 = vmatmul.bf16.gmra.mxu0 %v3861
        %v4096 = vpop.f32.mrf.mxu0
        %v4097 = vadd.f32 %v3899, %v4096
        %v4098 = vpop.f32.mrf.mxu0
        %v4099 = vadd.f32 %v3899, %v4098
        %4100 = vmatmul.bf16.gmra.mxu0 %v3862
        %v4101 = vpop.f32.mrf.mxu0
        %v4102 = vadd.f32 %v3899, %v4101
        %v4103 = vpop.f32.mrf.mxu0
        %v4104 = vadd.f32 %v3899, %v4103
        %4105 = vmatmul.bf16.gmra.mxu0 %v3863
        %v4106 = vpop.f32.mrf.mxu0
        %v4107 = vadd.f32 %v3899, %v4106
        %v4108 = vpop.f32.mrf.mxu0
        %v4109 = vadd.f32 %v3899, %v4108
        %4110 = vmatmul.bf16.gmra.mxu0 %v3864
        %v4111 = vpop.f32.mrf.mxu0
        %v4112 = vadd.f32 %v3899, %v4111
        %v4113 = vpop.f32.mrf.mxu0
        %v4114 = vadd.f32 %v3899, %v4113
        %4115 = vdwg.mxu0
        %4116 = vmatpush.bf16.msra.mxu0 %v4032
        %4117 = vmatpush.bf16.msra.mxu0 %v4028
        %4118 = vmatpush.bf16.msra.mxu0 %v4024
        %4119 = vmatpush.bf16.msra.mxu0 %v4020
        %4120 = vmatpush.bf16.msra.mxu0 %v4016
        %4121 = vmatpush.bf16.msra.mxu0 %v4012
        %4122 = vmatpush.bf16.msra.mxu0 %v4008
        %4123 = vmatpush.bf16.msra.mxu0 %v4004
        %4124 = vmatmul.bf16.gmra.mxu0 %v3857
        %v4125 = vpop.f32.mrf.mxu0
        %v4126 = vadd.f32 %v3900, %v4125
        %v4127 = vpop.f32.mrf.mxu0
        %v4128 = vadd.f32 %v3900, %v4127
        %4129 = vmatmul.bf16.gmra.mxu0 %v3858
        %v4130 = vpop.f32.mrf.mxu0
        %v4131 = vadd.f32 %v3900, %v4130
        %v4132 = vpop.f32.mrf.mxu0
        %v4133 = vadd.f32 %v3900, %v4132
        %4134 = vmatmul.bf16.gmra.mxu0 %v3859
        %v4135 = vpop.f32.mrf.mxu0
        %v4136 = vadd.f32 %v3900, %v4135
        %v4137 = vpop.f32.mrf.mxu0
        %v4138 = vadd.f32 %v3900, %v4137
        %4139 = vmatmul.bf16.gmra.mxu0 %v3860
        %v4140 = vpop.f32.mrf.mxu0
        %v4141 = vadd.f32 %v3900, %v4140
        %v4142 = vpop.f32.mrf.mxu0
        %v4143 = vadd.f32 %v3900, %v4142
        %4144 = vmatmul.bf16.gmra.mxu0 %v3861
        %v4145 = vpop.f32.mrf.mxu0
        %v4146 = vadd.f32 %v3900, %v4145
        %v4147 = vpop.f32.mrf.mxu0
        %v4148 = vadd.f32 %v3900, %v4147
        %4149 = vmatmul.bf16.gmra.mxu0 %v3862
        %v4150 = vpop.f32.mrf.mxu0
        %v4151 = vadd.f32 %v3900, %v4150
        %v4152 = vpop.f32.mrf.mxu0
        %v4153 = vadd.f32 %v3900, %v4152
        %4154 = vmatmul.bf16.gmra.mxu0 %v3863
        %v4155 = vpop.f32.mrf.mxu0
        %v4156 = vadd.f32 %v3900, %v4155
        %v4157 = vpop.f32.mrf.mxu0
        %v4158 = vadd.f32 %v3900, %v4157
        %4159 = vmatmul.bf16.gmra.mxu0 %v3864
        %v4160 = vpop.f32.mrf.mxu0
        %v4161 = vadd.f32 %v3900, %v4160
        %v4162 = vpop.f32.mrf.mxu0
        %v4163 = vadd.f32 %v3900, %v4162
        %4164 = vdwg.mxu0
        %4165 = vmatpush.bf16.msra.mxu0 %v4033
        %4166 = vmatpush.bf16.msra.mxu0 %v4029
        %4167 = vmatpush.bf16.msra.mxu0 %v4025
        %4168 = vmatpush.bf16.msra.mxu0 %v4021
        %4169 = vmatpush.bf16.msra.mxu0 %v4017
        %4170 = vmatpush.bf16.msra.mxu0 %v4013
        %4171 = vmatpush.bf16.msra.mxu0 %v4009
        %4172 = vmatpush.bf16.msra.mxu0 %v4005
        %4173 = vmatmul.bf16.gmra.mxu0 %v3857
        %v4174 = vpop.f32.mrf.mxu0
        %v4175 = vadd.f32 %v3901, %v4174
        %v4176 = vpop.f32.mrf.mxu0
        %v4177 = vadd.f32 %v3901, %v4176
        %4178 = vmatmul.bf16.gmra.mxu0 %v3858
        %v4179 = vpop.f32.mrf.mxu0
        %v4180 = vadd.f32 %v3901, %v4179
        %v4181 = vpop.f32.mrf.mxu0
        %v4182 = vadd.f32 %v3901, %v4181
        %4183 = vmatmul.bf16.gmra.mxu0 %v3859
        %v4184 = vpop.f32.mrf.mxu0
        %v4185 = vadd.f32 %v3901, %v4184
        %v4186 = vpop.f32.mrf.mxu0
        %v4187 = vadd.f32 %v3901, %v4186
        %4188 = vmatmul.bf16.gmra.mxu0 %v3860
        %v4189 = vpop.f32.mrf.mxu0
        %v4190 = vadd.f32 %v3901, %v4189
        %v4191 = vpop.f32.mrf.mxu0
        %v4192 = vadd.f32 %v3901, %v4191
        %4193 = vmatmul.bf16.gmra.mxu0 %v3861
        %v4194 = vpop.f32.mrf.mxu0
        %v4195 = vadd.f32 %v3901, %v4194
        %v4196 = vpop.f32.mrf.mxu0
        %v4197 = vadd.f32 %v3901, %v4196
        %4198 = vmatmul.bf16.gmra.mxu0 %v3862
        %v4199 = vpop.f32.mrf.mxu0
        %v4200 = vadd.f32 %v3901, %v4199
        %v4201 = vpop.f32.mrf.mxu0
        %v4202 = vadd.f32 %v3901, %v4201
        %4203 = vmatmul.bf16.gmra.mxu0 %v3863
        %v4204 = vpop.f32.mrf.mxu0
        %v4205 = vadd.f32 %v3901, %v4204
        %v4206 = vpop.f32.mrf.mxu0
        %v4207 = vadd.f32 %v3901, %v4206
        %4208 = vmatmul.bf16.gmra.mxu0 %v3864
        %v4209 = vpop.f32.mrf.mxu0
        %v4210 = vadd.f32 %v3901, %v4209
        %v4211 = vpop.f32.mrf.mxu0
        %v4212 = vadd.f32 %v3901, %v4211
        %4213 = vdwg.mxu0
        %4214 = vmatpush.bf16.msra.mxu0 %v4034
        %4215 = vmatpush.bf16.msra.mxu0 %v4030
        %4216 = vmatpush.bf16.msra.mxu0 %v4026
        %4217 = vmatpush.bf16.msra.mxu0 %v4022
        %4218 = vmatpush.bf16.msra.mxu0 %v4018
        %4219 = vmatpush.bf16.msra.mxu0 %v4014
        %4220 = vmatpush.bf16.msra.mxu0 %v4010
        %4221 = vmatpush.bf16.msra.mxu0 %v4006
        %4222 = vmatmul.bf16.gmra.mxu0 %v3857
        %v4223 = vpop.f32.mrf.mxu0
        %v4224 = vadd.f32 %v3902, %v4223
        %v4225 = vpop.f32.mrf.mxu0
        %v4226 = vadd.f32 %v3902, %v4225
        %4227 = vmatmul.bf16.gmra.mxu0 %v3858
        %v4228 = vpop.f32.mrf.mxu0
        %v4229 = vadd.f32 %v3902, %v4228
        %v4230 = vpop.f32.mrf.mxu0
        %v4231 = vadd.f32 %v3902, %v4230
        %4232 = vmatmul.bf16.gmra.mxu0 %v3859
        %v4233 = vpop.f32.mrf.mxu0
        %v4234 = vadd.f32 %v3902, %v4233
        %v4235 = vpop.f32.mrf.mxu0
        %v4236 = vadd.f32 %v3902, %v4235
        %4237 = vmatmul.bf16.gmra.mxu0 %v3860
        %v4238 = vpop.f32.mrf.mxu0
        %v4239 = vadd.f32 %v3902, %v4238
        %v4240 = vpop.f32.mrf.mxu0
        %v4241 = vadd.f32 %v3902, %v4240
        %4242 = vmatmul.bf16.gmra.mxu0 %v3861
        %v4243 = vpop.f32.mrf.mxu0
        %v4244 = vadd.f32 %v3902, %v4243
        %v4245 = vpop.f32.mrf.mxu0
        %v4246 = vadd.f32 %v3902, %v4245
        %4247 = vmatmul.bf16.gmra.mxu0 %v3862
        %v4248 = vpop.f32.mrf.mxu0
        %v4249 = vadd.f32 %v3902, %v4248
        %v4250 = vpop.f32.mrf.mxu0
        %v4251 = vadd.f32 %v3902, %v4250
        %4252 = vmatmul.bf16.gmra.mxu0 %v3863
        %v4253 = vpop.f32.mrf.mxu0
        %v4254 = vadd.f32 %v3902, %v4253
        %v4255 = vpop.f32.mrf.mxu0
        %v4256 = vadd.f32 %v3902, %v4255
        %4257 = vmatmul.bf16.gmra.mxu0 %v3864
        %v4258 = vpop.f32.mrf.mxu0
        %v4259 = vadd.f32 %v3902, %v4258
        %v4260 = vpop.f32.mrf.mxu0
        %v4261 = vadd.f32 %v3902, %v4260
        %4262 = vdwg.mxu0
        %v4263 = vmul.f32 %v4077, %v4077
        %v4264 = vmul.f32 %v4126, %v4126
        %v4265 = vmul.f32 %v4175, %v4175
        %v4266 = vmul.f32 %v4224, %v4224
        %v4267 = vmul.f32 %v4079, %v4079
        %v4268 = vmul.f32 %v4128, %v4128
        %v4269 = vmul.f32 %v4177, %v4177
        %v4270 = vmul.f32 %v4226, %v4226
        %v4271 = vmul.f32 %v4082, %v4082
        %v4272 = vmul.f32 %v4131, %v4131
        %v4273 = vmul.f32 %v4180, %v4180
        %v4274 = vmul.f32 %v4229, %v4229
        %v4275 = vmul.f32 %v4084, %v4084
        %v4276 = vmul.f32 %v4133, %v4133
        %v4277 = vmul.f32 %v4182, %v4182
        %v4278 = vmul.f32 %v4231, %v4231
        %v4279 = vmul.f32 %v4087, %v4087
        %v4280 = vmul.f32 %v4136, %v4136
        %v4281 = vmul.f32 %v4185, %v4185
        %v4282 = vmul.f32 %v4234, %v4234
        %v4283 = vmul.f32 %v4089, %v4089
        %v4284 = vmul.f32 %v4138, %v4138
        %v4285 = vmul.f32 %v4187, %v4187
        %v4286 = vmul.f32 %v4236, %v4236
        %v4287 = vmul.f32 %v4092, %v4092
        %v4288 = vmul.f32 %v4141, %v4141
        %v4289 = vmul.f32 %v4190, %v4190
        %v4290 = vmul.f32 %v4239, %v4239
        %v4291 = vmul.f32 %v4094, %v4094
        %v4292 = vmul.f32 %v4143, %v4143
        %v4293 = vmul.f32 %v4192, %v4192
        %v4294 = vmul.f32 %v4241, %v4241
        %v4295 = vmul.f32 %v4097, %v4097
        %v4296 = vmul.f32 %v4146, %v4146
        %v4297 = vmul.f32 %v4195, %v4195
        %v4298 = vmul.f32 %v4244, %v4244
        %v4299 = vmul.f32 %v4099, %v4099
        %v4300 = vmul.f32 %v4148, %v4148
        %v4301 = vmul.f32 %v4197, %v4197
        %v4302 = vmul.f32 %v4246, %v4246
        %v4303 = vmul.f32 %v4102, %v4102
        %v4304 = vmul.f32 %v4151, %v4151
        %v4305 = vmul.f32 %v4200, %v4200
        %v4306 = vmul.f32 %v4249, %v4249
        %v4307 = vmul.f32 %v4104, %v4104
        %v4308 = vmul.f32 %v4153, %v4153
        %v4309 = vmul.f32 %v4202, %v4202
        %v4310 = vmul.f32 %v4251, %v4251
        %v4311 = vmul.f32 %v4107, %v4107
        %v4312 = vmul.f32 %v4156, %v4156
        %v4313 = vmul.f32 %v4205, %v4205
        %v4314 = vmul.f32 %v4254, %v4254
        %v4315 = vmul.f32 %v4109, %v4109
        %v4316 = vmul.f32 %v4158, %v4158
        %v4317 = vmul.f32 %v4207, %v4207
        %v4318 = vmul.f32 %v4256, %v4256
        %v4319 = vmul.f32 %v4112, %v4112
        %v4320 = vmul.f32 %v4161, %v4161
        %v4321 = vmul.f32 %v4210, %v4210
        %v4322 = vmul.f32 %v4259, %v4259
        %v4323 = vmul.f32 %v4114, %v4114
        %v4324 = vmul.f32 %v4163, %v4163
        %v4325 = vmul.f32 %v4212, %v4212
        %v4326 = vmul.f32 %v4261, %v4261
        %v4327 = vmul.f32 %v4077, %v4263
        %v4328 = vmul.f32 %v4126, %v4264
        %v4329 = vmul.f32 %v4175, %v4265
        %v4330 = vmul.f32 %v4224, %v4266
        %v4331 = vmul.f32 %v4079, %v4267
        %v4332 = vmul.f32 %v4128, %v4268
        %v4333 = vmul.f32 %v4177, %v4269
        %v4334 = vmul.f32 %v4226, %v4270
        %v4335 = vmul.f32 %v4082, %v4271
        %v4336 = vmul.f32 %v4131, %v4272
        %v4337 = vmul.f32 %v4180, %v4273
        %v4338 = vmul.f32 %v4229, %v4274
        %v4339 = vmul.f32 %v4084, %v4275
        %v4340 = vmul.f32 %v4133, %v4276
        %v4341 = vmul.f32 %v4182, %v4277
        %v4342 = vmul.f32 %v4231, %v4278
        %v4343 = vmul.f32 %v4087, %v4279
        %v4344 = vmul.f32 %v4136, %v4280
        %v4345 = vmul.f32 %v4185, %v4281
        %v4346 = vmul.f32 %v4234, %v4282
        %v4347 = vmul.f32 %v4089, %v4283
        %v4348 = vmul.f32 %v4138, %v4284
        %v4349 = vmul.f32 %v4187, %v4285
        %v4350 = vmul.f32 %v4236, %v4286
        %v4351 = vmul.f32 %v4092, %v4287
        %v4352 = vmul.f32 %v4141, %v4288
        %v4353 = vmul.f32 %v4190, %v4289
        %v4354 = vmul.f32 %v4239, %v4290
        %v4355 = vmul.f32 %v4094, %v4291
        %v4356 = vmul.f32 %v4143, %v4292
        %v4357 = vmul.f32 %v4192, %v4293
        %v4358 = vmul.f32 %v4241, %v4294
        %v4359 = vmul.f32 %v4097, %v4295
        %v4360 = vmul.f32 %v4146, %v4296
        %v4361 = vmul.f32 %v4195, %v4297
        %v4362 = vmul.f32 %v4244, %v4298
        %v4363 = vmul.f32 %v4099, %v4299
        %v4364 = vmul.f32 %v4148, %v4300
        %v4365 = vmul.f32 %v4197, %v4301
        %v4366 = vmul.f32 %v4246, %v4302
        %v4367 = vmul.f32 %v4102, %v4303
        %v4368 = vmul.f32 %v4151, %v4304
        %v4369 = vmul.f32 %v4200, %v4305
        %v4370 = vmul.f32 %v4249, %v4306
        %v4371 = vmul.f32 %v4104, %v4307
        %v4372 = vmul.f32 %v4153, %v4308
        %v4373 = vmul.f32 %v4202, %v4309
        %v4374 = vmul.f32 %v4251, %v4310
        %v4375 = vmul.f32 %v4107, %v4311
        %v4376 = vmul.f32 %v4156, %v4312
        %v4377 = vmul.f32 %v4205, %v4313
        %v4378 = vmul.f32 %v4254, %v4314
        %v4379 = vmul.f32 %v4109, %v4315
        %v4380 = vmul.f32 %v4158, %v4316
        %v4381 = vmul.f32 %v4207, %v4317
        %v4382 = vmul.f32 %v4256, %v4318
        %v4383 = vmul.f32 %v4112, %v4319
        %v4384 = vmul.f32 %v4161, %v4320
        %v4385 = vmul.f32 %v4210, %v4321
        %v4386 = vmul.f32 %v4259, %v4322
        %v4387 = vmul.f32 %v4114, %v4323
        %v4388 = vmul.f32 %v4163, %v4324
        %v4389 = vmul.f32 %v4212, %v4325
        %v4390 = vmul.f32 %v4261, %v4326
        %v4391 = vmul.f32 %v4327, 0.044715
        %v4392 = vmul.f32 %v4328, 0.044715
        %v4393 = vmul.f32 %v4329, 0.044715
        %v4394 = vmul.f32 %v4330, 0.044715
        %v4395 = vmul.f32 %v4331, 0.044715
        %v4396 = vmul.f32 %v4332, 0.044715
        %v4397 = vmul.f32 %v4333, 0.044715
        %v4398 = vmul.f32 %v4334, 0.044715
        %v4399 = vmul.f32 %v4335, 0.044715
        %v4400 = vmul.f32 %v4336, 0.044715
        %v4401 = vmul.f32 %v4337, 0.044715
        %v4402 = vmul.f32 %v4338, 0.044715
        %v4403 = vmul.f32 %v4339, 0.044715
        %v4404 = vmul.f32 %v4340, 0.044715
        %v4405 = vmul.f32 %v4341, 0.044715
        %v4406 = vmul.f32 %v4342, 0.044715
        %v4407 = vmul.f32 %v4343, 0.044715
        %v4408 = vmul.f32 %v4344, 0.044715
        %v4409 = vmul.f32 %v4345, 0.044715
        %v4410 = vmul.f32 %v4346, 0.044715
        %v4411 = vmul.f32 %v4347, 0.044715
        %v4412 = vmul.f32 %v4348, 0.044715
        %v4413 = vmul.f32 %v4349, 0.044715
        %v4414 = vmul.f32 %v4350, 0.044715
        %v4415 = vmul.f32 %v4351, 0.044715
        %v4416 = vmul.f32 %v4352, 0.044715
        %v4417 = vmul.f32 %v4353, 0.044715
        %v4418 = vmul.f32 %v4354, 0.044715
        %v4419 = vmul.f32 %v4355, 0.044715
        %v4420 = vmul.f32 %v4356, 0.044715
        %v4421 = vmul.f32 %v4357, 0.044715
        %v4422 = vmul.f32 %v4358, 0.044715
        %v4423 = vmul.f32 %v4359, 0.044715
        %v4424 = vmul.f32 %v4360, 0.044715
        %v4425 = vmul.f32 %v4361, 0.044715
        %v4426 = vmul.f32 %v4362, 0.044715
        %v4427 = vmul.f32 %v4363, 0.044715
        %v4428 = vmul.f32 %v4364, 0.044715
        %v4429 = vmul.f32 %v4365, 0.044715
        %v4430 = vmul.f32 %v4366, 0.044715
        %v4431 = vmul.f32 %v4367, 0.044715
        %v4432 = vmul.f32 %v4368, 0.044715
        %v4433 = vmul.f32 %v4369, 0.044715
        %v4434 = vmul.f32 %v4370, 0.044715
        %v4435 = vmul.f32 %v4371, 0.044715
        %v4436 = vmul.f32 %v4372, 0.044715
        %v4437 = vmul.f32 %v4373, 0.044715
        %v4438 = vmul.f32 %v4374, 0.044715
        %v4439 = vmul.f32 %v4375, 0.044715
        %v4440 = vmul.f32 %v4376, 0.044715
        %v4441 = vmul.f32 %v4377, 0.044715
        %v4442 = vmul.f32 %v4378, 0.044715
        %v4443 = vmul.f32 %v4379, 0.044715
        %v4444 = vmul.f32 %v4380, 0.044715
        %v4445 = vmul.f32 %v4381, 0.044715
        %v4446 = vmul.f32 %v4382, 0.044715
        %v4447 = vmul.f32 %v4383, 0.044715
        %v4448 = vmul.f32 %v4384, 0.044715
        %v4449 = vmul.f32 %v4385, 0.044715
        %v4450 = vmul.f32 %v4386, 0.044715
        %v4451 = vmul.f32 %v4387, 0.044715
        %v4452 = vmul.f32 %v4388, 0.044715
        %v4453 = vmul.f32 %v4389, 0.044715
        %v4454 = vmul.f32 %v4390, 0.044715
        %v4455 = vadd.f32 %v4077, %v4391
        %v4456 = vadd.f32 %v4126, %v4392
        %v4457 = vadd.f32 %v4175, %v4393
        %v4458 = vadd.f32 %v4224, %v4394
        %v4459 = vadd.f32 %v4079, %v4395
        %v4460 = vadd.f32 %v4128, %v4396
        %v4461 = vadd.f32 %v4177, %v4397
        %v4462 = vadd.f32 %v4226, %v4398
        %v4463 = vadd.f32 %v4082, %v4399
        %v4464 = vadd.f32 %v4131, %v4400
        %v4465 = vadd.f32 %v4180, %v4401
        %v4466 = vadd.f32 %v4229, %v4402
        %v4467 = vadd.f32 %v4084, %v4403
        %v4468 = vadd.f32 %v4133, %v4404
        %v4469 = vadd.f32 %v4182, %v4405
        %v4470 = vadd.f32 %v4231, %v4406
        %v4471 = vadd.f32 %v4087, %v4407
        %v4472 = vadd.f32 %v4136, %v4408
        %v4473 = vadd.f32 %v4185, %v4409
        %v4474 = vadd.f32 %v4234, %v4410
        %v4475 = vadd.f32 %v4089, %v4411
        %v4476 = vadd.f32 %v4138, %v4412
        %v4477 = vadd.f32 %v4187, %v4413
        %v4478 = vadd.f32 %v4236, %v4414
        %v4479 = vadd.f32 %v4092, %v4415
        %v4480 = vadd.f32 %v4141, %v4416
        %v4481 = vadd.f32 %v4190, %v4417
        %v4482 = vadd.f32 %v4239, %v4418
        %v4483 = vadd.f32 %v4094, %v4419
        %v4484 = vadd.f32 %v4143, %v4420
        %v4485 = vadd.f32 %v4192, %v4421
        %v4486 = vadd.f32 %v4241, %v4422
        %v4487 = vadd.f32 %v4097, %v4423
        %v4488 = vadd.f32 %v4146, %v4424
        %v4489 = vadd.f32 %v4195, %v4425
        %v4490 = vadd.f32 %v4244, %v4426
        %v4491 = vadd.f32 %v4099, %v4427
        %v4492 = vadd.f32 %v4148, %v4428
        %v4493 = vadd.f32 %v4197, %v4429
        %v4494 = vadd.f32 %v4246, %v4430
        %v4495 = vadd.f32 %v4102, %v4431
        %v4496 = vadd.f32 %v4151, %v4432
        %v4497 = vadd.f32 %v4200, %v4433
        %v4498 = vadd.f32 %v4249, %v4434
        %v4499 = vadd.f32 %v4104, %v4435
        %v4500 = vadd.f32 %v4153, %v4436
        %v4501 = vadd.f32 %v4202, %v4437
        %v4502 = vadd.f32 %v4251, %v4438
        %v4503 = vadd.f32 %v4107, %v4439
        %v4504 = vadd.f32 %v4156, %v4440
        %v4505 = vadd.f32 %v4205, %v4441
        %v4506 = vadd.f32 %v4254, %v4442
        %v4507 = vadd.f32 %v4109, %v4443
        %v4508 = vadd.f32 %v4158, %v4444
        %v4509 = vadd.f32 %v4207, %v4445
        %v4510 = vadd.f32 %v4256, %v4446
        %v4511 = vadd.f32 %v4112, %v4447
        %v4512 = vadd.f32 %v4161, %v4448
        %v4513 = vadd.f32 %v4210, %v4449
        %v4514 = vadd.f32 %v4259, %v4450
        %v4515 = vadd.f32 %v4114, %v4451
        %v4516 = vadd.f32 %v4163, %v4452
        %v4517 = vadd.f32 %v4212, %v4453
        %v4518 = vadd.f32 %v4261, %v4454
        %v4519 = vmul.f32 %v4455, 0.7978846
        %v4520 = vmul.f32 %v4456, 0.7978846
        %v4521 = vmul.f32 %v4457, 0.7978846
        %v4522 = vmul.f32 %v4458, 0.7978846
        %v4523 = vmul.f32 %v4459, 0.7978846
        %v4524 = vmul.f32 %v4460, 0.7978846
        %v4525 = vmul.f32 %v4461, 0.7978846
        %v4526 = vmul.f32 %v4462, 0.7978846
        %v4527 = vmul.f32 %v4463, 0.7978846
        %v4528 = vmul.f32 %v4464, 0.7978846
        %v4529 = vmul.f32 %v4465, 0.7978846
        %v4530 = vmul.f32 %v4466, 0.7978846
        %v4531 = vmul.f32 %v4467, 0.7978846
        %v4532 = vmul.f32 %v4468, 0.7978846
        %v4533 = vmul.f32 %v4469, 0.7978846
        %v4534 = vmul.f32 %v4470, 0.7978846
        %v4535 = vmul.f32 %v4471, 0.7978846
        %v4536 = vmul.f32 %v4472, 0.7978846
        %v4537 = vmul.f32 %v4473, 0.7978846
        %v4538 = vmul.f32 %v4474, 0.7978846
        %v4539 = vmul.f32 %v4475, 0.7978846
        %v4540 = vmul.f32 %v4476, 0.7978846
        %v4541 = vmul.f32 %v4477, 0.7978846
        %v4542 = vmul.f32 %v4478, 0.7978846
        %v4543 = vmul.f32 %v4479, 0.7978846
        %v4544 = vmul.f32 %v4480, 0.7978846
        %v4545 = vmul.f32 %v4481, 0.7978846
        %v4546 = vmul.f32 %v4482, 0.7978846
        %v4547 = vmul.f32 %v4483, 0.7978846
        %v4548 = vmul.f32 %v4484, 0.7978846
        %v4549 = vmul.f32 %v4485, 0.7978846
        %v4550 = vmul.f32 %v4486, 0.7978846
        %v4551 = vmul.f32 %v4487, 0.7978846
        %v4552 = vmul.f32 %v4488, 0.7978846
        %v4553 = vmul.f32 %v4489, 0.7978846
        %v4554 = vmul.f32 %v4490, 0.7978846
        %v4555 = vmul.f32 %v4491, 0.7978846
        %v4556 = vmul.f32 %v4492, 0.7978846
        %v4557 = vmul.f32 %v4493, 0.7978846
        %v4558 = vmul.f32 %v4494, 0.7978846
        %v4559 = vmul.f32 %v4495, 0.7978846
        %v4560 = vmul.f32 %v4496, 0.7978846
        %v4561 = vmul.f32 %v4497, 0.7978846
        %v4562 = vmul.f32 %v4498, 0.7978846
        %v4563 = vmul.f32 %v4499, 0.7978846
        %v4564 = vmul.f32 %v4500, 0.7978846
        %v4565 = vmul.f32 %v4501, 0.7978846
        %v4566 = vmul.f32 %v4502, 0.7978846
        %v4567 = vmul.f32 %v4503, 0.7978846
        %v4568 = vmul.f32 %v4504, 0.7978846
        %v4569 = vmul.f32 %v4505, 0.7978846
        %v4570 = vmul.f32 %v4506, 0.7978846
        %v4571 = vmul.f32 %v4507, 0.7978846
        %v4572 = vmul.f32 %v4508, 0.7978846
        %v4573 = vmul.f32 %v4509, 0.7978846
        %v4574 = vmul.f32 %v4510, 0.7978846
        %v4575 = vmul.f32 %v4511, 0.7978846
        %v4576 = vmul.f32 %v4512, 0.7978846
        %v4577 = vmul.f32 %v4513, 0.7978846
        %v4578 = vmul.f32 %v4514, 0.7978846
        %v4579 = vmul.f32 %v4515, 0.7978846
        %v4580 = vmul.f32 %v4516, 0.7978846
        %v4581 = vmul.f32 %v4517, 0.7978846
        %v4582 = vmul.f32 %v4518, 0.7978846
        %v4583 = vtanh.pop %v4519
        %v4584 = vtanh.pop %v4520
        %v4585 = vtanh.pop %v4521
        %v4586 = vtanh.pop %v4522
        %v4587 = vtanh.pop %v4523
        %v4588 = vtanh.pop %v4524
        %v4589 = vtanh.pop %v4525
        %v4590 = vtanh.pop %v4526
        %v4591 = vtanh.pop %v4527
        %v4592 = vtanh.pop %v4528
        %v4593 = vtanh.pop %v4529
        %v4594 = vtanh.pop %v4530
        %v4595 = vtanh.pop %v4531
        %v4596 = vtanh.pop %v4532
        %v4597 = vtanh.pop %v4533
        %v4598 = vtanh.pop %v4534
        %v4599 = vtanh.pop %v4535
        %v4600 = vtanh.pop %v4536
        %v4601 = vtanh.pop %v4537
        %v4602 = vtanh.pop %v4538
        %v4603 = vtanh.pop %v4539
        %v4604 = vtanh.pop %v4540
        %v4605 = vtanh.pop %v4541
        %v4606 = vtanh.pop %v4542
        %v4607 = vtanh.pop %v4543
        %v4608 = vtanh.pop %v4544
        %v4609 = vtanh.pop %v4545
        %v4610 = vtanh.pop %v4546
        %v4611 = vtanh.pop %v4547
        %v4612 = vtanh.pop %v4548
        %v4613 = vtanh.pop %v4549
        %v4614 = vtanh.pop %v4550
        %v4615 = vtanh.pop %v4551
        %v4616 = vtanh.pop %v4552
        %v4617 = vtanh.pop %v4553
        %v4618 = vtanh.pop %v4554
        %v4619 = vtanh.pop %v4555
        %v4620 = vtanh.pop %v4556
        %v4621 = vtanh.pop %v4557
        %v4622 = vtanh.pop %v4558
        %v4623 = vtanh.pop %v4559
        %v4624 = vtanh.pop %v4560
        %v4625 = vtanh.pop %v4561
        %v4626 = vtanh.pop %v4562
        %v4627 = vtanh.pop %v4563
        %v4628 = vtanh.pop %v4564
        %v4629 = vtanh.pop %v4565
        %v4630 = vtanh.pop %v4566
        %v4631 = vtanh.pop %v4567
        %v4632 = vtanh.pop %v4568
        %v4633 = vtanh.pop %v4569
        %v4634 = vtanh.pop %v4570
        %v4635 = vtanh.pop %v4571
        %v4636 = vtanh.pop %v4572
        %v4637 = vtanh.pop %v4573
        %v4638 = vtanh.pop %v4574
        %v4639 = vtanh.pop %v4575
        %v4640 = vtanh.pop %v4576
        %v4641 = vtanh.pop %v4577
        %v4642 = vtanh.pop %v4578
        %v4643 = vtanh.pop %v4579
        %v4644 = vtanh.pop %v4580
        %v4645 = vtanh.pop %v4581
        %v4646 = vtanh.pop %v4582
        %v4647 = vadd.f32 %v4583, 1.0
        %v4648 = vadd.f32 %v4584, 1.0
        %v4649 = vadd.f32 %v4585, 1.0
        %v4650 = vadd.f32 %v4586, 1.0
        %v4651 = vadd.f32 %v4587, 1.0
        %v4652 = vadd.f32 %v4588, 1.0
        %v4653 = vadd.f32 %v4589, 1.0
        %v4654 = vadd.f32 %v4590, 1.0
        %v4655 = vadd.f32 %v4591, 1.0
        %v4656 = vadd.f32 %v4592, 1.0
        %v4657 = vadd.f32 %v4593, 1.0
        %v4658 = vadd.f32 %v4594, 1.0
        %v4659 = vadd.f32 %v4595, 1.0
        %v4660 = vadd.f32 %v4596, 1.0
        %v4661 = vadd.f32 %v4597, 1.0
        %v4662 = vadd.f32 %v4598, 1.0
        %v4663 = vadd.f32 %v4599, 1.0
        %v4664 = vadd.f32 %v4600, 1.0
        %v4665 = vadd.f32 %v4601, 1.0
        %v4666 = vadd.f32 %v4602, 1.0
        %v4667 = vadd.f32 %v4603, 1.0
        %v4668 = vadd.f32 %v4604, 1.0
        %v4669 = vadd.f32 %v4605, 1.0
        %v4670 = vadd.f32 %v4606, 1.0
        %v4671 = vadd.f32 %v4607, 1.0
        %v4672 = vadd.f32 %v4608, 1.0
        %v4673 = vadd.f32 %v4609, 1.0
        %v4674 = vadd.f32 %v4610, 1.0
        %v4675 = vadd.f32 %v4611, 1.0
        %v4676 = vadd.f32 %v4612, 1.0
        %v4677 = vadd.f32 %v4613, 1.0
        %v4678 = vadd.f32 %v4614, 1.0
        %v4679 = vadd.f32 %v4615, 1.0
        %v4680 = vadd.f32 %v4616, 1.0
        %v4681 = vadd.f32 %v4617, 1.0
        %v4682 = vadd.f32 %v4618, 1.0
        %v4683 = vadd.f32 %v4619, 1.0
        %v4684 = vadd.f32 %v4620, 1.0
        %v4685 = vadd.f32 %v4621, 1.0
        %v4686 = vadd.f32 %v4622, 1.0
        %v4687 = vadd.f32 %v4623, 1.0
        %v4688 = vadd.f32 %v4624, 1.0
        %v4689 = vadd.f32 %v4625, 1.0
        %v4690 = vadd.f32 %v4626, 1.0
        %v4691 = vadd.f32 %v4627, 1.0
        %v4692 = vadd.f32 %v4628, 1.0
        %v4693 = vadd.f32 %v4629, 1.0
        %v4694 = vadd.f32 %v4630, 1.0
        %v4695 = vadd.f32 %v4631, 1.0
        %v4696 = vadd.f32 %v4632, 1.0
        %v4697 = vadd.f32 %v4633, 1.0
        %v4698 = vadd.f32 %v4634, 1.0
        %v4699 = vadd.f32 %v4635, 1.0
        %v4700 = vadd.f32 %v4636, 1.0
        %v4701 = vadd.f32 %v4637, 1.0
        %v4702 = vadd.f32 %v4638, 1.0
        %v4703 = vadd.f32 %v4639, 1.0
        %v4704 = vadd.f32 %v4640, 1.0
        %v4705 = vadd.f32 %v4641, 1.0
        %v4706 = vadd.f32 %v4642, 1.0
        %v4707 = vadd.f32 %v4643, 1.0
        %v4708 = vadd.f32 %v4644, 1.0
        %v4709 = vadd.f32 %v4645, 1.0
        %v4710 = vadd.f32 %v4646, 1.0
        %v4711 = vmul.f32 %v4647, 0.5
        %v4712 = vmul.f32 %v4648, 0.5
        %v4713 = vmul.f32 %v4649, 0.5
        %v4714 = vmul.f32 %v4650, 0.5
        %v4715 = vmul.f32 %v4651, 0.5
        %v4716 = vmul.f32 %v4652, 0.5
        %v4717 = vmul.f32 %v4653, 0.5
        %v4718 = vmul.f32 %v4654, 0.5
        %v4719 = vmul.f32 %v4655, 0.5
        %v4720 = vmul.f32 %v4656, 0.5
        %v4721 = vmul.f32 %v4657, 0.5
        %v4722 = vmul.f32 %v4658, 0.5
        %v4723 = vmul.f32 %v4659, 0.5
        %v4724 = vmul.f32 %v4660, 0.5
        %v4725 = vmul.f32 %v4661, 0.5
        %v4726 = vmul.f32 %v4662, 0.5
        %v4727 = vmul.f32 %v4663, 0.5
        %v4728 = vmul.f32 %v4664, 0.5
        %v4729 = vmul.f32 %v4665, 0.5
        %v4730 = vmul.f32 %v4666, 0.5
        %v4731 = vmul.f32 %v4667, 0.5
        %v4732 = vmul.f32 %v4668, 0.5
        %v4733 = vmul.f32 %v4669, 0.5
        %v4734 = vmul.f32 %v4670, 0.5
        %v4735 = vmul.f32 %v4671, 0.5
        %v4736 = vmul.f32 %v4672, 0.5
        %v4737 = vmul.f32 %v4673, 0.5
        %v4738 = vmul.f32 %v4674, 0.5
        %v4739 = vmul.f32 %v4675, 0.5
        %v4740 = vmul.f32 %v4676, 0.5
        %v4741 = vmul.f32 %v4677, 0.5
        %v4742 = vmul.f32 %v4678, 0.5
        %v4743 = vmul.f32 %v4679, 0.5
        %v4744 = vmul.f32 %v4680, 0.5
        %v4745 = vmul.f32 %v4681, 0.5
        %v4746 = vmul.f32 %v4682, 0.5
        %v4747 = vmul.f32 %v4683, 0.5
        %v4748 = vmul.f32 %v4684, 0.5
        %v4749 = vmul.f32 %v4685, 0.5
        %v4750 = vmul.f32 %v4686, 0.5
        %v4751 = vmul.f32 %v4687, 0.5
        %v4752 = vmul.f32 %v4688, 0.5
        %v4753 = vmul.f32 %v4689, 0.5
        %v4754 = vmul.f32 %v4690, 0.5
        %v4755 = vmul.f32 %v4691, 0.5
        %v4756 = vmul.f32 %v4692, 0.5
        %v4757 = vmul.f32 %v4693, 0.5
        %v4758 = vmul.f32 %v4694, 0.5
        %v4759 = vmul.f32 %v4695, 0.5
        %v4760 = vmul.f32 %v4696, 0.5
        %v4761 = vmul.f32 %v4697, 0.5
        %v4762 = vmul.f32 %v4698, 0.5
        %v4763 = vmul.f32 %v4699, 0.5
        %v4764 = vmul.f32 %v4700, 0.5
        %v4765 = vmul.f32 %v4701, 0.5
        %v4766 = vmul.f32 %v4702, 0.5
        %v4767 = vmul.f32 %v4703, 0.5
        %v4768 = vmul.f32 %v4704, 0.5
        %v4769 = vmul.f32 %v4705, 0.5
        %v4770 = vmul.f32 %v4706, 0.5
        %v4771 = vmul.f32 %v4707, 0.5
        %v4772 = vmul.f32 %v4708, 0.5
        %v4773 = vmul.f32 %v4709, 0.5
        %v4774 = vmul.f32 %v4710, 0.5
        %v4775 = vmul.f32 %v4077, %v4711
        %v4776 = vmul.f32 %v4126, %v4712
        %v4777 = vmul.f32 %v4175, %v4713
        %v4778 = vmul.f32 %v4224, %v4714
        %v4779 = vmul.f32 %v4079, %v4715
        %v4780 = vmul.f32 %v4128, %v4716
        %v4781 = vmul.f32 %v4177, %v4717
        %v4782 = vmul.f32 %v4226, %v4718
        %v4783 = vmul.f32 %v4082, %v4719
        %v4784 = vmul.f32 %v4131, %v4720
        %v4785 = vmul.f32 %v4180, %v4721
        %v4786 = vmul.f32 %v4229, %v4722
        %v4787 = vmul.f32 %v4084, %v4723
        %v4788 = vmul.f32 %v4133, %v4724
        %v4789 = vmul.f32 %v4182, %v4725
        %v4790 = vmul.f32 %v4231, %v4726
        %v4791 = vmul.f32 %v4087, %v4727
        %v4792 = vmul.f32 %v4136, %v4728
        %v4793 = vmul.f32 %v4185, %v4729
        %v4794 = vmul.f32 %v4234, %v4730
        %v4795 = vmul.f32 %v4089, %v4731
        %v4796 = vmul.f32 %v4138, %v4732
        %v4797 = vmul.f32 %v4187, %v4733
        %v4798 = vmul.f32 %v4236, %v4734
        %v4799 = vmul.f32 %v4092, %v4735
        %v4800 = vmul.f32 %v4141, %v4736
        %v4801 = vmul.f32 %v4190, %v4737
        %v4802 = vmul.f32 %v4239, %v4738
        %v4803 = vmul.f32 %v4094, %v4739
        %v4804 = vmul.f32 %v4143, %v4740
        %v4805 = vmul.f32 %v4192, %v4741
        %v4806 = vmul.f32 %v4241, %v4742
        %v4807 = vmul.f32 %v4097, %v4743
        %v4808 = vmul.f32 %v4146, %v4744
        %v4809 = vmul.f32 %v4195, %v4745
        %v4810 = vmul.f32 %v4244, %v4746
        %v4811 = vmul.f32 %v4099, %v4747
        %v4812 = vmul.f32 %v4148, %v4748
        %v4813 = vmul.f32 %v4197, %v4749
        %v4814 = vmul.f32 %v4246, %v4750
        %v4815 = vmul.f32 %v4102, %v4751
        %v4816 = vmul.f32 %v4151, %v4752
        %v4817 = vmul.f32 %v4200, %v4753
        %v4818 = vmul.f32 %v4249, %v4754
        %v4819 = vmul.f32 %v4104, %v4755
        %v4820 = vmul.f32 %v4153, %v4756
        %v4821 = vmul.f32 %v4202, %v4757
        %v4822 = vmul.f32 %v4251, %v4758
        %v4823 = vmul.f32 %v4107, %v4759
        %v4824 = vmul.f32 %v4156, %v4760
        %v4825 = vmul.f32 %v4205, %v4761
        %v4826 = vmul.f32 %v4254, %v4762
        %v4827 = vmul.f32 %v4109, %v4763
        %v4828 = vmul.f32 %v4158, %v4764
        %v4829 = vmul.f32 %v4207, %v4765
        %v4830 = vmul.f32 %v4256, %v4766
        %v4831 = vmul.f32 %v4112, %v4767
        %v4832 = vmul.f32 %v4161, %v4768
        %v4833 = vmul.f32 %v4210, %v4769
        %v4834 = vmul.f32 %v4259, %v4770
        %v4835 = vmul.f32 %v4114, %v4771
        %v4836 = vmul.f32 %v4163, %v4772
        %v4837 = vmul.f32 %v4212, %v4773
        %v4838 = vmul.f32 %v4261, %v4774
        %v4839 = vpack.c.bf16 %v4779, %v4775
        %v4840 = vpack.c.bf16 %v4780, %v4776
        %v4841 = vpack.c.bf16 %v4781, %v4777
        %v4842 = vpack.c.bf16 %v4782, %v4778
        %v4843 = vpack.c.bf16 %v4787, %v4783
        %v4844 = vpack.c.bf16 %v4788, %v4784
        %v4845 = vpack.c.bf16 %v4789, %v4785
        %v4846 = vpack.c.bf16 %v4790, %v4786
        %v4847 = vpack.c.bf16 %v4795, %v4791
        %v4848 = vpack.c.bf16 %v4796, %v4792
        %v4849 = vpack.c.bf16 %v4797, %v4793
        %v4850 = vpack.c.bf16 %v4798, %v4794
        %v4851 = vpack.c.bf16 %v4803, %v4799
        %v4852 = vpack.c.bf16 %v4804, %v4800
        %v4853 = vpack.c.bf16 %v4805, %v4801
        %v4854 = vpack.c.bf16 %v4806, %v4802
        %v4855 = vpack.c.bf16 %v4811, %v4807
        %v4856 = vpack.c.bf16 %v4812, %v4808
        %v4857 = vpack.c.bf16 %v4813, %v4809
        %v4858 = vpack.c.bf16 %v4814, %v4810
        %v4859 = vpack.c.bf16 %v4819, %v4815
        %v4860 = vpack.c.bf16 %v4820, %v4816
        %v4861 = vpack.c.bf16 %v4821, %v4817
        %v4862 = vpack.c.bf16 %v4822, %v4818
        %v4863 = vpack.c.bf16 %v4827, %v4823
        %v4864 = vpack.c.bf16 %v4828, %v4824
        %v4865 = vpack.c.bf16 %v4829, %v4825
        %v4866 = vpack.c.bf16 %v4830, %v4826
        %v4867 = vpack.c.bf16 %v4835, %v4831
        %v4868 = vpack.c.bf16 %v4836, %v4832
        %v4869 = vpack.c.bf16 %v4837, %v4833
        %v4870 = vpack.c.bf16 %v4838, %v4834
        %v4871 = vld [vmem:[#allocation14] sm:$0xf]
        %v4872 = vld [vmem:[#allocation14 + $0x4] sm:$0xf]
        %v4873 = vld [vmem:[#allocation14 + $0x8] sm:$0xf]
        %v4874 = vld [vmem:[#allocation14 + $0xc] sm:$0xf]
        %v4875 = vld [vmem:[#allocation14 + $0x10] sm:$0xf]
        %v4876 = vld [vmem:[#allocation14 + $0x14] sm:$0xf]
        %v4877 = vld [vmem:[#allocation14 + $0x18] sm:$0xf]
        %v4878 = vld [vmem:[#allocation14 + $0x1c] sm:$0xf]
        %v4879 = vld [vmem:[#allocation14 + $0x20] sm:$0xf]
        %v4880 = vld [vmem:[#allocation14 + $0x24] sm:$0xf]
        %v4881 = vld [vmem:[#allocation14 + $0x28] sm:$0xf]
        %v4882 = vld [vmem:[#allocation14 + $0x2c] sm:$0xf]
        %v4883 = vld [vmem:[#allocation14 + $0x30] sm:$0xf]
        %v4884 = vld [vmem:[#allocation14 + $0x34] sm:$0xf]
        %v4885 = vld [vmem:[#allocation14 + $0x38] sm:$0xf]
        %v4886 = vld [vmem:[#allocation14 + $0x3c] sm:$0xf]
        %v4887 = vld [vmem:[#allocation14 + $0x40] sm:$0xf]
        %v4888 = vld [vmem:[#allocation14 + $0x44] sm:$0xf]
        %v4889 = vld [vmem:[#allocation14 + $0x48] sm:$0xf]
        %v4890 = vld [vmem:[#allocation14 + $0x4c] sm:$0xf]
        %v4891 = vld [vmem:[#allocation14 + $0x50] sm:$0xf]
        %v4892 = vld [vmem:[#allocation14 + $0x54] sm:$0xf]
        %v4893 = vld [vmem:[#allocation14 + $0x58] sm:$0xf]
        %v4894 = vld [vmem:[#allocation14 + $0x5c] sm:$0xf]
        %v4895 = vld [vmem:[#allocation14 + $0x60] sm:$0xf]
        %v4896 = vld [vmem:[#allocation14 + $0x64] sm:$0xf]
        %v4897 = vld [vmem:[#allocation14 + $0x68] sm:$0xf]
        %v4898 = vld [vmem:[#allocation14 + $0x6c] sm:$0xf]
        %v4899 = vld [vmem:[#allocation14 + $0x70] sm:$0xf]
        %v4900 = vld [vmem:[#allocation14 + $0x74] sm:$0xf]
        %v4901 = vld [vmem:[#allocation14 + $0x78] sm:$0xf]
        %v4902 = vld [vmem:[#allocation14 + $0x7c] sm:$0xf]
        %v4903 = vld [vmem:[#allocation14 + $0x80] sm:$0xf]
        %v4904 = vld [vmem:[#allocation14 + $0x84] sm:$0xf]
        %v4905 = vld [vmem:[#allocation14 + $0x88] sm:$0xf]
        %v4906 = vld [vmem:[#allocation14 + $0x8c] sm:$0xf]
        %v4907 = vld [vmem:[#allocation14 + $0x90] sm:$0xf]
        %v4908 = vld [vmem:[#allocation14 + $0x94] sm:$0xf]
        %v4909 = vld [vmem:[#allocation14 + $0x98] sm:$0xf]
        %v4910 = vld [vmem:[#allocation14 + $0x9c] sm:$0xf]
        %v4911 = vld [vmem:[#allocation14 + $0xa0] sm:$0xf]
        %v4912 = vld [vmem:[#allocation14 + $0xa4] sm:$0xf]
        %v4913 = vld [vmem:[#allocation14 + $0xa8] sm:$0xf]
        %v4914 = vld [vmem:[#allocation14 + $0xac] sm:$0xf]
        %v4915 = vld [vmem:[#allocation14 + $0xb0] sm:$0xf]
        %v4916 = vld [vmem:[#allocation14 + $0xb4] sm:$0xf]
        %v4917 = vld [vmem:[#allocation14 + $0xb8] sm:$0xf]
        %v4918 = vld [vmem:[#allocation14 + $0xbc] sm:$0xf]
        %v4919 = vld [vmem:[#allocation14 + $0xc0] sm:$0xf]
        %v4920 = vld [vmem:[#allocation14 + $0xc4] sm:$0xf]
        %v4921 = vld [vmem:[#allocation14 + $0xc8] sm:$0xf]
        %v4922 = vld [vmem:[#allocation14 + $0xcc] sm:$0xf]
        %v4923 = vld [vmem:[#allocation14 + $0xd0] sm:$0xf]
        %v4924 = vld [vmem:[#allocation14 + $0xd4] sm:$0xf]
        %v4925 = vld [vmem:[#allocation14 + $0xd8] sm:$0xf]
        %v4926 = vld [vmem:[#allocation14 + $0xdc] sm:$0xf]
        %v4927 = vld [vmem:[#allocation14 + $0xe0] sm:$0xf]
        %v4928 = vld [vmem:[#allocation14 + $0xe4] sm:$0xf]
        %v4929 = vld [vmem:[#allocation14 + $0xe8] sm:$0xf]
        %v4930 = vld [vmem:[#allocation14 + $0xec] sm:$0xf]
        %v4931 = vld [vmem:[#allocation14 + $0xf0] sm:$0xf]
        %v4932 = vld [vmem:[#allocation14 + $0xf4] sm:$0xf]
        %v4933 = vld [vmem:[#allocation14 + $0xf8] sm:$0xf]
        %v4934 = vld [vmem:[#allocation14 + $0xfc] sm:$0xf]
        %v4935 = vld [vmem:[%s11] sm:$0x1]
        %v4937 = vperm.slane %v4935, 0
        %v5003 = vunpack.c.l.b16 %v4871
        %v5004 = vunpack.c.l.b16 %v4872
        %v5005 = vunpack.c.l.b16 %v4873
        %v5006 = vunpack.c.l.b16 %v4874
        %v5007 = vunpack.c.l.b16 %v4875
        %v5008 = vunpack.c.l.b16 %v4876
        %v5009 = vunpack.c.l.b16 %v4877
        %v5010 = vunpack.c.l.b16 %v4878
        %v5011 = vunpack.c.l.b16 %v4879
        %v5012 = vunpack.c.l.b16 %v4880
        %v5013 = vunpack.c.l.b16 %v4881
        %v5014 = vunpack.c.l.b16 %v4882
        %v5015 = vunpack.c.l.b16 %v4883
        %v5016 = vunpack.c.l.b16 %v4884
        %v5017 = vunpack.c.l.b16 %v4885
        %v5018 = vunpack.c.l.b16 %v4886
        %v5019 = vunpack.c.l.b16 %v4887
        %v5020 = vunpack.c.l.b16 %v4888
        %v5021 = vunpack.c.l.b16 %v4889
        %v5022 = vunpack.c.l.b16 %v4890
        %v5023 = vunpack.c.l.b16 %v4891
        %v5024 = vunpack.c.l.b16 %v4892
        %v5025 = vunpack.c.l.b16 %v4893
        %v5026 = vunpack.c.l.b16 %v4894
        %v5027 = vunpack.c.l.b16 %v4895
        %v5028 = vunpack.c.l.b16 %v4896
        %v5029 = vunpack.c.l.b16 %v4897
        %v5030 = vunpack.c.l.b16 %v4898
        %v5031 = vunpack.c.l.b16 %v4899
        %v5032 = vunpack.c.l.b16 %v4900
        %v5033 = vunpack.c.l.b16 %v4901
        %v5034 = vunpack.c.l.b16 %v4902
        %v5035 = vunpack.c.l.b16 %v4903
        %v5036 = vunpack.c.l.b16 %v4904
        %v5037 = vunpack.c.l.b16 %v4905
        %v5038 = vunpack.c.l.b16 %v4906
        %v5039 = vunpack.c.l.b16 %v4907
        %v5040 = vunpack.c.l.b16 %v4908
        %v5041 = vunpack.c.l.b16 %v4909
        %v5042 = vunpack.c.l.b16 %v4910
        %v5043 = vunpack.c.l.b16 %v4911
        %v5044 = vunpack.c.l.b16 %v4912
        %v5045 = vunpack.c.l.b16 %v4913
        %v5046 = vunpack.c.l.b16 %v4914
        %v5047 = vunpack.c.l.b16 %v4915
        %v5048 = vunpack.c.l.b16 %v4916
        %v5049 = vunpack.c.l.b16 %v4917
        %v5050 = vunpack.c.l.b16 %v4918
        %v5051 = vunpack.c.l.b16 %v4919
        %v5052 = vunpack.c.l.b16 %v4920
        %v5053 = vunpack.c.l.b16 %v4921
        %v5054 = vunpack.c.l.b16 %v4922
        %v5055 = vunpack.c.l.b16 %v4923
        %v5056 = vunpack.c.l.b16 %v4924
        %v5057 = vunpack.c.l.b16 %v4925
        %v5058 = vunpack.c.l.b16 %v4926
        %v5059 = vunpack.c.l.b16 %v4927
        %v5060 = vunpack.c.l.b16 %v4928
        %v5061 = vunpack.c.l.b16 %v4929
        %v5062 = vunpack.c.l.b16 %v4930
        %v5063 = vunpack.c.l.b16 %v4931
        %v5064 = vunpack.c.l.b16 %v4932
        %v5065 = vunpack.c.l.b16 %v4933
        %v5066 = vunpack.c.l.b16 %v4934
        %v5067 = vpack.c.b16 %v5004, %v5003
        %v5068 = vpack.c.b16 %v5006, %v5005
        %v5069 = vpack.c.b16 %v5008, %v5007
        %v5070 = vpack.c.b16 %v5010, %v5009
        %v5071 = vpack.c.b16 %v5012, %v5011
        %v5072 = vpack.c.b16 %v5014, %v5013
        %v5073 = vpack.c.b16 %v5016, %v5015
        %v5074 = vpack.c.b16 %v5018, %v5017
        %v5075 = vpack.c.b16 %v5020, %v5019
        %v5076 = vpack.c.b16 %v5022, %v5021
        %v5077 = vpack.c.b16 %v5024, %v5023
        %v5078 = vpack.c.b16 %v5026, %v5025
        %v5079 = vpack.c.b16 %v5028, %v5027
        %v5080 = vpack.c.b16 %v5030, %v5029
        %v5081 = vpack.c.b16 %v5032, %v5031
        %v5082 = vpack.c.b16 %v5034, %v5033
        %v5083 = vpack.c.b16 %v5036, %v5035
        %v5084 = vpack.c.b16 %v5038, %v5037
        %v5085 = vpack.c.b16 %v5040, %v5039
        %v5086 = vpack.c.b16 %v5042, %v5041
        %v5087 = vpack.c.b16 %v5044, %v5043
        %v5088 = vpack.c.b16 %v5046, %v5045
        %v5089 = vpack.c.b16 %v5048, %v5047
        %v5090 = vpack.c.b16 %v5050, %v5049
        %v5091 = vpack.c.b16 %v5052, %v5051
        %v5092 = vpack.c.b16 %v5054, %v5053
        %v5093 = vpack.c.b16 %v5056, %v5055
        %v5094 = vpack.c.b16 %v5058, %v5057
        %v5095 = vpack.c.b16 %v5060, %v5059
        %v5096 = vpack.c.b16 %v5062, %v5061
        %v5097 = vpack.c.b16 %v5064, %v5063
        %v5098 = vpack.c.b16 %v5066, %v5065
        %5131 = vmatpush.bf16.msra.mxu0 %v5074
        %5132 = vmatpush.bf16.msra.mxu0 %v5073
        %5133 = vmatpush.bf16.msra.mxu0 %v5072
        %5134 = vmatpush.bf16.msra.mxu0 %v5071
        %5135 = vmatpush.bf16.msra.mxu0 %v5070
        %5136 = vmatpush.bf16.msra.mxu0 %v5069
        %5137 = vmatpush.bf16.msra.mxu0 %v5068
        %5138 = vmatpush.bf16.msra.mxu0 %v5067
        %5139 = vmatmul.bf16.gmra.mxu0 %v4839
        %v5140 = vpop.f32.mrf.mxu0
        %v5141 = vadd.f32 %v4937, %v5140
        %v5142 = vpop.f32.mrf.mxu0
        %v5143 = vadd.f32 %v4937, %v5142
        %5144 = vmatmul.bf16.gmra.mxu0 %v4843
        %v5145 = vpop.f32.mrf.mxu0
        %v5146 = vadd.f32 %v4937, %v5145
        %v5147 = vpop.f32.mrf.mxu0
        %v5148 = vadd.f32 %v4937, %v5147
        %5149 = vmatmul.bf16.gmra.mxu0 %v4847
        %v5150 = vpop.f32.mrf.mxu0
        %v5151 = vadd.f32 %v4937, %v5150
        %v5152 = vpop.f32.mrf.mxu0
        %v5153 = vadd.f32 %v4937, %v5152
        %5154 = vmatmul.bf16.gmra.mxu0 %v4851
        %v5155 = vpop.f32.mrf.mxu0
        %v5156 = vadd.f32 %v4937, %v5155
        %v5157 = vpop.f32.mrf.mxu0
        %v5158 = vadd.f32 %v4937, %v5157
        %5159 = vmatmul.bf16.gmra.mxu0 %v4855
        %v5160 = vpop.f32.mrf.mxu0
        %v5161 = vadd.f32 %v4937, %v5160
        %v5162 = vpop.f32.mrf.mxu0
        %v5163 = vadd.f32 %v4937, %v5162
        %5164 = vmatmul.bf16.gmra.mxu0 %v4859
        %v5165 = vpop.f32.mrf.mxu0
        %v5166 = vadd.f32 %v4937, %v5165
        %v5167 = vpop.f32.mrf.mxu0
        %v5168 = vadd.f32 %v4937, %v5167
        %5169 = vmatmul.bf16.gmra.mxu0 %v4863
        %v5170 = vpop.f32.mrf.mxu0
        %v5171 = vadd.f32 %v4937, %v5170
        %v5172 = vpop.f32.mrf.mxu0
        %v5173 = vadd.f32 %v4937, %v5172
        %5174 = vmatmul.bf16.gmra.mxu0 %v4867
        %v5175 = vpop.f32.mrf.mxu0
        %v5176 = vadd.f32 %v4937, %v5175
        %v5177 = vpop.f32.mrf.mxu0
        %v5178 = vadd.f32 %v4937, %v5177
        %5179 = vdwg.mxu0
        %5180 = vmatpush.bf16.msra.mxu0 %v5082
        %5181 = vmatpush.bf16.msra.mxu0 %v5081
        %5182 = vmatpush.bf16.msra.mxu0 %v5080
        %5183 = vmatpush.bf16.msra.mxu0 %v5079
        %5184 = vmatpush.bf16.msra.mxu0 %v5078
        %5185 = vmatpush.bf16.msra.mxu0 %v5077
        %5186 = vmatpush.bf16.msra.mxu0 %v5076
        %5187 = vmatpush.bf16.msra.mxu0 %v5075
        %5188 = vmatmul.bf16.gmra.mxu0 %v4840
        %v5189 = vpop.f32.mrf.mxu0
        %v5190 = vadd.f32 %v5141, %v5189
        %v5191 = vpop.f32.mrf.mxu0
        %v5192 = vadd.f32 %v5143, %v5191
        %5193 = vmatmul.bf16.gmra.mxu0 %v4844
        %v5194 = vpop.f32.mrf.mxu0
        %v5195 = vadd.f32 %v5146, %v5194
        %v5196 = vpop.f32.mrf.mxu0
        %v5197 = vadd.f32 %v5148, %v5196
        %5198 = vmatmul.bf16.gmra.mxu0 %v4848
        %v5199 = vpop.f32.mrf.mxu0
        %v5200 = vadd.f32 %v5151, %v5199
        %v5201 = vpop.f32.mrf.mxu0
        %v5202 = vadd.f32 %v5153, %v5201
        %5203 = vmatmul.bf16.gmra.mxu0 %v4852
        %v5204 = vpop.f32.mrf.mxu0
        %v5205 = vadd.f32 %v5156, %v5204
        %v5206 = vpop.f32.mrf.mxu0
        %v5207 = vadd.f32 %v5158, %v5206
        %5208 = vmatmul.bf16.gmra.mxu0 %v4856
        %v5209 = vpop.f32.mrf.mxu0
        %v5210 = vadd.f32 %v5161, %v5209
        %v5211 = vpop.f32.mrf.mxu0
        %v5212 = vadd.f32 %v5163, %v5211
        %5213 = vmatmul.bf16.gmra.mxu0 %v4860
        %v5214 = vpop.f32.mrf.mxu0
        %v5215 = vadd.f32 %v5166, %v5214
        %v5216 = vpop.f32.mrf.mxu0
        %v5217 = vadd.f32 %v5168, %v5216
        %5218 = vmatmul.bf16.gmra.mxu0 %v4864
        %v5219 = vpop.f32.mrf.mxu0
        %v5220 = vadd.f32 %v5171, %v5219
        %v5221 = vpop.f32.mrf.mxu0
        %v5222 = vadd.f32 %v5173, %v5221
        %5223 = vmatmul.bf16.gmra.mxu0 %v4868
        %v5224 = vpop.f32.mrf.mxu0
        %v5225 = vadd.f32 %v5176, %v5224
        %v5226 = vpop.f32.mrf.mxu0
        %v5227 = vadd.f32 %v5178, %v5226
        %5228 = vdwg.mxu0
        %5229 = vmatpush.bf16.msra.mxu0 %v5090
        %5230 = vmatpush.bf16.msra.mxu0 %v5089
        %5231 = vmatpush.bf16.msra.mxu0 %v5088
        %5232 = vmatpush.bf16.msra.mxu0 %v5087
        %5233 = vmatpush.bf16.msra.mxu0 %v5086
        %5234 = vmatpush.bf16.msra.mxu0 %v5085
        %5235 = vmatpush.bf16.msra.mxu0 %v5084
        %5236 = vmatpush.bf16.msra.mxu0 %v5083
        %5237 = vmatmul.bf16.gmra.mxu0 %v4841
        %v5238 = vpop.f32.mrf.mxu0
        %v5239 = vadd.f32 %v5190, %v5238
        %v5240 = vpop.f32.mrf.mxu0
        %v5241 = vadd.f32 %v5192, %v5240
        %5242 = vmatmul.bf16.gmra.mxu0 %v4845
        %v5243 = vpop.f32.mrf.mxu0
        %v5244 = vadd.f32 %v5195, %v5243
        %v5245 = vpop.f32.mrf.mxu0
        %v5246 = vadd.f32 %v5197, %v5245
        %5247 = vmatmul.bf16.gmra.mxu0 %v4849
        %v5248 = vpop.f32.mrf.mxu0
        %v5249 = vadd.f32 %v5200, %v5248
        %v5250 = vpop.f32.mrf.mxu0
        %v5251 = vadd.f32 %v5202, %v5250
        %5252 = vmatmul.bf16.gmra.mxu0 %v4853
        %v5253 = vpop.f32.mrf.mxu0
        %v5254 = vadd.f32 %v5205, %v5253
        %v5255 = vpop.f32.mrf.mxu0
        %v5256 = vadd.f32 %v5207, %v5255
        %5257 = vmatmul.bf16.gmra.mxu0 %v4857
        %v5258 = vpop.f32.mrf.mxu0
        %v5259 = vadd.f32 %v5210, %v5258
        %v5260 = vpop.f32.mrf.mxu0
        %v5261 = vadd.f32 %v5212, %v5260
        %5262 = vmatmul.bf16.gmra.mxu0 %v4861
        %v5263 = vpop.f32.mrf.mxu0
        %v5264 = vadd.f32 %v5215, %v5263
        %v5265 = vpop.f32.mrf.mxu0
        %v5266 = vadd.f32 %v5217, %v5265
        %5267 = vmatmul.bf16.gmra.mxu0 %v4865
        %v5268 = vpop.f32.mrf.mxu0
        %v5269 = vadd.f32 %v5220, %v5268
        %v5270 = vpop.f32.mrf.mxu0
        %v5271 = vadd.f32 %v5222, %v5270
        %5272 = vmatmul.bf16.gmra.mxu0 %v4869
        %v5273 = vpop.f32.mrf.mxu0
        %v5274 = vadd.f32 %v5225, %v5273
        %v5275 = vpop.f32.mrf.mxu0
        %v5276 = vadd.f32 %v5227, %v5275
        %5277 = vdwg.mxu0
        %5278 = vmatpush.bf16.msra.mxu0 %v5098
        %5279 = vmatpush.bf16.msra.mxu0 %v5097
        %5280 = vmatpush.bf16.msra.mxu0 %v5096
        %5281 = vmatpush.bf16.msra.mxu0 %v5095
        %5282 = vmatpush.bf16.msra.mxu0 %v5094
        %5283 = vmatpush.bf16.msra.mxu0 %v5093
        %5284 = vmatpush.bf16.msra.mxu0 %v5092
        %5285 = vmatpush.bf16.msra.mxu0 %v5091
        %5286 = vmatmul.bf16.gmra.mxu0 %v4842
        %v5287 = vpop.f32.mrf.mxu0
        %v5288 = vadd.f32 %v5239, %v5287
        %v5289 = vpop.f32.mrf.mxu0
        %v5290 = vadd.f32 %v5241, %v5289
        %5291 = vmatmul.bf16.gmra.mxu0 %v4846
        %v5292 = vpop.f32.mrf.mxu0
        %v5293 = vadd.f32 %v5244, %v5292
        %v5294 = vpop.f32.mrf.mxu0
        %v5295 = vadd.f32 %v5246, %v5294
        %5296 = vmatmul.bf16.gmra.mxu0 %v4850
        %v5297 = vpop.f32.mrf.mxu0
        %v5298 = vadd.f32 %v5249, %v5297
        %v5299 = vpop.f32.mrf.mxu0
        %v5300 = vadd.f32 %v5251, %v5299
        %5301 = vmatmul.bf16.gmra.mxu0 %v4854
        %v5302 = vpop.f32.mrf.mxu0
        %v5303 = vadd.f32 %v5254, %v5302
        %v5304 = vpop.f32.mrf.mxu0
        %v5305 = vadd.f32 %v5256, %v5304
        %5306 = vmatmul.bf16.gmra.mxu0 %v4858
        %v5307 = vpop.f32.mrf.mxu0
        %v5308 = vadd.f32 %v5259, %v5307
        %v5309 = vpop.f32.mrf.mxu0
        %v5310 = vadd.f32 %v5261, %v5309
        %5311 = vmatmul.bf16.gmra.mxu0 %v4862
        %v5312 = vpop.f32.mrf.mxu0
        %v5313 = vadd.f32 %v5264, %v5312
        %v5314 = vpop.f32.mrf.mxu0
        %v5315 = vadd.f32 %v5266, %v5314
        %5316 = vmatmul.bf16.gmra.mxu0 %v4866
        %v5317 = vpop.f32.mrf.mxu0
        %v5318 = vadd.f32 %v5269, %v5317
        %v5319 = vpop.f32.mrf.mxu0
        %v5320 = vadd.f32 %v5271, %v5319
        %5321 = vmatmul.bf16.gmra.mxu0 %v4870
        %v5322 = vpop.f32.mrf.mxu0
        %v5323 = vadd.f32 %v5274, %v5322
        %v5324 = vpop.f32.mrf.mxu0
        %v5325 = vadd.f32 %v5276, %v5324
        %5326 = vdwg.mxu0
        %v5327 = vadd.f32 %v3481, %v5288
        %v5328 = vadd.f32 %v3482, %v5290
        %v5329 = vadd.f32 %v3483, %v5293
        %v5330 = vadd.f32 %v3484, %v5295
        %v5331 = vadd.f32 %v3485, %v5298
        %v5332 = vadd.f32 %v3486, %v5300
        %v5333 = vadd.f32 %v3487, %v5303
        %v5334 = vadd.f32 %v3488, %v5305
        %v5335 = vadd.f32 %v3489, %v5308
        %v5336 = vadd.f32 %v3490, %v5310
        %v5337 = vadd.f32 %v3491, %v5313
        %v5338 = vadd.f32 %v3492, %v5315
        %v5339 = vadd.f32 %v3493, %v5318
        %v5340 = vadd.f32 %v3494, %v5320
        %v5341 = vadd.f32 %v3495, %v5323
        %v5342 = vadd.f32 %v3496, %v5325
        %5343 = vst [vmem:[%s529] sm:$0xff] %v5327
        %5344 = vst [vmem:[%s529 + $0x8] sm:$0xff] %v5328
        %5345 = vst [vmem:[%s529 + $0x10] sm:$0xff] %v5329
        %5346 = vst [vmem:[%s529 + $0x18] sm:$0xff] %v5330
        %5347 = vst [vmem:[%s529 + $0x20] sm:$0xff] %v5331
        %5348 = vst [vmem:[%s529 + $0x28] sm:$0xff] %v5332
        %5349 = vst [vmem:[%s529 + $0x30] sm:$0xff] %v5333
        %5350 = vst [vmem:[%s529 + $0x38] sm:$0xff] %v5334
        %5351 = vst [vmem:[%s529 + $0x40] sm:$0xff] %v5335
        %5352 = vst [vmem:[%s529 + $0x48] sm:$0xff] %v5336
        %5353 = vst [vmem:[%s529 + $0x50] sm:$0xff] %v5337
        %5354 = vst [vmem:[%s529 + $0x58] sm:$0xff] %v5338
        %5355 = vst [vmem:[%s529 + $0x60] sm:$0xff] %v5339
        %5356 = vst [vmem:[%s529 + $0x68] sm:$0xff] %v5340
        %5357 = vst [vmem:[%s529 + $0x70] sm:$0xff] %v5341
        %5358 = vst [vmem:[%s529 + $0x78] sm:$0xff] %v5342
        %s5359 = sand.u32 %s297, 1
        %s5360 = scalar_lea.sflag [#allocation5], %s5359
        %s5361 = sand.u32 %s297, 1
        %s5362 = smul.addr %s5361, 128
        %s5363 = scalar_lea.vmem [#allocation15], %s5362
        // Predicated region
        $region97: #{tpu_custom_call.1} parent=67 // pred_check
          %p5364 = pneg %p307
        $region98: #{tpu_custom_call.1} parent=67 // pred_check_branch
          %5366 = sbr.rel (%p5364) target = $region100
        $region99: #{tpu_custom_call.1} parent=67 // pred_region
          %s5367 = smul.u32 2, %s32
          %5369 = vsyncadd %s5360, 0
          %s5370 = smul.addr %s5367, 8
          %s5371 = smul.addr %s5370, 8
          %s5372 = scalar_lea.hbm %s12, %s5371
          %s5373 = sshll.u32 %s5363, 4
          %s5374 = int_to_ptr.vmem [resolvable:$true] %s5373
          %s5375 = sshll.u32 %s5372, 4
          %s5376 = int_to_ptr.hbm [resolvable:$true] %s5375
          %5381 = dma.vmem_to_hbm [thread:$0]  %s5374, 2048, %s5376, %s5360, 128, 128, 8
        $region100: #{tpu_custom_call.1} parent=67 // pred_fallthru
          _
      $region68: #{tpu_custom_call.1} parent=5 // pred_fallthru
        _
      %p5382 = scmp.le.s32.totalorder 2, %s27
      // Predicated region
      $region101: #{tpu_custom_call.1} parent=5 // pred_check
        %p5383 = pneg %p5382
      $region102: #{tpu_custom_call.1} parent=5 // pred_check_branch
        %5385 = sbr.rel (%p5383) target = $region104
      $region103: #{tpu_custom_call.1} parent=5 // pred_region
        %s5386 = ssub.s32 %s27, 2
        // Predicated region
        $region105: #{tpu_custom_call.1} parent=103 // pred_check
          %p5387 = pneg %p313
        $region106: #{tpu_custom_call.1} parent=103 // pred_check_branch
          %5389 = sbr.rel (%p5387) target = $region108
        $region107: #{tpu_custom_call.1} parent=103 // pred_region
          %s5390 = sand.u32 %s298, 1
          %s5391 = scalar_lea.sflag [#allocation5], %s5390
          %s5392 = sand.u32 %s298, 1
          %s5393 = smul.addr %s5392, 128
          %s5394 = scalar_lea.vmem [#allocation15], %s5393
          %5396 = dma.done %s5391, 2048
        $region108: #{tpu_custom_call.1} parent=103 // pred_fallthru
          _
      $region104: #{tpu_custom_call.1} parent=5 // pred_fallthru
        _
    $region6: #{tpu_custom_call.1} parent=1 // loop_footer
      %s31 = sadd.s32 1, %s27
    $region7: #{tpu_custom_call.1} parent=1 // loop_footer_branch
      %26 = sbr.rel target = $region3
    $region8: #{tpu_custom_call.1} parent=1 // loop_exit
      _
    %5397 = vsyncpa [#allocation4], 1
    %s5398 = scalar_lea.sflag [#allocation4], 1
    %5399 = vsyncpa %s5398, 1
    %5400 = vsyncpa [#allocation7], 1
    %5401 = vsyncpa [#allocation10], 1
    %5402 = vsyncpa [#allocation13], 1
    %5403 = vsyncpa [#allocation5], 1
    %s5404 = scalar_lea.sflag [#allocation5], 1
    %5405 = vsyncpa %s5404, 1

</llo_original>
